<compile_context>
chip_gen: v5e
topology: v5e:2x2
jax: 0.10.0
libtpu: 0.0.40
codegen_flags: <defaults>
</compile_context>

<pallas_src>
import functools

import jax
import jax.numpy as jnp
from jax.experimental import pallas as pl
from jax.experimental.pallas import tpu as pltpu

EPS = 1e-5


# --------------------------------------------------------------------------- #
# VMEM sizing helpers
# --------------------------------------------------------------------------- #
def _vmem_capacity_bytes():
    try:
        return int(pltpu.get_tpu_info().vmem_capacity_bytes)
    except Exception:
        return 64 * 1024 * 1024  # conservative fallback (v7x per-core capacity)


def _conv_tile_vmem_bytes(N, th, W, C, in_bytes, out_bytes, mxu_bytes):
    """Rough per-grid-step working-set estimate for the conv pass."""
    tile = N * th * W * C
    band = N * W * C
    in_blk = 2 * (tile + 2 * band) * in_bytes           # mid + 2 halos, dbl-buffered
    out_blk = 2 * (tile * out_bytes + 2 * C * 4)         # y + stats, dbl-buffered
    w_blk = 2 * 9 * C * C * mxu_bytes                    # tap-major weights
    pad = N * (th + 2) * (W + 2) * C * 4                 # f32 halo-padded scratch
    temps = tile * (4 + 3 * mxu_bytes)                    # f32 acc + K<=3C LHS temp
    return in_blk + out_blk + w_blk + pad + temps


def _pick_row_tile(N, H, W, C, in_bytes, out_bytes, mxu_bytes, budget):
    """Largest divisor of H whose per-step working set fits the VMEM budget."""
    # TODO(synk): support a ragged last tile (pl.cdiv grid + tail masking) so an
    # H with no good divisors does not degrade to tiny tiles.
    best = 1
    for th in range(1, H + 1):
        if H % th == 0 and _conv_tile_vmem_bytes(
                N, th, W, C, in_bytes, out_bytes, mxu_bytes) <= budget:
            best = th
    return best


# --------------------------------------------------------------------------- #
# Kernels
# --------------------------------------------------------------------------- #
def _conv3x3_kernel(top_ref, mid_ref, bot_ref, w_ref, scale_ref, shift_ref,
                    y_ref, stats_ref, pad_ref, *, apply_affine_relu, mxu_dtype):
    """One row tile of a 3x3 'same' conv over an (optionally affine+ReLU'd) input.

    top/mid/bot : (N,1,W,C), (N,TH,W,C), (N,1,W,C) row bands of the input.
    w_ref       : (9, Cin, Cout) tap-major weights (kh*3 + kw), in mxu_dtype.
    scale/shift : (1, C) folded BN scale/shift applied to the *input* (pass 2).
    y_ref       : (N,TH,W,C) raw conv output (pre-BN), stored in y_ref.dtype.
    stats_ref   : (1, 2, C) per-tile (sum, centered sum of squares) of the output.
    pad_ref     : (N, TH+2, W+2, C) f32 VMEM scratch: halo-padded working tile.
    """
    N, TH, W, C = mid_ref.shape
    i = pl.program_id(0)

    s = scale_ref[...]          # (1, C) f32
    t = shift_ref[...]          # (1, C) f32

    def band(v):
        # Optional per-channel affine + ReLU (fused BN1 + ReLU for the 2nd conv).
        n, h, w, c = v.shape
        v2 = v.reshape(n * h * w, c).astype(jnp.float32)
        if apply_affine_relu:
            v2 = jnp.maximum(v2 * s + t, 0.0)
        return v2.reshape(n, h, w, c)

    x_top = band(top_ref[...])
    x_mid = band(mid_ref[...])
    x_bot = band(bot_ref[...])

    # H padding: zero the halo rows at the image top/bottom, *after* the affine
    # so the (conv2-input-space) padding is exactly zero like the reference.
    x_top = x_top * jnp.where(i == 0, 0.0, 1.0)
    x_bot = x_bot * jnp.where(i == pl.num_programs(0) - 1, 0.0, 1.0)

    # W padding: only the two 1-wide border columns are zeroed, never the full
    # scratch.  TODO(synk): the dx=+-1 shifts could use pltpu.roll on a
    # sublane-aligned tile to avoid misaligned window stores/loads (v5e's single
    # store slot); kept as the proven padded-scratch form here.
    pad_ref[:, :, 0:1, :] = jnp.zeros((N, TH + 2, 1, C), jnp.float32)
    pad_ref[:, :, W + 1:W + 2, :] = jnp.zeros((N, TH + 2, 1, C), jnp.float32)
    pad_ref[:, 0:1, 1:W + 1, :] = x_top
    pad_ref[:, 1:TH + 1, 1:W + 1, :] = x_mid
    pad_ref[:, TH + 1:TH + 2, 1:W + 1, :] = x_bot

    def tap(dy, dx):
        v = pad_ref[:, dy:dy + TH, dx:dx + W, :].reshape(N * TH * W, C)
        return v.astype(mxu_dtype)

    acc = None
    if C % 128 == 0:
        # Lane-aligned channels: group taps per kernel row (K = 3*C).  Feeds the
        # 256-deep v6e/v7x MXU well with a 3x (not 9x) LHS temp.
        for dy in range(3):
            lhs = jnp.concatenate([tap(dy, dx) for dx in range(3)], axis=-1)
            rhs = w_ref[3 * dy:3 * dy + 3].reshape(3 * C, C)
            contrib = jnp.dot(lhs, rhs, preferred_element_type=jnp.float32)
            acc = contrib if acc is None else acc + contrib
    else:
        # Lane-sparse channels (e.g. the C=8 demo): per-tap matmuls accumulated
        # in vregs (no accumulator round-trips through VMEM).
        for dy in range(3):
            for dx in range(3):
                contrib = jnp.dot(tap(dy, dx), w_ref[3 * dy + dx],
                                  preferred_element_type=jnp.float32)
                acc = contrib if acc is None else acc + contrib

    # Per-tile BN partials from the f32 accumulator (exact regardless of the
    # bf16 operand cast): (sum, centered sum of squares), merged outside with
    # Chan's parallel-variance formula.
    m_count = float(N * TH * W)
    tile_sum = jnp.sum(acc, axis=0, keepdims=True)
    centered = acc - tile_sum * (1.0 / m_count)
    stats_ref[0, 0:1, :] = tile_sum
    stats_ref[0, 1:2, :] = jnp.sum(centered * centered, axis=0, keepdims=True)

    y_ref[...] = acc.reshape(N, TH, W, C).astype(y_ref.dtype)


def _bn_residual_kernel(x_ref, y_ref, scale_ref, shift_ref, out_ref):
    """out = x + (y * scale + shift)   (BN2 folded to scale/shift + residual)."""
    N, TH, W, C = x_ref.shape
    x2 = x_ref[...].reshape(N * TH * W, C)
    y2 = y_ref[...].reshape(N * TH * W, C).astype(jnp.float32)
    z = x2 + (y2 * scale_ref[...] + shift_ref[...])
    out_ref[...] = z.reshape(N, TH, W, C)


# --------------------------------------------------------------------------- #
# pallas_call wrappers
# --------------------------------------------------------------------------- #
def _conv3x3_with_stats(x, w_taps, scale, shift, *, apply_affine_relu, th,
                        mxu_dtype, out_dtype, vmem_limit):
    """Row-tiled 3x3 conv of (affine+ReLU of) x; also returns per-tile BN stats."""
    N, H, W, C = x.shape
    n_tiles = H // th

    kernel = functools.partial(_conv3x3_kernel,
                               apply_affine_relu=apply_affine_relu,
                               mxu_dtype=mxu_dtype)

    row_spec = pl.BlockSpec((N, th, W, C), lambda i: (0, i, 0, 0))
    top_spec = pl.BlockSpec(
        (N, 1, W, C), lambda i: (0, jnp.maximum(i * th - 1, 0), 0, 0))
    bot_spec = pl.BlockSpec(
        (N, 1, W, C), lambda i: (0, jnp.minimum(i * th + th, H - 1), 0, 0))
    vec_spec = pl.BlockSpec((1, C), lambda i: (0, 0))

    y, stats = pl.pallas_call(
        kernel,
        out_shape=(jax.ShapeDtypeStruct((N, H, W, C), out_dtype),
                   jax.ShapeDtypeStruct((n_tiles, 2, C), jnp.float32)),
        grid=(n_tiles,),
        in_specs=[top_spec, row_spec, bot_spec,
                  pl.BlockSpec((9, C, C), lambda i: (0, 0, 0)),
                  vec_spec, vec_spec],
        out_specs=(row_spec,
                   pl.BlockSpec((1, 2, C), lambda i: (i, 0, 0))),
        scratch_shapes=[pltpu.VMEM((N, th + 2, W + 2, C), jnp.float32)],
        compiler_params=pltpu.CompilerParams(
            dimension_semantics=("parallel",),
            vmem_limit_bytes=vmem_limit),
    )(x, x, x, w_taps, scale, shift)
    return y, stats


def _bn_residual(x, y, scale, shift, *, th, vmem_limit):
    N, H, W, C = x.shape
    n_tiles = H // th
    row_spec = pl.BlockSpec((N, th, W, C), lambda i: (0, i, 0, 0))
    vec_spec = pl.BlockSpec((1, C), lambda i: (0, 0))
    return pl.pallas_call(
        _bn_residual_kernel,
        out_shape=jax.ShapeDtypeStruct((N, H, W, C), jnp.float32),
        grid=(n_tiles,),
        in_specs=[row_spec, row_spec, vec_spec, vec_spec],
        out_specs=row_spec,
        compiler_params=pltpu.CompilerParams(
            dimension_semantics=("parallel",),
            vmem_limit_bytes=vmem_limit),
    )(x, y, scale, shift)


# --------------------------------------------------------------------------- #
# BN finalize (Chan merge) + weight repack
# --------------------------------------------------------------------------- #
def _finalize_bn(stats, gamma, beta, count):
    """Merge per-tile (sum, centered sumsq) into per-channel BN scale/shift."""
    n_tiles = stats.shape[0]
    sums = stats[:, 0, :]                                  # (T, C)
    m2s = stats[:, 1, :]                                   # (T, C)
    cnt_t = count / n_tiles
    mean_t = sums / cnt_t
    mean = jnp.sum(sums, axis=0) / count
    m2 = jnp.sum(m2s, axis=0) + cnt_t * jnp.sum((mean_t - mean[None, :]) ** 2,
                                                axis=0)
    var = jnp.maximum(m2 / count, 0.0)                     # biased variance
    scale = gamma.astype(jnp.float32) * jax.lax.rsqrt(var + EPS)
    shift = beta.astype(jnp.float32) - mean * scale
    C = scale.shape[0]
    return scale.reshape(1, C), shift.reshape(1, C)


def _tap_major_weights(w, dtype):
    # PyTorch OIHW (Cout, Cin, 3, 3) -> (kh, kw, Cin, Cout) -> (9, Cin, Cout).
    cout, cin, kh, kw = w.shape
    return jnp.transpose(w, (2, 3, 1, 0)).reshape(kh * kw, cin, cout).astype(dtype)


# --------------------------------------------------------------------------- #
# Public forward
# --------------------------------------------------------------------------- #
def residual_block(x_nchw, params, *, row_tile=None, mxu_dtype=jnp.bfloat16):
    """Forward pass of the PyTorch ResidualBlock (training-mode BatchNorm).

    x_nchw : (N, C, H, W) float32.
    params : (w1, b1, g1, be1, w2, b2, g2, be2), conv weights in OIHW layout.
    mxu_dtype controls MXU operand / HBM-intermediate precision (bf16 default:
    native MXU dtype on v5e/v6e/v7x, halves y1/y2 HBM traffic).  BN statistics
    are always computed from the f32 accumulator, so they stay exact.
    """
    # Conv biases cancel exactly under training-mode BN, so they are dropped.
    w1, _b1, g1, be1, w2, _b2, g2, be2 = params
    N, C, H, W = x_nchw.shape

    act_dtype = mxu_dtype                    # dtype of the y1/y2 HBM intermediates
    mxu_bytes = jnp.dtype(mxu_dtype).itemsize
    act_bytes = jnp.dtype(act_dtype).itemsize

    vmem_cap = _vmem_capacity_bytes()
    vmem_limit = min(int(0.8 * vmem_cap), 112 * 1024 * 1024)
    tile_budget = int(0.6 * vmem_limit)

    if row_tile is not None and H % row_tile == 0:
        th = row_tile
    else:
        th = _pick_row_tile(N, H, W, C, 4, act_bytes, mxu_bytes, tile_budget)

    # TODO(synk): if the surrounding model keeps activations NHWC end-to-end,
    # drop these two wrapper transposes entirely.
    x = jnp.transpose(x_nchw, (0, 2, 3, 1)).astype(jnp.float32)   # NHWC

    w1k = _tap_major_weights(w1, mxu_dtype)
    w2k = _tap_major_weights(w2, mxu_dtype)
    ones = jnp.ones((1, C), jnp.float32)
    zeros = jnp.zeros((1, C), jnp.float32)
    count = N * H * W

    # Pass 1: conv1 (raw) + per-tile BN1 partial statistics.
    y1, s1 = _conv3x3_with_stats(x, w1k, ones, zeros, apply_affine_relu=False,
                                 th=th, mxu_dtype=mxu_dtype, out_dtype=act_dtype,
                                 vmem_limit=vmem_limit)
    scale1, shift1 = _finalize_bn(s1, g1, be1, count)

    # Pass 2: BN1 + ReLU fused into the load, conv2 + per-tile BN2 partial stats.
    y2, s2 = _conv3x3_with_stats(y1, w2k, scale1, shift1, apply_affine_relu=True,
                                 th=th, mxu_dtype=mxu_dtype, out_dtype=act_dtype,
                                 vmem_limit=vmem_limit)
    scale2, shift2 = _finalize_bn(s2, g2, be2, count)

    # Pass 3: BN2 + residual add.
    out = _bn_residual(x, y2, scale2, shift2, th=th, vmem_limit=vmem_limit)
    return jnp.transpose(out, (0, 3, 1, 2))                       # back to NCHW


# --------------------------------------------------------------------------- #
# Pure-JAX reference + self-test
# --------------------------------------------------------------------------- #
def _reference_forward(x, params):
    """Pure-JAX reference replicating the PyTorch forward (NCHW, f32)."""
    w1, b1, g1, be1, w2, b2, g2, be2 = params

    def conv(x, w, b):
        y = jax.lax.conv_general_dilated(
            x, w, window_strides=(1, 1), padding=((1, 1), (1, 1)),
            dimension_numbers=('NCHW', 'OIHW', 'NCHW'),
            precision=jax.lax.Precision.HIGHEST)
        return y + b[None, :, None, None]

    def bn(y, g, be):
        mu = jnp.mean(y, axis=(0, 2, 3), keepdims=True)
        var = jnp.mean((y - mu) ** 2, axis=(0, 2, 3), keepdims=True)
        return (y - mu) / jnp.sqrt(var + EPS) * g[None, :, None, None] \
            + be[None, :, None, None]

    y = jax.nn.relu(bn(conv(x, w1, b1), g1, be1))
    z = bn(conv(y, w2, b2), g2, be2)
    return x + z


def _make_params(key, C):
    kw1, kb1, kw2, kb2 = jax.random.split(key, 4)
    w1 = jax.random.normal(kw1, (C, C, 3, 3), dtype=jnp.float32) * 0.1
    b1 = jax.random.normal(kb1, (C,), dtype=jnp.float32) * 0.1
    g1 = jnp.ones((C,), jnp.float32)
    be1 = jnp.zeros((C,), jnp.float32)
    w2 = jax.random.normal(kw2, (C, C, 3, 3), dtype=jnp.float32) * 0.1
    b2 = jax.random.normal(kb2, (C,), dtype=jnp.float32) * 0.1
    g2 = jnp.ones((C,), jnp.float32)
    be2 = jnp.zeros((C,), jnp.float32)
    return (w1, b1, g1, be1, w2, b2, g2, be2)


if __name__ == "__main__":
    key = jax.random.PRNGKey(0)
    kx1, kp1, kx2, kp2 = jax.random.split(key, 4)

    # Case 1: lane-sparse demo channels, 4 row tiles (exercises halo masking and
    # the cross-tile Chan BN merge), f32 MXU operands.  Tolerance allows for the
    # MXU's f32-operand pass decomposition.
    N, C, H, W = 2, 8, 16, 16
    x = jax.random.normal(kx1, (N, C, H, W), dtype=jnp.float32)
    params = _make_params(kp1, C)
    fwd = jax.jit(functools.partial(residual_block, row_tile=4,
                                    mxu_dtype=jnp.float32))
    out = jax.block_until_ready(fwd(x, params))
    ref = _reference_forward(x, params)
    assert out.shape == ref.shape == (N, C, H, W)
    err = float(jnp.max(jnp.abs(out - ref)))
    assert jnp.allclose(out, ref, atol=2e-2, rtol=2e-2), f"f32 max abs err {err}"

    # Case 2: lane-aligned channels (production-relevant path): grouped K=3C
    # matmuls, bf16 MXU operands + bf16 HBM intermediates, auto row tile sized
    # from VMEM.  Tolerance loosened for bf16 operand/intermediate rounding.
    N, C, H, W = 1, 128, 16, 16
    x = jax.random.normal(kx2, (N, C, H, W), dtype=jnp.float32)
    params = _make_params(kp2, C)
    fwd = jax.jit(residual_block)               # row_tile auto, mxu_dtype=bf16
    out = jax.block_until_ready(fwd(x, params))
    ref = _reference_forward(x, params)
    assert out.shape == ref.shape == (N, C, H, W)
    err = float(jnp.max(jnp.abs(out - ref)))
    assert jnp.allclose(out, ref, atol=6e-2, rtol=6e-2), f"bf16 max abs err {err}"

    print("KERNEL_OK")
</pallas_src>

<mosaic_0001>
module attributes {stable_mosaic.version = 11 : i64} {
  func.func @_conv3x3_kernel(%arg0: i32, %arg1: memref<2x1x16x8xf32, #tpu.memory_space<vmem>>, %arg2: memref<2x4x16x8xf32, #tpu.memory_space<vmem>>, %arg3: memref<2x1x16x8xf32, #tpu.memory_space<vmem>>, %arg4: memref<9x8x8xf32, #tpu.memory_space<vmem>>, %arg5: memref<1x8xf32, #tpu.memory_space<vmem>>, %arg6: memref<1x8xf32, #tpu.memory_space<vmem>>, %arg7: memref<2x4x16x8xf32, #tpu.memory_space<vmem>>, %arg8: memref<1x2x8xf32, #tpu.memory_space<vmem>>, %arg9: memref<2x6x18x8xf32, #tpu.memory_space<vmem>>) attributes {dimension_semantics = [#tpu.dimension_semantics<parallel>], iteration_bounds = array<i64: 4>, scalar_prefetch = 0 : i64, scratch_operands = 1 : i64, tpu.core_type = #tpu.core_type<tc>, window_params = [{transform_indices = @transform_0, window_bounds = array<i64: 2, 1, 16, 8>}, {transform_indices = @transform_1, window_bounds = array<i64: 2, 4, 16, 8>}, {transform_indices = @transform_2, window_bounds = array<i64: 2, 1, 16, 8>}, {pipeline_mode = #tpu.pipeline_mode<synchronous>, transform_indices = @transform_3, window_bounds = array<i64: 9, 8, 8>}, {pipeline_mode = #tpu.pipeline_mode<synchronous>, transform_indices = @transform_4, window_bounds = array<i64: 1, 8>}, {pipeline_mode = #tpu.pipeline_mode<synchronous>, transform_indices = @transform_5, window_bounds = array<i64: 1, 8>}, {transform_indices = @transform_6, window_bounds = array<i64: 2, 4, 16, 8>}, {transform_indices = @transform_7, window_bounds = array<i64: 1, 2, 8>}]} {
    %c0 = arith.constant 0 : index
    %c0_0 = arith.constant 0 : index
    %c0_1 = arith.constant 0 : index
    %c0_2 = arith.constant 0 : index
    %0 = vector.load %arg1[%c0, %c0_0, %c0_1, %c0_2] : memref<2x1x16x8xf32, #tpu.memory_space<vmem>>, vector<2x1x16x8xf32>
    %1 = vector.shape_cast %0 : vector<2x1x16x8xf32> to vector<32x8xf32>
    %2 = vector.shape_cast %1 : vector<32x8xf32> to vector<2x1x16x8xf32>
    %c0_3 = arith.constant 0 : index
    %c0_4 = arith.constant 0 : index
    %c0_5 = arith.constant 0 : index
    %c0_6 = arith.constant 0 : index
    %3 = vector.load %arg2[%c0_3, %c0_4, %c0_5, %c0_6] : memref<2x4x16x8xf32, #tpu.memory_space<vmem>>, vector<2x4x16x8xf32>
    %4 = vector.shape_cast %3 : vector<2x4x16x8xf32> to vector<128x8xf32>
    %5 = vector.shape_cast %4 : vector<128x8xf32> to vector<2x4x16x8xf32>
    %c0_7 = arith.constant 0 : index
    %c0_8 = arith.constant 0 : index
    %c0_9 = arith.constant 0 : index
    %c0_10 = arith.constant 0 : index
    %6 = vector.load %arg3[%c0_7, %c0_8, %c0_9, %c0_10] : memref<2x1x16x8xf32, #tpu.memory_space<vmem>>, vector<2x1x16x8xf32>
    %7 = vector.shape_cast %6 : vector<2x1x16x8xf32> to vector<32x8xf32>
    %8 = vector.shape_cast %7 : vector<32x8xf32> to vector<2x1x16x8xf32>
    %c0_i32 = arith.constant 0 : i32
    %9 = arith.cmpi eq, %arg0, %c0_i32 : i32
    %cst = arith.constant 0.000000e+00 : f32
    %cst_11 = arith.constant 1.000000e+00 : f32
    %10 = arith.select %9, %cst, %cst_11 : f32
    %11 = vector.broadcast %10 : f32 to vector<2x1x16x8xf32>
    %12 = arith.mulf %2, %11 : vector<2x1x16x8xf32>
    %c3_i32 = arith.constant 3 : i32
    %13 = arith.cmpi eq, %arg0, %c3_i32 : i32
    %cst_12 = arith.constant 0.000000e+00 : f32
    %cst_13 = arith.constant 1.000000e+00 : f32
    %14 = arith.select %13, %cst_12, %cst_13 : f32
    %15 = vector.broadcast %14 : f32 to vector<2x1x16x8xf32>
    %16 = arith.mulf %8, %15 : vector<2x1x16x8xf32>
    %cst_14 = arith.constant 0.000000e+00 : f32
    %17 = vector.broadcast %cst_14 : f32 to vector<2x6x1x8xf32>
    %c0_15 = arith.constant 0 : index
    %c0_16 = arith.constant 0 : index
    %c0_17 = arith.constant 0 : index
    %c0_18 = arith.constant 0 : index
    %18 = vector.load %arg9[%c0_15, %c0_16, %c0_17, %c0_18] : memref<2x6x18x8xf32, #tpu.memory_space<vmem>>, vector<2x6x1x8xf32>
    tpu.vector_store %arg9[%c0_15, %c0_16, %c0_17, %c0_18], %17 {strides = array<i32>} : memref<2x6x18x8xf32, #tpu.memory_space<vmem>>, vector<2x6x1x8xf32>,
    %cst_19 = arith.constant 0.000000e+00 : f32
    %19 = vector.broadcast %cst_19 : f32 to vector<2x6x1x8xf32>
    %c0_20 = arith.constant 0 : index
    %c0_21 = arith.constant 0 : index
    %c17 = arith.constant 17 : index
    %c0_22 = arith.constant 0 : index
    %20 = vector.load %arg9[%c0_20, %c0_21, %c17, %c0_22] : memref<2x6x18x8xf32, #tpu.memory_space<vmem>>, vector<2x6x1x8xf32>
    tpu.vector_store %arg9[%c0_20, %c0_21, %c17, %c0_22], %19 {strides = array<i32>} : memref<2x6x18x8xf32, #tpu.memory_space<vmem>>, vector<2x6x1x8xf32>,
    %c0_23 = arith.constant 0 : index
    %c0_24 = arith.constant 0 : index
    %c1 = arith.constant 1 : index
    %c0_25 = arith.constant 0 : index
    %21 = vector.load %arg9[%c0_23, %c0_24, %c1, %c0_25] : memref<2x6x18x8xf32, #tpu.memory_space<vmem>>, vector<2x1x16x8xf32>
    tpu.vector_store %arg9[%c0_23, %c0_24, %c1, %c0_25], %12 {strides = array<i32>} : memref<2x6x18x8xf32, #tpu.memory_space<vmem>>, vector<2x1x16x8xf32>,
    %c0_26 = arith.constant 0 : index
    %c1_27 = arith.constant 1 : index
    %c1_28 = arith.constant 1 : index
    %c0_29 = arith.constant 0 : index
    %22 = vector.load %arg9[%c0_26, %c1_27, %c1_28, %c0_29] : memref<2x6x18x8xf32, #tpu.memory_space<vmem>>, vector<2x4x16x8xf32>
    tpu.vector_store %arg9[%c0_26, %c1_27, %c1_28, %c0_29], %5 {strides = array<i32>} : memref<2x6x18x8xf32, #tpu.memory_space<vmem>>, vector<2x4x16x8xf32>,
    %c0_30 = arith.constant 0 : index
    %c5 = arith.constant 5 : index
    %c1_31 = arith.constant 1 : index
    %c0_32 = arith.constant 0 : index
    %23 = vector.load %arg9[%c0_30, %c5, %c1_31, %c0_32] : memref<2x6x18x8xf32, #tpu.memory_space<vmem>>, vector<2x1x16x8xf32>
    tpu.vector_store %arg9[%c0_30, %c5, %c1_31, %c0_32], %16 {strides = array<i32>} : memref<2x6x18x8xf32, #tpu.memory_space<vmem>>, vector<2x1x16x8xf32>,
    %c0_33 = arith.constant 0 : index
    %c0_34 = arith.constant 0 : index
    %c0_35 = arith.constant 0 : index
    %c0_36 = arith.constant 0 : index
    %24 = vector.load %arg9[%c0_33, %c0_34, %c0_35, %c0_36] : memref<2x6x18x8xf32, #tpu.memory_space<vmem>>, vector<2x4x16x8xf32>
    %25 = vector.shape_cast %24 : vector<2x4x16x8xf32> to vector<128x8xf32>
    %c0_37 = arith.constant 0 : index
    %c0_38 = arith.constant 0 : index
    %c0_39 = arith.constant 0 : index
    %26 = vector.load %arg4[%c0_37, %c0_38, %c0_39] : memref<9x8x8xf32, #tpu.memory_space<vmem>>, vector<1x8x8xf32>
    %27 = vector.shape_cast %26 : vector<1x8x8xf32> to vector<8x8xf32>
    %cst_40 = arith.constant dense<0.000000e+00> : vector<128x8xf32>
    %28 = tpu.matmul %25, %27, %cst_40 {dimension_numbers = #tpu.dot_dimension_numbers<[1], [0], [0], [1], [0, 0, 1, 1], [], []>} : vector<128x8xf32>, vector<8x8xf32>, vector<128x8xf32> -> vector<128x8xf32>
    %c0_41 = arith.constant 0 : index
    %c0_42 = arith.constant 0 : index
    %c1_43 = arith.constant 1 : index
    %c0_44 = arith.constant 0 : index
    %29 = vector.load %arg9[%c0_41, %c0_42, %c1_43, %c0_44] : memref<2x6x18x8xf32, #tpu.memory_space<vmem>>, vector<2x4x16x8xf32>
    %30 = vector.shape_cast %29 : vector<2x4x16x8xf32> to vector<128x8xf32>
    %c1_45 = arith.constant 1 : index
    %c0_46 = arith.constant 0 : index
    %c0_47 = arith.constant 0 : index
    %31 = vector.load %arg4[%c1_45, %c0_46, %c0_47] : memref<9x8x8xf32, #tpu.memory_space<vmem>>, vector<1x8x8xf32>
    %32 = vector.shape_cast %31 : vector<1x8x8xf32> to vector<8x8xf32>
    %cst_48 = arith.constant dense<0.000000e+00> : vector<128x8xf32>
    %33 = tpu.matmul %30, %32, %cst_48 {dimension_numbers = #tpu.dot_dimension_numbers<[1], [0], [0], [1], [0, 0, 1, 1], [], []>} : vector<128x8xf32>, vector<8x8xf32>, vector<128x8xf32> -> vector<128x8xf32>
    %34 = arith.addf %28, %33 : vector<128x8xf32>
    %c0_49 = arith.constant 0 : index
    %c0_50 = arith.constant 0 : index
    %c2 = arith.constant 2 : index
    %c0_51 = arith.constant 0 : index
    %35 = vector.load %arg9[%c0_49, %c0_50, %c2, %c0_51] : memref<2x6x18x8xf32, #tpu.memory_space<vmem>>, vector<2x4x16x8xf32>
    %36 = vector.shape_cast %35 : vector<2x4x16x8xf32> to vector<128x8xf32>
    %c2_52 = arith.constant 2 : index
    %c0_53 = arith.constant 0 : index
    %c0_54 = arith.constant 0 : index
    %37 = vector.load %arg4[%c2_52, %c0_53, %c0_54] : memref<9x8x8xf32, #tpu.memory_space<vmem>>, vector<1x8x8xf32>
    %38 = vector.shape_cast %37 : vector<1x8x8xf32> to vector<8x8xf32>
    %cst_55 = arith.constant dense<0.000000e+00> : vector<128x8xf32>
    %39 = tpu.matmul %36, %38, %cst_55 {dimension_numbers = #tpu.dot_dimension_numbers<[1], [0], [0], [1], [0, 0, 1, 1], [], []>} : vector<128x8xf32>, vector<8x8xf32>, vector<128x8xf32> -> vector<128x8xf32>
    %40 = arith.addf %34, %39 : vector<128x8xf32>
    %c0_56 = arith.constant 0 : index
    %c1_57 = arith.constant 1 : index
    %c0_58 = arith.constant 0 : index
    %c0_59 = arith.constant 0 : index
    %41 = vector.load %arg9[%c0_56, %c1_57, %c0_58, %c0_59] : memref<2x6x18x8xf32, #tpu.memory_space<vmem>>, vector<2x4x16x8xf32>
    %42 = vector.shape_cast %41 : vector<2x4x16x8xf32> to vector<128x8xf32>
    %c3 = arith.constant 3 : index
    %c0_60 = arith.constant 0 : index
    %c0_61 = arith.constant 0 : index
    %43 = vector.load %arg4[%c3, %c0_60, %c0_61] : memref<9x8x8xf32, #tpu.memory_space<vmem>>, vector<1x8x8xf32>
    %44 = vector.shape_cast %43 : vector<1x8x8xf32> to vector<8x8xf32>
    %cst_62 = arith.constant dense<0.000000e+00> : vector<128x8xf32>
    %45 = tpu.matmul %42, %44, %cst_62 {dimension_numbers = #tpu.dot_dimension_numbers<[1], [0], [0], [1], [0, 0, 1, 1], [], []>} : vector<128x8xf32>, vector<8x8xf32>, vector<128x8xf32> -> vector<128x8xf32>
    %46 = arith.addf %40, %45 : vector<128x8xf32>
    %c0_63 = arith.constant 0 : index
    %c1_64 = arith.constant 1 : index
    %c1_65 = arith.constant 1 : index
    %c0_66 = arith.constant 0 : index
    %47 = vector.load %arg9[%c0_63, %c1_64, %c1_65, %c0_66] : memref<2x6x18x8xf32, #tpu.memory_space<vmem>>, vector<2x4x16x8xf32>
    %48 = vector.shape_cast %47 : vector<2x4x16x8xf32> to vector<128x8xf32>
    %c4 = arith.constant 4 : index
    %c0_67 = arith.constant 0 : index
    %c0_68 = arith.constant 0 : index
    %49 = vector.load %arg4[%c4, %c0_67, %c0_68] : memref<9x8x8xf32, #tpu.memory_space<vmem>>, vector<1x8x8xf32>
    %50 = vector.shape_cast %49 : vector<1x8x8xf32> to vector<8x8xf32>
    %cst_69 = arith.constant dense<0.000000e+00> : vector<128x8xf32>
    %51 = tpu.matmul %48, %50, %cst_69 {dimension_numbers = #tpu.dot_dimension_numbers<[1], [0], [0], [1], [0, 0, 1, 1], [], []>} : vector<128x8xf32>, vector<8x8xf32>, vector<128x8xf32> -> vector<128x8xf32>
    %52 = arith.addf %46, %51 : vector<128x8xf32>
    %c0_70 = arith.constant 0 : index
    %c1_71 = arith.constant 1 : index
    %c2_72 = arith.constant 2 : index
    %c0_73 = arith.constant 0 : index
    %53 = vector.load %arg9[%c0_70, %c1_71, %c2_72, %c0_73] : memref<2x6x18x8xf32, #tpu.memory_space<vmem>>, vector<2x4x16x8xf32>
    %54 = vector.shape_cast %53 : vector<2x4x16x8xf32> to vector<128x8xf32>
    %c5_74 = arith.constant 5 : index
    %c0_75 = arith.constant 0 : index
    %c0_76 = arith.constant 0 : index
    %55 = vector.load %arg4[%c5_74, %c0_75, %c0_76] : memref<9x8x8xf32, #tpu.memory_space<vmem>>, vector<1x8x8xf32>
    %56 = vector.shape_cast %55 : vector<1x8x8xf32> to vector<8x8xf32>
    %cst_77 = arith.constant dense<0.000000e+00> : vector<128x8xf32>
    %57 = tpu.matmul %54, %56, %cst_77 {dimension_numbers = #tpu.dot_dimension_numbers<[1], [0], [0], [1], [0, 0, 1, 1], [], []>} : vector<128x8xf32>, vector<8x8xf32>, vector<128x8xf32> -> vector<128x8xf32>
    %58 = arith.addf %52, %57 : vector<128x8xf32>
    %c0_78 = arith.constant 0 : index
    %c2_79 = arith.constant 2 : index
    %c0_80 = arith.constant 0 : index
    %c0_81 = arith.constant 0 : index
    %59 = vector.load %arg9[%c0_78, %c2_79, %c0_80, %c0_81] : memref<2x6x18x8xf32, #tpu.memory_space<vmem>>, vector<2x4x16x8xf32>
    %60 = vector.shape_cast %59 : vector<2x4x16x8xf32> to vector<128x8xf32>
    %c6 = arith.constant 6 : index
    %c0_82 = arith.constant 0 : index
    %c0_83 = arith.constant 0 : index
    %61 = vector.load %arg4[%c6, %c0_82, %c0_83] : memref<9x8x8xf32, #tpu.memory_space<vmem>>, vector<1x8x8xf32>
    %62 = vector.shape_cast %61 : vector<1x8x8xf32> to vector<8x8xf32>
    %cst_84 = arith.constant dense<0.000000e+00> : vector<128x8xf32>
    %63 = tpu.matmul %60, %62, %cst_84 {dimension_numbers = #tpu.dot_dimension_numbers<[1], [0], [0], [1], [0, 0, 1, 1], [], []>} : vector<128x8xf32>, vector<8x8xf32>, vector<128x8xf32> -> vector<128x8xf32>
    %64 = arith.addf %58, %63 : vector<128x8xf32>
    %c0_85 = arith.constant 0 : index
    %c2_86 = arith.constant 2 : index
    %c1_87 = arith.constant 1 : index
    %c0_88 = arith.constant 0 : index
    %65 = vector.load %arg9[%c0_85, %c2_86, %c1_87, %c0_88] : memref<2x6x18x8xf32, #tpu.memory_space<vmem>>, vector<2x4x16x8xf32>
    %66 = vector.shape_cast %65 : vector<2x4x16x8xf32> to vector<128x8xf32>
    %c7 = arith.constant 7 : index
    %c0_89 = arith.constant 0 : index
    %c0_90 = arith.constant 0 : index
    %67 = vector.load %arg4[%c7, %c0_89, %c0_90] : memref<9x8x8xf32, #tpu.memory_space<vmem>>, vector<1x8x8xf32>
    %68 = vector.shape_cast %67 : vector<1x8x8xf32> to vector<8x8xf32>
    %cst_91 = arith.constant dense<0.000000e+00> : vector<128x8xf32>
    %69 = tpu.matmul %66, %68, %cst_91 {dimension_numbers = #tpu.dot_dimension_numbers<[1], [0], [0], [1], [0, 0, 1, 1], [], []>} : vector<128x8xf32>, vector<8x8xf32>, vector<128x8xf32> -> vector<128x8xf32>
    %70 = arith.addf %64, %69 : vector<128x8xf32>
    %c0_92 = arith.constant 0 : index
    %c2_93 = arith.constant 2 : index
    %c2_94 = arith.constant 2 : index
    %c0_95 = arith.constant 0 : index
    %71 = vector.load %arg9[%c0_92, %c2_93, %c2_94, %c0_95] : memref<2x6x18x8xf32, #tpu.memory_space<vmem>>, vector<2x4x16x8xf32>
    %72 = vector.shape_cast %71 : vector<2x4x16x8xf32> to vector<128x8xf32>
    %c8 = arith.constant 8 : index
    %c0_96 = arith.constant 0 : index
    %c0_97 = arith.constant 0 : index
    %73 = vector.load %arg4[%c8, %c0_96, %c0_97] : memref<9x8x8xf32, #tpu.memory_space<vmem>>, vector<1x8x8xf32>
    %74 = vector.shape_cast %73 : vector<1x8x8xf32> to vector<8x8xf32>
    %cst_98 = arith.constant dense<0.000000e+00> : vector<128x8xf32>
    %75 = tpu.matmul %72, %74, %cst_98 {dimension_numbers = #tpu.dot_dimension_numbers<[1], [0], [0], [1], [0, 0, 1, 1], [], []>} : vector<128x8xf32>, vector<8x8xf32>, vector<128x8xf32> -> vector<128x8xf32>
    %76 = arith.addf %70, %75 : vector<128x8xf32>
    %cst_99 = arith.constant dense<0.000000e+00> : vector<8xf32>
    %77 = vector.multi_reduction <add>, %76, %cst_99 [0] : vector<128x8xf32> to vector<8xf32>
    %78 = vector.shape_cast %77 : vector<8xf32> to vector<1x8xf32>
    %cst_100 = arith.constant 7.812500e-03 : f32
    %79 = vector.broadcast %cst_100 : f32 to vector<1x8xf32>
    %80 = arith.mulf %78, %79 : vector<1x8xf32>
    %81 = vector.broadcast %80 : vector<1x8xf32> to vector<128x8xf32>
    %82 = arith.subf %76, %81 : vector<128x8xf32>
    %c0_101 = arith.constant 0 : index
    %c0_102 = arith.constant 0 : index
    %c0_103 = arith.constant 0 : index
    %83 = vector.load %arg8[%c0_101, %c0_102, %c0_103] : memref<1x2x8xf32, #tpu.memory_space<vmem>>, vector<1x1x8xf32>
    %84 = vector.shape_cast %83 : vector<1x1x8xf32> to vector<1x8xf32>
    %85 = vector.shape_cast %78 : vector<1x8xf32> to vector<1x1x8xf32>
    tpu.vector_store %arg8[%c0_101, %c0_102, %c0_103], %85 {strides = array<i32>} : memref<1x2x8xf32, #tpu.memory_space<vmem>>, vector<1x1x8xf32>,
    %86 = arith.mulf %82, %82 : vector<128x8xf32>
    %cst_104 = arith.constant dense<0.000000e+00> : vector<8xf32>
    %87 = vector.multi_reduction <add>, %86, %cst_104 [0] : vector<128x8xf32> to vector<8xf32>
    %88 = vector.shape_cast %87 : vector<8xf32> to vector<1x8xf32>
    %c0_105 = arith.constant 0 : index
    %c1_106 = arith.constant 1 : index
    %c0_107 = arith.constant 0 : index
    %89 = vector.load %arg8[%c0_105, %c1_106, %c0_107] : memref<1x2x8xf32, #tpu.memory_space<vmem>>, vector<1x1x8xf32>
    %90 = vector.shape_cast %89 : vector<1x1x8xf32> to vector<1x8xf32>
    %91 = vector.shape_cast %88 : vector<1x8xf32> to vector<1x1x8xf32>
    tpu.vector_store %arg8[%c0_105, %c1_106, %c0_107], %91 {strides = array<i32>} : memref<1x2x8xf32, #tpu.memory_space<vmem>>, vector<1x1x8xf32>,
    %92 = vector.shape_cast %76 : vector<128x8xf32> to vector<2x4x16x8xf32>
    %c0_108 = arith.constant 0 : index
    %c0_109 = arith.constant 0 : index
    %c0_110 = arith.constant 0 : index
    %c0_111 = arith.constant 0 : index
    %93 = vector.load %arg7[%c0_108, %c0_109, %c0_110, %c0_111] : memref<2x4x16x8xf32, #tpu.memory_space<vmem>>, vector<2x4x16x8xf32>
    tpu.vector_store %arg7[%c0_108, %c0_109, %c0_110, %c0_111], %92 {strides = array<i32>} : memref<2x4x16x8xf32, #tpu.memory_space<vmem>>, vector<2x4x16x8xf32>,
    return
  }
  func.func @transform_0(%arg0: i32) -> (i32, i32, i32, i32) {
    %c4_i32 = arith.constant 4 : i32
    %0 = arith.muli %arg0, %c4_i32 : i32
    %c1_i32 = arith.constant 1 : i32
    %1 = arith.subi %0, %c1_i32 : i32
    %c0_i32 = arith.constant 0 : i32
    %2 = arith.maxsi %1, %c0_i32 : i32
    %c0_i32_0 = arith.constant 0 : i32
    %c0_i32_1 = arith.constant 0 : i32
    %c0_i32_2 = arith.constant 0 : i32
    %c0_i32_3 = arith.constant 0 : i32
    return %c0_i32_0, %2, %c0_i32_1, %c0_i32_2 : i32, i32, i32, i32
  }
  func.func @transform_1(%arg0: i32) -> (i32, i32, i32, i32) {
    %c0_i32 = arith.constant 0 : i32
    %c0_i32_0 = arith.constant 0 : i32
    %c0_i32_1 = arith.constant 0 : i32
    %c0_i32_2 = arith.constant 0 : i32
    return %c0_i32, %arg0, %c0_i32_0, %c0_i32_1 : i32, i32, i32, i32
  }
  func.func @transform_2(%arg0: i32) -> (i32, i32, i32, i32) {
    %c4_i32 = arith.constant 4 : i32
    %0 = arith.muli %arg0, %c4_i32 : i32
    %c4_i32_0 = arith.constant 4 : i32
    %1 = arith.addi %0, %c4_i32_0 : i32
    %c15_i32 = arith.constant 15 : i32
    %2 = arith.minsi %1, %c15_i32 : i32
    %c0_i32 = arith.constant 0 : i32
    %c0_i32_1 = arith.constant 0 : i32
    %c0_i32_2 = arith.constant 0 : i32
    %c0_i32_3 = arith.constant 0 : i32
    return %c0_i32, %2, %c0_i32_1, %c0_i32_2 : i32, i32, i32, i32
  }
  func.func @transform_3(%arg0: i32) -> (i32, i32, i32) {
    %c0_i32 = arith.constant 0 : i32
    %c0_i32_0 = arith.constant 0 : i32
    %c0_i32_1 = arith.constant 0 : i32
    %c0_i32_2 = arith.constant 0 : i32
    return %c0_i32, %c0_i32_0, %c0_i32_1 : i32, i32, i32
  }
  func.func @transform_4(%arg0: i32) -> (i32, i32) {
    %c0_i32 = arith.constant 0 : i32
    %c0_i32_0 = arith.constant 0 : i32
    %c0_i32_1 = arith.constant 0 : i32
    return %c0_i32, %c0_i32_0 : i32, i32
  }
  func.func @transform_5(%arg0: i32) -> (i32, i32) {
    %c0_i32 = arith.constant 0 : i32
    %c0_i32_0 = arith.constant 0 : i32
    %c0_i32_1 = arith.constant 0 : i32
    return %c0_i32, %c0_i32_0 : i32, i32
  }
  func.func @transform_6(%arg0: i32) -> (i32, i32, i32, i32) {
    %c0_i32 = arith.constant 0 : i32
    %c0_i32_0 = arith.constant 0 : i32
    %c0_i32_1 = arith.constant 0 : i32
    %c0_i32_2 = arith.constant 0 : i32
    return %c0_i32, %arg0, %c0_i32_0, %c0_i32_1 : i32, i32, i32, i32
  }
  func.func @transform_7(%arg0: i32) -> (i32, i32, i32) {
    %c0_i32 = arith.constant 0 : i32
    %c0_i32_0 = arith.constant 0 : i32
    %c0_i32_1 = arith.constant 0 : i32
    return %arg0, %c0_i32, %c0_i32_0 : i32, i32, i32
  }
}

module attributes {stable_mosaic.version = 11 : i64} {
  func.func @_bn_residual_kernel(%arg0: i32, %arg1: memref<2x4x16x8xf32, #tpu.memory_space<vmem>>, %arg2: memref<2x4x16x8xf32, #tpu.memory_space<vmem>>, %arg3: memref<1x8xf32, #tpu.memory_space<vmem>>, %arg4: memref<1x8xf32, #tpu.memory_space<vmem>>, %arg5: memref<2x4x16x8xf32, #tpu.memory_space<vmem>>) attributes {dimension_semantics = [#tpu.dimension_semantics<parallel>], iteration_bounds = array<i64: 4>, scalar_prefetch = 0 : i64, scratch_operands = 0 : i64, tpu.core_type = #tpu.core_type<tc>, window_params = [{transform_indices = @transform_0, window_bounds = array<i64: 2, 4, 16, 8>}, {transform_indices = @transform_1, window_bounds = array<i64: 2, 4, 16, 8>}, {pipeline_mode = #tpu.pipeline_mode<synchronous>, transform_indices = @transform_2, window_bounds = array<i64: 1, 8>}, {pipeline_mode = #tpu.pipeline_mode<synchronous>, transform_indices = @transform_3, window_bounds = array<i64: 1, 8>}, {transform_indices = @transform_4, window_bounds = array<i64: 2, 4, 16, 8>}]} {
    %c0 = arith.constant 0 : index
    %c0_0 = arith.constant 0 : index
    %c0_1 = arith.constant 0 : index
    %c0_2 = arith.constant 0 : index
    %0 = vector.load %arg1[%c0, %c0_0, %c0_1, %c0_2] : memref<2x4x16x8xf32, #tpu.memory_space<vmem>>, vector<2x4x16x8xf32>
    %1 = vector.shape_cast %0 : vector<2x4x16x8xf32> to vector<128x8xf32>
    %c0_3 = arith.constant 0 : index
    %c0_4 = arith.constant 0 : index
    %c0_5 = arith.constant 0 : index
    %c0_6 = arith.constant 0 : index
    %2 = vector.load %arg2[%c0_3, %c0_4, %c0_5, %c0_6] : memref<2x4x16x8xf32, #tpu.memory_space<vmem>>, vector<2x4x16x8xf32>
    %3 = vector.shape_cast %2 : vector<2x4x16x8xf32> to vector<128x8xf32>
    %c0_7 = arith.constant 0 : index
    %c0_8 = arith.constant 0 : index
    %4 = vector.load %arg3[%c0_7, %c0_8] : memref<1x8xf32, #tpu.memory_space<vmem>>, vector<1x8xf32>
    %5 = vector.broadcast %4 : vector<1x8xf32> to vector<128x8xf32>
    %6 = arith.mulf %3, %5 : vector<128x8xf32>
    %c0_9 = arith.constant 0 : index
    %c0_10 = arith.constant 0 : index
    %7 = vector.load %arg4[%c0_9, %c0_10] : memref<1x8xf32, #tpu.memory_space<vmem>>, vector<1x8xf32>
    %8 = vector.broadcast %7 : vector<1x8xf32> to vector<128x8xf32>
    %9 = arith.addf %6, %8 : vector<128x8xf32>
    %10 = arith.addf %1, %9 : vector<128x8xf32>
    %11 = vector.shape_cast %10 : vector<128x8xf32> to vector<2x4x16x8xf32>
    %c0_11 = arith.constant 0 : index
    %c0_12 = arith.constant 0 : index
    %c0_13 = arith.constant 0 : index
    %c0_14 = arith.constant 0 : index
    %12 = vector.load %arg5[%c0_11, %c0_12, %c0_13, %c0_14] : memref<2x4x16x8xf32, #tpu.memory_space<vmem>>, vector<2x4x16x8xf32>
    tpu.vector_store %arg5[%c0_11, %c0_12, %c0_13, %c0_14], %11 {strides = array<i32>} : memref<2x4x16x8xf32, #tpu.memory_space<vmem>>, vector<2x4x16x8xf32>,
    return
  }
  func.func @transform_0(%arg0: i32) -> (i32, i32, i32, i32) {
    %c0_i32 = arith.constant 0 : i32
    %c0_i32_0 = arith.constant 0 : i32
    %c0_i32_1 = arith.constant 0 : i32
    %c0_i32_2 = arith.constant 0 : i32
    return %c0_i32, %arg0, %c0_i32_0, %c0_i32_1 : i32, i32, i32, i32
  }
  func.func @transform_1(%arg0: i32) -> (i32, i32, i32, i32) {
    %c0_i32 = arith.constant 0 : i32
    %c0_i32_0 = arith.constant 0 : i32
    %c0_i32_1 = arith.constant 0 : i32
    %c0_i32_2 = arith.constant 0 : i32
    return %c0_i32, %arg0, %c0_i32_0, %c0_i32_1 : i32, i32, i32, i32
  }
  func.func @transform_2(%arg0: i32) -> (i32, i32) {
    %c0_i32 = arith.constant 0 : i32
    %c0_i32_0 = arith.constant 0 : i32
    %c0_i32_1 = arith.constant 0 : i32
    return %c0_i32, %c0_i32_0 : i32, i32
  }
  func.func @transform_3(%arg0: i32) -> (i32, i32) {
    %c0_i32 = arith.constant 0 : i32
    %c0_i32_0 = arith.constant 0 : i32
    %c0_i32_1 = arith.constant 0 : i32
    return %c0_i32, %c0_i32_0 : i32, i32
  }
  func.func @transform_4(%arg0: i32) -> (i32, i32, i32, i32) {
    %c0_i32 = arith.constant 0 : i32
    %c0_i32_0 = arith.constant 0 : i32
    %c0_i32_1 = arith.constant 0 : i32
    %c0_i32_2 = arith.constant 0 : i32
    return %c0_i32, %arg0, %c0_i32_0, %c0_i32_1 : i32, i32, i32, i32
  }
}

module attributes {stable_mosaic.version = 11 : i64} {
  func.func @_conv3x3_kernel(%arg0: i32, %arg1: memref<2x1x16x8xf32, #tpu.memory_space<vmem>>, %arg2: memref<2x4x16x8xf32, #tpu.memory_space<vmem>>, %arg3: memref<2x1x16x8xf32, #tpu.memory_space<vmem>>, %arg4: memref<9x8x8xf32, #tpu.memory_space<vmem>>, %arg5: memref<1x8xf32, #tpu.memory_space<vmem>>, %arg6: memref<1x8xf32, #tpu.memory_space<vmem>>, %arg7: memref<2x4x16x8xf32, #tpu.memory_space<vmem>>, %arg8: memref<1x2x8xf32, #tpu.memory_space<vmem>>, %arg9: memref<2x6x18x8xf32, #tpu.memory_space<vmem>>) attributes {dimension_semantics = [#tpu.dimension_semantics<parallel>], iteration_bounds = array<i64: 4>, scalar_prefetch = 0 : i64, scratch_operands = 1 : i64, tpu.core_type = #tpu.core_type<tc>, window_params = [{transform_indices = @transform_0, window_bounds = array<i64: 2, 1, 16, 8>}, {transform_indices = @transform_1, window_bounds = array<i64: 2, 4, 16, 8>}, {transform_indices = @transform_2, window_bounds = array<i64: 2, 1, 16, 8>}, {pipeline_mode = #tpu.pipeline_mode<synchronous>, transform_indices = @transform_3, window_bounds = array<i64: 9, 8, 8>}, {pipeline_mode = #tpu.pipeline_mode<synchronous>, transform_indices = @transform_4, window_bounds = array<i64: 1, 8>}, {pipeline_mode = #tpu.pipeline_mode<synchronous>, transform_indices = @transform_5, window_bounds = array<i64: 1, 8>}, {transform_indices = @transform_6, window_bounds = array<i64: 2, 4, 16, 8>}, {transform_indices = @transform_7, window_bounds = array<i64: 1, 2, 8>}]} {
    %c0 = arith.constant 0 : index
    %c0_0 = arith.constant 0 : index
    %0 = vector.load %arg5[%c0, %c0_0] : memref<1x8xf32, #tpu.memory_space<vmem>>, vector<1x8xf32>
    %c0_1 = arith.constant 0 : index
    %c0_2 = arith.constant 0 : index
    %1 = vector.load %arg6[%c0_1, %c0_2] : memref<1x8xf32, #tpu.memory_space<vmem>>, vector<1x8xf32>
    %c0_3 = arith.constant 0 : index
    %c0_4 = arith.constant 0 : index
    %c0_5 = arith.constant 0 : index
    %c0_6 = arith.constant 0 : index
    %2 = vector.load %arg1[%c0_3, %c0_4, %c0_5, %c0_6] : memref<2x1x16x8xf32, #tpu.memory_space<vmem>>, vector<2x1x16x8xf32>
    %3 = vector.shape_cast %2 : vector<2x1x16x8xf32> to vector<32x8xf32>
    %4 = vector.broadcast %0 : vector<1x8xf32> to vector<32x8xf32>
    %5 = arith.mulf %3, %4 : vector<32x8xf32>
    %6 = vector.broadcast %1 : vector<1x8xf32> to vector<32x8xf32>
    %7 = arith.addf %5, %6 : vector<32x8xf32>
    %cst = arith.constant 0.000000e+00 : f32
    %8 = vector.broadcast %cst : f32 to vector<32x8xf32>
    %9 = arith.maximumf %7, %8 : vector<32x8xf32>
    %10 = vector.shape_cast %9 : vector<32x8xf32> to vector<2x1x16x8xf32>
    %c0_7 = arith.constant 0 : index
    %c0_8 = arith.constant 0 : index
    %c0_9 = arith.constant 0 : index
    %c0_10 = arith.constant 0 : index
    %11 = vector.load %arg2[%c0_7, %c0_8, %c0_9, %c0_10] : memref<2x4x16x8xf32, #tpu.memory_space<vmem>>, vector<2x4x16x8xf32>
    %12 = vector.shape_cast %11 : vector<2x4x16x8xf32> to vector<128x8xf32>
    %13 = vector.broadcast %0 : vector<1x8xf32> to vector<128x8xf32>
    %14 = arith.mulf %12, %13 : vector<128x8xf32>
    %15 = vector.broadcast %1 : vector<1x8xf32> to vector<128x8xf32>
    %16 = arith.addf %14, %15 : vector<128x8xf32>
    %cst_11 = arith.constant 0.000000e+00 : f32
    %17 = vector.broadcast %cst_11 : f32 to vector<128x8xf32>
    %18 = arith.maximumf %16, %17 : vector<128x8xf32>
    %19 = vector.shape_cast %18 : vector<128x8xf32> to vector<2x4x16x8xf32>
    %c0_12 = arith.constant 0 : index
    %c0_13 = arith.constant 0 : index
    %c0_14 = arith.constant 0 : index
    %c0_15 = arith.constant 0 : index
    %20 = vector.load %arg3[%c0_12, %c0_13, %c0_14, %c0_15] : memref<2x1x16x8xf32, #tpu.memory_space<vmem>>, vector<2x1x16x8xf32>
    %21 = vector.shape_cast %20 : vector<2x1x16x8xf32> to vector<32x8xf32>
    %22 = vector.broadcast %0 : vector<1x8xf32> to vector<32x8xf32>
    %23 = arith.mulf %21, %22 : vector<32x8xf32>
    %24 = vector.broadcast %1 : vector<1x8xf32> to vector<32x8xf32>
    %25 = arith.addf %23, %24 : vector<32x8xf32>
    %cst_16 = arith.constant 0.000000e+00 : f32
    %26 = vector.broadcast %cst_16 : f32 to vector<32x8xf32>
    %27 = arith.maximumf %25, %26 : vector<32x8xf32>
    %28 = vector.shape_cast %27 : vector<32x8xf32> to vector<2x1x16x8xf32>
    %c0_i32 = arith.constant 0 : i32
    %29 = arith.cmpi eq, %arg0, %c0_i32 : i32
    %cst_17 = arith.constant 0.000000e+00 : f32
    %cst_18 = arith.constant 1.000000e+00 : f32
    %30 = arith.select %29, %cst_17, %cst_18 : f32
    %31 = vector.broadcast %30 : f32 to vector<2x1x16x8xf32>
    %32 = arith.mulf %10, %31 : vector<2x1x16x8xf32>
    %c3_i32 = arith.constant 3 : i32
    %33 = arith.cmpi eq, %arg0, %c3_i32 : i32
    %cst_19 = arith.constant 0.000000e+00 : f32
    %cst_20 = arith.constant 1.000000e+00 : f32
    %34 = arith.select %33, %cst_19, %cst_20 : f32
    %35 = vector.broadcast %34 : f32 to vector<2x1x16x8xf32>
    %36 = arith.mulf %28, %35 : vector<2x1x16x8xf32>
    %cst_21 = arith.constant 0.000000e+00 : f32
    %37 = vector.broadcast %cst_21 : f32 to vector<2x6x1x8xf32>
    %c0_22 = arith.constant 0 : index
    %c0_23 = arith.constant 0 : index
    %c0_24 = arith.constant 0 : index
    %c0_25 = arith.constant 0 : index
    %38 = vector.load %arg9[%c0_22, %c0_23, %c0_24, %c0_25] : memref<2x6x18x8xf32, #tpu.memory_space<vmem>>, vector<2x6x1x8xf32>
    tpu.vector_store %arg9[%c0_22, %c0_23, %c0_24, %c0_25], %37 {strides = array<i32>} : memref<2x6x18x8xf32, #tpu.memory_space<vmem>>, vector<2x6x1x8xf32>,
    %cst_26 = arith.constant 0.000000e+00 : f32
    %39 = vector.broadcast %cst_26 : f32 to vector<2x6x1x8xf32>
    %c0_27 = arith.constant 0 : index
    %c0_28 = arith.constant 0 : index
    %c17 = arith.constant 17 : index
    %c0_29 = arith.constant 0 : index
    %40 = vector.load %arg9[%c0_27, %c0_28, %c17, %c0_29] : memref<2x6x18x8xf32, #tpu.memory_space<vmem>>, vector<2x6x1x8xf32>
    tpu.vector_store %arg9[%c0_27, %c0_28, %c17, %c0_29], %39 {strides = array<i32>} : memref<2x6x18x8xf32, #tpu.memory_space<vmem>>, vector<2x6x1x8xf32>,
    %c0_30 = arith.constant 0 : index
    %c0_31 = arith.constant 0 : index
    %c1 = arith.constant 1 : index
    %c0_32 = arith.constant 0 : index
    %41 = vector.load %arg9[%c0_30, %c0_31, %c1, %c0_32] : memref<2x6x18x8xf32, #tpu.memory_space<vmem>>, vector<2x1x16x8xf32>
    tpu.vector_store %arg9[%c0_30, %c0_31, %c1, %c0_32], %32 {strides = array<i32>} : memref<2x6x18x8xf32, #tpu.memory_space<vmem>>, vector<2x1x16x8xf32>,
    %c0_33 = arith.constant 0 : index
    %c1_34 = arith.constant 1 : index
    %c1_35 = arith.constant 1 : index
    %c0_36 = arith.constant 0 : index
    %42 = vector.load %arg9[%c0_33, %c1_34, %c1_35, %c0_36] : memref<2x6x18x8xf32, #tpu.memory_space<vmem>>, vector<2x4x16x8xf32>
    tpu.vector_store %arg9[%c0_33, %c1_34, %c1_35, %c0_36], %19 {strides = array<i32>} : memref<2x6x18x8xf32, #tpu.memory_space<vmem>>, vector<2x4x16x8xf32>,
    %c0_37 = arith.constant 0 : index
    %c5 = arith.constant 5 : index
    %c1_38 = arith.constant 1 : index
    %c0_39 = arith.constant 0 : index
    %43 = vector.load %arg9[%c0_37, %c5, %c1_38, %c0_39] : memref<2x6x18x8xf32, #tpu.memory_space<vmem>>, vector<2x1x16x8xf32>
    tpu.vector_store %arg9[%c0_37, %c5, %c1_38, %c0_39], %36 {strides = array<i32>} : memref<2x6x18x8xf32, #tpu.memory_space<vmem>>, vector<2x1x16x8xf32>,
    %c0_40 = arith.constant 0 : index
    %c0_41 = arith.constant 0 : index
    %c0_42 = arith.constant 0 : index
    %c0_43 = arith.constant 0 : index
    %44 = vector.load %arg9[%c0_40, %c0_41, %c0_42, %c0_43] : memref<2x6x18x8xf32, #tpu.memory_space<vmem>>, vector<2x4x16x8xf32>
    %45 = vector.shape_cast %44 : vector<2x4x16x8xf32> to vector<128x8xf32>
    %c0_44 = arith.constant 0 : index
    %c0_45 = arith.constant 0 : index
    %c0_46 = arith.constant 0 : index
    %46 = vector.load %arg4[%c0_44, %c0_45, %c0_46] : memref<9x8x8xf32, #tpu.memory_space<vmem>>, vector<1x8x8xf32>
    %47 = vector.shape_cast %46 : vector<1x8x8xf32> to vector<8x8xf32>
    %cst_47 = arith.constant dense<0.000000e+00> : vector<128x8xf32>
    %48 = tpu.matmul %45, %47, %cst_47 {dimension_numbers = #tpu.dot_dimension_numbers<[1], [0], [0], [1], [0, 0, 1, 1], [], []>} : vector<128x8xf32>, vector<8x8xf32>, vector<128x8xf32> -> vector<128x8xf32>
    %c0_48 = arith.constant 0 : index
    %c0_49 = arith.constant 0 : index
    %c1_50 = arith.constant 1 : index
    %c0_51 = arith.constant 0 : index
    %49 = vector.load %arg9[%c0_48, %c0_49, %c1_50, %c0_51] : memref<2x6x18x8xf32, #tpu.memory_space<vmem>>, vector<2x4x16x8xf32>
    %50 = vector.shape_cast %49 : vector<2x4x16x8xf32> to vector<128x8xf32>
    %c1_52 = arith.constant 1 : index
    %c0_53 = arith.constant 0 : index
    %c0_54 = arith.constant 0 : index
    %51 = vector.load %arg4[%c1_52, %c0_53, %c0_54] : memref<9x8x8xf32, #tpu.memory_space<vmem>>, vector<1x8x8xf32>
    %52 = vector.shape_cast %51 : vector<1x8x8xf32> to vector<8x8xf32>
    %cst_55 = arith.constant dense<0.000000e+00> : vector<128x8xf32>
    %53 = tpu.matmul %50, %52, %cst_55 {dimension_numbers = #tpu.dot_dimension_numbers<[1], [0], [0], [1], [0, 0, 1, 1], [], []>} : vector<128x8xf32>, vector<8x8xf32>, vector<128x8xf32> -> vector<128x8xf32>
    %54 = arith.addf %48, %53 : vector<128x8xf32>
    %c0_56 = arith.constant 0 : index
    %c0_57 = arith.constant 0 : index
    %c2 = arith.constant 2 : index
    %c0_58 = arith.constant 0 : index
    %55 = vector.load %arg9[%c0_56, %c0_57, %c2, %c0_58] : memref<2x6x18x8xf32, #tpu.memory_space<vmem>>, vector<2x4x16x8xf32>
    %56 = vector.shape_cast %55 : vector<2x4x16x8xf32> to vector<128x8xf32>
    %c2_59 = arith.constant 2 : index
    %c0_60 = arith.constant 0 : index
    %c0_61 = arith.constant 0 : index
    %57 = vector.load %arg4[%c2_59, %c0_60, %c0_61] : memref<9x8x8xf32, #tpu.memory_space<vmem>>, vector<1x8x8xf32>
    %58 = vector.shape_cast %57 : vector<1x8x8xf32> to vector<8x8xf32>
    %cst_62 = arith.constant dense<0.000000e+00> : vector<128x8xf32>
    %59 = tpu.matmul %56, %58, %cst_62 {dimension_numbers = #tpu.dot_dimension_numbers<[1], [0], [0], [1], [0, 0, 1, 1], [], []>} : vector<128x8xf32>, vector<8x8xf32>, vector<128x8xf32> -> vector<128x8xf32>
    %60 = arith.addf %54, %59 : vector<128x8xf32>
    %c0_63 = arith.constant 0 : index
    %c1_64 = arith.constant 1 : index
    %c0_65 = arith.constant 0 : index
    %c0_66 = arith.constant 0 : index
    %61 = vector.load %arg9[%c0_63, %c1_64, %c0_65, %c0_66] : memref<2x6x18x8xf32, #tpu.memory_space<vmem>>, vector<2x4x16x8xf32>
    %62 = vector.shape_cast %61 : vector<2x4x16x8xf32> to vector<128x8xf32>
    %c3 = arith.constant 3 : index
    %c0_67 = arith.constant 0 : index
    %c0_68 = arith.constant 0 : index
    %63 = vector.load %arg4[%c3, %c0_67, %c0_68] : memref<9x8x8xf32, #tpu.memory_space<vmem>>, vector<1x8x8xf32>
    %64 = vector.shape_cast %63 : vector<1x8x8xf32> to vector<8x8xf32>
    %cst_69 = arith.constant dense<0.000000e+00> : vector<128x8xf32>
    %65 = tpu.matmul %62, %64, %cst_69 {dimension_numbers = #tpu.dot_dimension_numbers<[1], [0], [0], [1], [0, 0, 1, 1], [], []>} : vector<128x8xf32>, vector<8x8xf32>, vector<128x8xf32> -> vector<128x8xf32>
    %66 = arith.addf %60, %65 : vector<128x8xf32>
    %c0_70 = arith.constant 0 : index
    %c1_71 = arith.constant 1 : index
    %c1_72 = arith.constant 1 : index
    %c0_73 = arith.constant 0 : index
    %67 = vector.load %arg9[%c0_70, %c1_71, %c1_72, %c0_73] : memref<2x6x18x8xf32, #tpu.memory_space<vmem>>, vector<2x4x16x8xf32>
    %68 = vector.shape_cast %67 : vector<2x4x16x8xf32> to vector<128x8xf32>
    %c4 = arith.constant 4 : index
    %c0_74 = arith.constant 0 : index
    %c0_75 = arith.constant 0 : index
    %69 = vector.load %arg4[%c4, %c0_74, %c0_75] : memref<9x8x8xf32, #tpu.memory_space<vmem>>, vector<1x8x8xf32>
    %70 = vector.shape_cast %69 : vector<1x8x8xf32> to vector<8x8xf32>
    %cst_76 = arith.constant dense<0.000000e+00> : vector<128x8xf32>
    %71 = tpu.matmul %68, %70, %cst_76 {dimension_numbers = #tpu.dot_dimension_numbers<[1], [0], [0], [1], [0, 0, 1, 1], [], []>} : vector<128x8xf32>, vector<8x8xf32>, vector<128x8xf32> -> vector<128x8xf32>
    %72 = arith.addf %66, %71 : vector<128x8xf32>
    %c0_77 = arith.constant 0 : index
    %c1_78 = arith.constant 1 : index
    %c2_79 = arith.constant 2 : index
    %c0_80 = arith.constant 0 : index
    %73 = vector.load %arg9[%c0_77, %c1_78, %c2_79, %c0_80] : memref<2x6x18x8xf32, #tpu.memory_space<vmem>>, vector<2x4x16x8xf32>
    %74 = vector.shape_cast %73 : vector<2x4x16x8xf32> to vector<128x8xf32>
    %c5_81 = arith.constant 5 : index
    %c0_82 = arith.constant 0 : index
    %c0_83 = arith.constant 0 : index
    %75 = vector.load %arg4[%c5_81, %c0_82, %c0_83] : memref<9x8x8xf32, #tpu.memory_space<vmem>>, vector<1x8x8xf32>
    %76 = vector.shape_cast %75 : vector<1x8x8xf32> to vector<8x8xf32>
    %cst_84 = arith.constant dense<0.000000e+00> : vector<128x8xf32>
    %77 = tpu.matmul %74, %76, %cst_84 {dimension_numbers = #tpu.dot_dimension_numbers<[1], [0], [0], [1], [0, 0, 1, 1], [], []>} : vector<128x8xf32>, vector<8x8xf32>, vector<128x8xf32> -> vector<128x8xf32>
    %78 = arith.addf %72, %77 : vector<128x8xf32>
    %c0_85 = arith.constant 0 : index
    %c2_86 = arith.constant 2 : index
    %c0_87 = arith.constant 0 : index
    %c0_88 = arith.constant 0 : index
    %79 = vector.load %arg9[%c0_85, %c2_86, %c0_87, %c0_88] : memref<2x6x18x8xf32, #tpu.memory_space<vmem>>, vector<2x4x16x8xf32>
    %80 = vector.shape_cast %79 : vector<2x4x16x8xf32> to vector<128x8xf32>
    %c6 = arith.constant 6 : index
    %c0_89 = arith.constant 0 : index
    %c0_90 = arith.constant 0 : index
    %81 = vector.load %arg4[%c6, %c0_89, %c0_90] : memref<9x8x8xf32, #tpu.memory_space<vmem>>, vector<1x8x8xf32>
    %82 = vector.shape_cast %81 : vector<1x8x8xf32> to vector<8x8xf32>
    %cst_91 = arith.constant dense<0.000000e+00> : vector<128x8xf32>
    %83 = tpu.matmul %80, %82, %cst_91 {dimension_numbers = #tpu.dot_dimension_numbers<[1], [0], [0], [1], [0, 0, 1, 1], [], []>} : vector<128x8xf32>, vector<8x8xf32>, vector<128x8xf32> -> vector<128x8xf32>
    %84 = arith.addf %78, %83 : vector<128x8xf32>
    %c0_92 = arith.constant 0 : index
    %c2_93 = arith.constant 2 : index
    %c1_94 = arith.constant 1 : index
    %c0_95 = arith.constant 0 : index
    %85 = vector.load %arg9[%c0_92, %c2_93, %c1_94, %c0_95] : memref<2x6x18x8xf32, #tpu.memory_space<vmem>>, vector<2x4x16x8xf32>
    %86 = vector.shape_cast %85 : vector<2x4x16x8xf32> to vector<128x8xf32>
    %c7 = arith.constant 7 : index
    %c0_96 = arith.constant 0 : index
    %c0_97 = arith.constant 0 : index
    %87 = vector.load %arg4[%c7, %c0_96, %c0_97] : memref<9x8x8xf32, #tpu.memory_space<vmem>>, vector<1x8x8xf32>
    %88 = vector.shape_cast %87 : vector<1x8x8xf32> to vector<8x8xf32>
    %cst_98 = arith.constant dense<0.000000e+00> : vector<128x8xf32>
    %89 = tpu.matmul %86, %88, %cst_98 {dimension_numbers = #tpu.dot_dimension_numbers<[1], [0], [0], [1], [0, 0, 1, 1], [], []>} : vector<128x8xf32>, vector<8x8xf32>, vector<128x8xf32> -> vector<128x8xf32>
    %90 = arith.addf %84, %89 : vector<128x8xf32>
    %c0_99 = arith.constant 0 : index
    %c2_100 = arith.constant 2 : index
    %c2_101 = arith.constant 2 : index
    %c0_102 = arith.constant 0 : index
    %91 = vector.load %arg9[%c0_99, %c2_100, %c2_101, %c0_102] : memref<2x6x18x8xf32, #tpu.memory_space<vmem>>, vector<2x4x16x8xf32>
    %92 = vector.shape_cast %91 : vector<2x4x16x8xf32> to vector<128x8xf32>
    %c8 = arith.constant 8 : index
    %c0_103 = arith.constant 0 : index
    %c0_104 = arith.constant 0 : index
    %93 = vector.load %arg4[%c8, %c0_103, %c0_104] : memref<9x8x8xf32, #tpu.memory_space<vmem>>, vector<1x8x8xf32>
    %94 = vector.shape_cast %93 : vector<1x8x8xf32> to vector<8x8xf32>
    %cst_105 = arith.constant dense<0.000000e+00> : vector<128x8xf32>
    %95 = tpu.matmul %92, %94, %cst_105 {dimension_numbers = #tpu.dot_dimension_numbers<[1], [0], [0], [1], [0, 0, 1, 1], [], []>} : vector<128x8xf32>, vector<8x8xf32>, vector<128x8xf32> -> vector<128x8xf32>
    %96 = arith.addf %90, %95 : vector<128x8xf32>
    %cst_106 = arith.constant dense<0.000000e+00> : vector<8xf32>
    %97 = vector.multi_reduction <add>, %96, %cst_106 [0] : vector<128x8xf32> to vector<8xf32>
    %98 = vector.shape_cast %97 : vector<8xf32> to vector<1x8xf32>
    %cst_107 = arith.constant 7.812500e-03 : f32
    %99 = vector.broadcast %cst_107 : f32 to vector<1x8xf32>
    %100 = arith.mulf %98, %99 : vector<1x8xf32>
    %101 = vector.broadcast %100 : vector<1x8xf32> to vector<128x8xf32>
    %102 = arith.subf %96, %101 : vector<128x8xf32>
    %c0_108 = arith.constant 0 : index
    %c0_109 = arith.constant 0 : index
    %c0_110 = arith.constant 0 : index
    %103 = vector.load %arg8[%c0_108, %c0_109, %c0_110] : memref<1x2x8xf32, #tpu.memory_space<vmem>>, vector<1x1x8xf32>
    %104 = vector.shape_cast %103 : vector<1x1x8xf32> to vector<1x8xf32>
    %105 = vector.shape_cast %98 : vector<1x8xf32> to vector<1x1x8xf32>
    tpu.vector_store %arg8[%c0_108, %c0_109, %c0_110], %105 {strides = array<i32>} : memref<1x2x8xf32, #tpu.memory_space<vmem>>, vector<1x1x8xf32>,
    %106 = arith.mulf %102, %102 : vector<128x8xf32>
    %cst_111 = arith.constant dense<0.000000e+00> : vector<8xf32>
    %107 = vector.multi_reduction <add>, %106, %cst_111 [0] : vector<128x8xf32> to vector<8xf32>
    %108 = vector.shape_cast %107 : vector<8xf32> to vector<1x8xf32>
    %c0_112 = arith.constant 0 : index
    %c1_113 = arith.constant 1 : index
    %c0_114 = arith.constant 0 : index
    %109 = vector.load %arg8[%c0_112, %c1_113, %c0_114] : memref<1x2x8xf32, #tpu.memory_space<vmem>>, vector<1x1x8xf32>
    %110 = vector.shape_cast %109 : vector<1x1x8xf32> to vector<1x8xf32>
    %111 = vector.shape_cast %108 : vector<1x8xf32> to vector<1x1x8xf32>
    tpu.vector_store %arg8[%c0_112, %c1_113, %c0_114], %111 {strides = array<i32>} : memref<1x2x8xf32, #tpu.memory_space<vmem>>, vector<1x1x8xf32>,
    %112 = vector.shape_cast %96 : vector<128x8xf32> to vector<2x4x16x8xf32>
    %c0_115 = arith.constant 0 : index
    %c0_116 = arith.constant 0 : index
    %c0_117 = arith.constant 0 : index
    %c0_118 = arith.constant 0 : index
    %113 = vector.load %arg7[%c0_115, %c0_116, %c0_117, %c0_118] : memref<2x4x16x8xf32, #tpu.memory_space<vmem>>, vector<2x4x16x8xf32>
    tpu.vector_store %arg7[%c0_115, %c0_116, %c0_117, %c0_118], %112 {strides = array<i32>} : memref<2x4x16x8xf32, #tpu.memory_space<vmem>>, vector<2x4x16x8xf32>,
    return
  }
  func.func @transform_0(%arg0: i32) -> (i32, i32, i32, i32) {
    %c4_i32 = arith.constant 4 : i32
    %0 = arith.muli %arg0, %c4_i32 : i32
    %c1_i32 = arith.constant 1 : i32
    %1 = arith.subi %0, %c1_i32 : i32
    %c0_i32 = arith.constant 0 : i32
    %2 = arith.maxsi %1, %c0_i32 : i32
    %c0_i32_0 = arith.constant 0 : i32
    %c0_i32_1 = arith.constant 0 : i32
    %c0_i32_2 = arith.constant 0 : i32
    %c0_i32_3 = arith.constant 0 : i32
    return %c0_i32_0, %2, %c0_i32_1, %c0_i32_2 : i32, i32, i32, i32
  }
  func.func @transform_1(%arg0: i32) -> (i32, i32, i32, i32) {
    %c0_i32 = arith.constant 0 : i32
    %c0_i32_0 = arith.constant 0 : i32
    %c0_i32_1 = arith.constant 0 : i32
    %c0_i32_2 = arith.constant 0 : i32
    return %c0_i32, %arg0, %c0_i32_0, %c0_i32_1 : i32, i32, i32, i32
  }
  func.func @transform_2(%arg0: i32) -> (i32, i32, i32, i32) {
    %c4_i32 = arith.constant 4 : i32
    %0 = arith.muli %arg0, %c4_i32 : i32
    %c4_i32_0 = arith.constant 4 : i32
    %1 = arith.addi %0, %c4_i32_0 : i32
    %c15_i32 = arith.constant 15 : i32
    %2 = arith.minsi %1, %c15_i32 : i32
    %c0_i32 = arith.constant 0 : i32
    %c0_i32_1 = arith.constant 0 : i32
    %c0_i32_2 = arith.constant 0 : i32
    %c0_i32_3 = arith.constant 0 : i32
    return %c0_i32, %2, %c0_i32_1, %c0_i32_2 : i32, i32, i32, i32
  }
  func.func @transform_3(%arg0: i32) -> (i32, i32, i32) {
    %c0_i32 = arith.constant 0 : i32
    %c0_i32_0 = arith.constant 0 : i32
    %c0_i32_1 = arith.constant 0 : i32
    %c0_i32_2 = arith.constant 0 : i32
    return %c0_i32, %c0_i32_0, %c0_i32_1 : i32, i32, i32
  }
  func.func @transform_4(%arg0: i32) -> (i32, i32) {
    %c0_i32 = arith.constant 0 : i32
    %c0_i32_0 = arith.constant 0 : i32
    %c0_i32_1 = arith.constant 0 : i32
    return %c0_i32, %c0_i32_0 : i32, i32
  }
  func.func @transform_5(%arg0: i32) -> (i32, i32) {
    %c0_i32 = arith.constant 0 : i32
    %c0_i32_0 = arith.constant 0 : i32
    %c0_i32_1 = arith.constant 0 : i32
    return %c0_i32, %c0_i32_0 : i32, i32
  }
  func.func @transform_6(%arg0: i32) -> (i32, i32, i32, i32) {
    %c0_i32 = arith.constant 0 : i32
    %c0_i32_0 = arith.constant 0 : i32
    %c0_i32_1 = arith.constant 0 : i32
    %c0_i32_2 = arith.constant 0 : i32
    return %c0_i32, %arg0, %c0_i32_0, %c0_i32_1 : i32, i32, i32, i32
  }
  func.func @transform_7(%arg0: i32) -> (i32, i32, i32) {
    %c0_i32 = arith.constant 0 : i32
    %c0_i32_0 = arith.constant 0 : i32
    %c0_i32_1 = arith.constant 0 : i32
    return %arg0, %c0_i32, %c0_i32_0 : i32, i32, i32
  }
}

</mosaic_0001>

<llo_original>
// kernel: residual_block.5
$region0: #{residual_block.5}
  #allocation0 [shape = 'u32[]', space=smem, size = 0x4, offset = 0x4, fixed_abs, tag = 'smem constant byte address 0x4 - core index']
  #allocation1 [shape = 'u32[72,128]{1,0:T(1,128)}', space=vmem, size = 0x9000, scoped, tag = 'internal scratch']
  %s0 = inlined_call_operand.vmem [shape: f32[2,16,16,8], index: 0, kind: input, shape index: {}]
  %s1 = inlined_call_operand.vmem [shape: f32[2,16,16,8], index: 1, kind: input, shape index: {}]
  %s2 = inlined_call_operand.vmem [shape: f32[1,8], index: 2, kind: input, shape index: {}]
  %s3 = inlined_call_operand.vmem [shape: f32[1,8], index: 3, kind: input, shape index: {}]
  %s4 = inlined_call_operand.vmem [shape: f32[2,16,16,8], index: 4, kind: output, shape index: {}]
  %s5 = sld [smem:[#allocation0]]
  $region159: #{residual_block.5} parent=0
    _
  %s7 = ssub.s32 1, %s5
  %s8 = scalar_select 0, %s7, %s5
  $region1: #{residual_block.5} parent=0
    #allocation2 [shape = 'u8[131072]{0}', space=vmem, size = 0x20000, scoped, tag = 'input window, operand 0']
    #allocation3 [shape = 'u8[131072]{0}', space=vmem, size = 0x20000, scoped, tag = 'input window, operand 1']
    #allocation4 [shape = 'u8[131072]{0}', space=vmem, size = 0x20000, scoped, tag = 'output window, operand 0']
    loop: start=0, step=1, limit=6
    $region2: #{residual_block.5} parent=1 // loop_pre_header
      _
    $region3: #{residual_block.5} parent=1 // loop_header
      %s10 = sphi 0, %s14
      %p11 = scmp.ge.s32.totalorder %s10, 6
      %s20 = sphi 0, %s22
      %s23 = sphi 0, %s20
      %s24 = sphi 0, %s23
      %s40 = sphi 0, %s24
      %s46 = sphi 0, %s48
      %s49 = sphi 0, %s46
      %s50 = sphi 0, %s49
      %s66 = sphi 0, %s50
      %s70 = sphi 0, %s70
      %s72 = sphi 0, %s70
      %s73 = sphi 0, %s72
      %s87 = sphi 0, %s73
      %s91 = sphi 0, %s91
      %s93 = sphi 0, %s91
      %s94 = sphi 0, %s93
      %s108 = sphi 0, %s94
      %s114 = sphi 0, %s116
      %s117 = sphi 0, %s114
      %s118 = sphi 0, %s117
      %s134 = sphi 0, %s118
    $region4: #{residual_block.5} parent=1 // loop_header_branch
      %13 = sbr.rel (%p11) target = $region8
    $region5: #{residual_block.5} parent=1 // loop_body
      %s15 = ssub.s32 %s10, 1
      %s16 = ssub.s32 %s10, 2
      %s17 = sadd.s32 %s10, 1
      %s18 = ssub.s32 %s10, %s17
      %p19 = scmp.eq.s32.totalorder %s18, 0
      %s21 = sadd.s32 %s20, 1
      %s22 = scalar_select %p19, %s20, %s21
      %p25 = pneg %p19
      %p26 = scmp.eq.s32.totalorder %s10, 3
      %p27 = por %p25, %p26
      %p28 = scmp.ne.s32.totalorder %s20, %s23
      %p29 = scmp.eq.s32.totalorder %s10, 0
      %p30 = por %p28, %p29
      %p31 = scmp.ne.s32.totalorder %s20, %s23
      %p32 = scmp.eq.s32.totalorder %s15, 3
      %p33 = por %p31, %p32
      %p34 = scmp.ne.s32.totalorder %s23, %s24
      %p35 = scmp.eq.s32.totalorder %s15, 0
      %p36 = por %p34, %p35
      %p37 = scmp.ne.s32.totalorder %s23, %s24
      %p38 = scmp.eq.s32.totalorder %s16, 3
      %p39 = por %p37, %p38
      %p41 = scmp.ne.s32.totalorder %s24, %s40
      %p42 = scmp.eq.s32.totalorder %s16, 0
      %p43 = por %p41, %p42
      %s44 = ssub.s32 %s10, %s17
      %p45 = scmp.eq.s32.totalorder %s44, 0
      %s47 = sadd.s32 %s46, 1
      %s48 = scalar_select %p45, %s46, %s47
      %p51 = pneg %p45
      %p52 = scmp.eq.s32.totalorder %s10, 3
      %p53 = por %p51, %p52
      %p54 = scmp.ne.s32.totalorder %s46, %s49
      %p55 = scmp.eq.s32.totalorder %s10, 0
      %p56 = por %p54, %p55
      %p57 = scmp.ne.s32.totalorder %s46, %s49
      %p58 = scmp.eq.s32.totalorder %s15, 3
      %p59 = por %p57, %p58
      %p60 = scmp.ne.s32.totalorder %s49, %s50
      %p61 = scmp.eq.s32.totalorder %s15, 0
      %p62 = por %p60, %p61
      %p63 = scmp.ne.s32.totalorder %s49, %s50
      %p64 = scmp.eq.s32.totalorder %s16, 3
      %p65 = por %p63, %p64
      %p67 = scmp.ne.s32.totalorder %s50, %s66
      %p68 = scmp.eq.s32.totalorder %s16, 0
      %p69 = por %p67, %p68
      %s71 = sadd.s32 %s70, 1
      %p74 = scmp.eq.s32.totalorder %s10, 3
      %p75 = scmp.ne.s32.totalorder %s70, %s72
      %p76 = scmp.eq.s32.totalorder %s10, 0
      %p77 = por %p75, %p76
      %p78 = scmp.ne.s32.totalorder %s70, %s72
      %p79 = scmp.eq.s32.totalorder %s15, 3
      %p80 = por %p78, %p79
      %p81 = scmp.ne.s32.totalorder %s72, %s73
      %p82 = scmp.eq.s32.totalorder %s15, 0
      %p83 = por %p81, %p82
      %p84 = scmp.ne.s32.totalorder %s72, %s73
      %p85 = scmp.eq.s32.totalorder %s16, 3
      %p86 = por %p84, %p85
      %p88 = scmp.ne.s32.totalorder %s73, %s87
      %p89 = scmp.eq.s32.totalorder %s16, 0
      %p90 = por %p88, %p89
      %s92 = sadd.s32 %s91, 1
      %p95 = scmp.eq.s32.totalorder %s10, 3
      %p96 = scmp.ne.s32.totalorder %s91, %s93
      %p97 = scmp.eq.s32.totalorder %s10, 0
      %p98 = por %p96, %p97
      %p99 = scmp.ne.s32.totalorder %s91, %s93
      %p100 = scmp.eq.s32.totalorder %s15, 3
      %p101 = por %p99, %p100
      %p102 = scmp.ne.s32.totalorder %s93, %s94
      %p103 = scmp.eq.s32.totalorder %s15, 0
      %p104 = por %p102, %p103
      %p105 = scmp.ne.s32.totalorder %s93, %s94
      %p106 = scmp.eq.s32.totalorder %s16, 3
      %p107 = por %p105, %p106
      %p109 = scmp.ne.s32.totalorder %s94, %s108
      %p110 = scmp.eq.s32.totalorder %s16, 0
      %p111 = por %p109, %p110
      %s112 = ssub.s32 %s10, %s17
      %p113 = scmp.eq.s32.totalorder %s112, 0
      %s115 = sadd.s32 %s114, 1
      %s116 = scalar_select %p113, %s114, %s115
      %p119 = pneg %p113
      %p120 = scmp.eq.s32.totalorder %s10, 3
      %p121 = por %p119, %p120
      %p122 = scmp.ne.s32.totalorder %s114, %s117
      %p123 = scmp.eq.s32.totalorder %s10, 0
      %p124 = por %p122, %p123
      %p125 = scmp.ne.s32.totalorder %s114, %s117
      %p126 = scmp.eq.s32.totalorder %s15, 3
      %p127 = por %p125, %p126
      %p128 = scmp.ne.s32.totalorder %s117, %s118
      %p129 = scmp.eq.s32.totalorder %s15, 0
      %p130 = por %p128, %p129
      %p131 = scmp.ne.s32.totalorder %s117, %s118
      %p132 = scmp.eq.s32.totalorder %s16, 3
      %p133 = por %p131, %p132
      %p135 = scmp.ne.s32.totalorder %s118, %s134
      %p136 = scmp.eq.s32.totalorder %s16, 0
      %p137 = por %p135, %p136
      %p138 = scmp.le.s32.totalorder 1, %s10
      %p139 = scmp.lt.s32.totalorder %s10, 5
      %p140 = pnand %p138, %p139
      %p141 = pneg %p140
      // Predicated region
      $region9: #{residual_block.5} parent=5 // pred_check
        _
      $region10: #{residual_block.5} parent=5 // pred_check_branch
        %143 = sbr.rel (%p140) target = $region12
      $region11: #{residual_block.5} parent=5 // pred_region
        %s144 = ssub.s32 %s10, 1
        // Predicated region
        $region13: #{residual_block.5} parent=11 // pred_check
          %p145 = pneg %p83
        $region14: #{residual_block.5} parent=11 // pred_check_branch
          %147 = sbr.rel (%p145) target = $region16
        $region15: #{residual_block.5} parent=11 // pred_region
          _
        $region16: #{residual_block.5} parent=11 // pred_fallthru
          _
        // Predicated region
        $region17: #{residual_block.5} parent=11 // pred_check
          %p148 = pneg %p104
        $region18: #{residual_block.5} parent=11 // pred_check_branch
          %150 = sbr.rel (%p148) target = $region20
        $region19: #{residual_block.5} parent=11 // pred_region
          _
        $region20: #{residual_block.5} parent=11 // pred_fallthru
          _
      $region12: #{residual_block.5} parent=5 // pred_fallthru
        _
      %p151 = scmp.lt.s32.totalorder %s10, 4
      // Predicated region
      $region21: #{residual_block.5} parent=5 // pred_check
        %p152 = pneg %p151
      $region22: #{residual_block.5} parent=5 // pred_check_branch
        %154 = sbr.rel (%p152) target = $region24
      $region23: #{residual_block.5} parent=5 // pred_region
        // Predicated region
        $region25: #{residual_block.5} parent=23 // pred_check
          %p155 = pneg %p30
        $region26: #{residual_block.5} parent=23 // pred_check_branch
          %157 = sbr.rel (%p155) target = $region28
        $region27: #{residual_block.5} parent=23 // pred_region
          %s158 = sand.u32 %s20, 1
          %s159 = sand.u32 %s20, 1
          %s160 = smul.addr %s159, 128
          %s161 = scalar_lea.vmem [#allocation2], %s160
          %s162 = smul.u32 4, %s10
          %s163 = smul.addr %s162, 2
          %s164 = smul.addr %s163, 8
          %s165 = scalar_lea.vmem %s0, %s164
          // Predicated region
          $region29: #{residual_block.5} parent=27 // pred_check
            _
          $region30: #{residual_block.5} parent=27 // pred_check_branch
            %167 = sbr.rel (0) target = $region32
          $region31: #{residual_block.5} parent=27 // pred_region
            // Predicated region
            $region33: #{residual_block.5} parent=31 // pred_check
              _
            $region34: #{residual_block.5} parent=31 // pred_check_branch
              %169 = sbr.rel (0) target = $region36
            $region35: #{residual_block.5} parent=31 // pred_region
              // Predicated region
              $region48: #{residual_block.5} parent=35 // pred_check
                _
              $region49: #{residual_block.5} parent=35 // pred_check_branch
                %215 = sbr.rel (0) target = $region51
              $region50: #{residual_block.5} parent=35 // pred_region
                loop: start=0, step=1, limit=1
                $region52: #{residual_block.5} parent=50 // loop_pre_header
                  _
                $region53: #{residual_block.5} parent=50 // loop_header
                  %s217 = sphi 0, %s221
                  %p218 = scmp.ge.s32.totalorder %s217, 1
                  %s222 = sphi %s165, %s165
                  %s223 = sphi %s161, %s161
                $region54: #{residual_block.5} parent=50 // loop_header_branch
                  %220 = sbr.rel (%p218) target = $region58
                $region55: #{residual_block.5} parent=50 // loop_body
                  %v224 = vld [vmem:[%s222] sm:$0xff]
                  %225 = vst [vmem:[%s223] sm:$0xff] %v224
                  %v226 = vld [vmem:[%s222 + $0x8] sm:$0xff]
                  %227 = vst [vmem:[%s223 + $0x8] sm:$0xff] %v226
                  %v228 = vld [vmem:[%s222 + $0x10] sm:$0xff]
                  %229 = vst [vmem:[%s223 + $0x10] sm:$0xff] %v228
                  %v230 = vld [vmem:[%s222 + $0x18] sm:$0xff]
                  %231 = vst [vmem:[%s223 + $0x18] sm:$0xff] %v230
                  %v232 = vld [vmem:[%s222 + $0x20] sm:$0xff]
                  %233 = vst [vmem:[%s223 + $0x20] sm:$0xff] %v232
                  %v234 = vld [vmem:[%s222 + $0x28] sm:$0xff]
                  %235 = vst [vmem:[%s223 + $0x28] sm:$0xff] %v234
                  %v236 = vld [vmem:[%s222 + $0x30] sm:$0xff]
                  %237 = vst [vmem:[%s223 + $0x30] sm:$0xff] %v236
                  %v238 = vld [vmem:[%s222 + $0x38] sm:$0xff]
                  %239 = vst [vmem:[%s223 + $0x38] sm:$0xff] %v238
                  %v240 = vld [vmem:[%s222 + $0x100] sm:$0xff]
                  %241 = vst [vmem:[%s223 + $0x40] sm:$0xff] %v240
                  %v242 = vld [vmem:[%s222 + $0x108] sm:$0xff]
                  %243 = vst [vmem:[%s223 + $0x48] sm:$0xff] %v242
                  %v244 = vld [vmem:[%s222 + $0x110] sm:$0xff]
                  %245 = vst [vmem:[%s223 + $0x50] sm:$0xff] %v244
                  %v246 = vld [vmem:[%s222 + $0x118] sm:$0xff]
                  %247 = vst [vmem:[%s223 + $0x58] sm:$0xff] %v246
                  %v248 = vld [vmem:[%s222 + $0x120] sm:$0xff]
                  %249 = vst [vmem:[%s223 + $0x60] sm:$0xff] %v248
                  %v250 = vld [vmem:[%s222 + $0x128] sm:$0xff]
                  %251 = vst [vmem:[%s223 + $0x68] sm:$0xff] %v250
                  %v252 = vld [vmem:[%s222 + $0x130] sm:$0xff]
                  %253 = vst [vmem:[%s223 + $0x70] sm:$0xff] %v252
                  %v254 = vld [vmem:[%s222 + $0x138] sm:$0xff]
                  %255 = vst [vmem:[%s223 + $0x78] sm:$0xff] %v254
                $region56: #{residual_block.5} parent=50 // loop_footer
                  %s221 = sadd.s32 1, %s217
                $region57: #{residual_block.5} parent=50 // loop_footer_branch
                  %216 = sbr.rel target = $region53
                $region58: #{residual_block.5} parent=50 // loop_exit
                  _
              $region51: #{residual_block.5} parent=35 // pred_fallthru
                _
              // Predicated region
              $region59: #{residual_block.5} parent=35 // pred_check
                _
              $region60: #{residual_block.5} parent=35 // pred_check_branch
                %257 = sbr.rel target = $region62
              $region61: #{residual_block.5} parent=35 // pred_region
                _
              $region62: #{residual_block.5} parent=35 // pred_fallthru
                _
            $region36: #{residual_block.5} parent=31 // pred_fallthru
              _
            // Predicated region
            $region37: #{residual_block.5} parent=31 // pred_check
              _
            $region38: #{residual_block.5} parent=31 // pred_check_branch
              %171 = sbr.rel target = $region40
            $region39: #{residual_block.5} parent=31 // pred_region
              %s173 = ssub.s32 256, 1
              loop: start=0, step=1, limit=1
              $region41: #{residual_block.5} parent=39 // loop_pre_header
                _
              $region42: #{residual_block.5} parent=39 // loop_header
                %s175 = sphi 0, %s179
                %p176 = scmp.ge.s32.totalorder %s175, 1
                %s180 = sphi %s165, %s165
                %s181 = sphi %s161, %s161
              $region43: #{residual_block.5} parent=39 // loop_header_branch
                %178 = sbr.rel (%p176) target = $region47
              $region44: #{residual_block.5} parent=39 // loop_body
                %v182 = vld [vmem:[%s180] sm:%s173]
                %183 = vst [vmem:[%s181] sm:%s173] %v182
                %v184 = vld [vmem:[%s180 + $0x8] sm:%s173]
                %185 = vst [vmem:[%s181 + $0x8] sm:%s173] %v184
                %v186 = vld [vmem:[%s180 + $0x10] sm:%s173]
                %187 = vst [vmem:[%s181 + $0x10] sm:%s173] %v186
                %v188 = vld [vmem:[%s180 + $0x18] sm:%s173]
                %189 = vst [vmem:[%s181 + $0x18] sm:%s173] %v188
                %v190 = vld [vmem:[%s180 + $0x20] sm:%s173]
                %191 = vst [vmem:[%s181 + $0x20] sm:%s173] %v190
                %v192 = vld [vmem:[%s180 + $0x28] sm:%s173]
                %193 = vst [vmem:[%s181 + $0x28] sm:%s173] %v192
                %v194 = vld [vmem:[%s180 + $0x30] sm:%s173]
                %195 = vst [vmem:[%s181 + $0x30] sm:%s173] %v194
                %v196 = vld [vmem:[%s180 + $0x38] sm:%s173]
                %197 = vst [vmem:[%s181 + $0x38] sm:%s173] %v196
                %v198 = vld [vmem:[%s180 + $0x100] sm:%s173]
                %199 = vst [vmem:[%s181 + $0x40] sm:%s173] %v198
                %v200 = vld [vmem:[%s180 + $0x108] sm:%s173]
                %201 = vst [vmem:[%s181 + $0x48] sm:%s173] %v200
                %v202 = vld [vmem:[%s180 + $0x110] sm:%s173]
                %203 = vst [vmem:[%s181 + $0x50] sm:%s173] %v202
                %v204 = vld [vmem:[%s180 + $0x118] sm:%s173]
                %205 = vst [vmem:[%s181 + $0x58] sm:%s173] %v204
                %v206 = vld [vmem:[%s180 + $0x120] sm:%s173]
                %207 = vst [vmem:[%s181 + $0x60] sm:%s173] %v206
                %v208 = vld [vmem:[%s180 + $0x128] sm:%s173]
                %209 = vst [vmem:[%s181 + $0x68] sm:%s173] %v208
                %v210 = vld [vmem:[%s180 + $0x130] sm:%s173]
                %211 = vst [vmem:[%s181 + $0x70] sm:%s173] %v210
                %v212 = vld [vmem:[%s180 + $0x138] sm:%s173]
                %213 = vst [vmem:[%s181 + $0x78] sm:%s173] %v212
              $region45: #{residual_block.5} parent=39 // loop_footer
                %s179 = sadd.s32 1, %s175
              $region46: #{residual_block.5} parent=39 // loop_footer_branch
                %174 = sbr.rel target = $region42
              $region47: #{residual_block.5} parent=39 // loop_exit
                _
            $region40: #{residual_block.5} parent=31 // pred_fallthru
              _
          $region32: #{residual_block.5} parent=27 // pred_fallthru
            _
          %258 = vnop
        $region28: #{residual_block.5} parent=23 // pred_fallthru
          _
        // Predicated region
        $region63: #{residual_block.5} parent=23 // pred_check
          %p259 = pneg %p56
        $region64: #{residual_block.5} parent=23 // pred_check_branch
          %261 = sbr.rel (%p259) target = $region66
        $region65: #{residual_block.5} parent=23 // pred_region
          %s262 = sand.u32 %s46, 1
          %s263 = sand.u32 %s46, 1
          %s264 = smul.addr %s263, 128
          %s265 = scalar_lea.vmem [#allocation3], %s264
          %s266 = smul.u32 4, %s10
          %s267 = smul.addr %s266, 2
          %s268 = smul.addr %s267, 8
          %s269 = scalar_lea.vmem %s1, %s268
          // Predicated region
          $region67: #{residual_block.5} parent=65 // pred_check
            _
          $region68: #{residual_block.5} parent=65 // pred_check_branch
            %271 = sbr.rel (0) target = $region70
          $region69: #{residual_block.5} parent=65 // pred_region
            // Predicated region
            $region71: #{residual_block.5} parent=69 // pred_check
              _
            $region72: #{residual_block.5} parent=69 // pred_check_branch
              %273 = sbr.rel (0) target = $region74
            $region73: #{residual_block.5} parent=69 // pred_region
              // Predicated region
              $region86: #{residual_block.5} parent=73 // pred_check
                _
              $region87: #{residual_block.5} parent=73 // pred_check_branch
                %319 = sbr.rel (0) target = $region89
              $region88: #{residual_block.5} parent=73 // pred_region
                loop: start=0, step=1, limit=1
                $region90: #{residual_block.5} parent=88 // loop_pre_header
                  _
                $region91: #{residual_block.5} parent=88 // loop_header
                  %s321 = sphi 0, %s325
                  %p322 = scmp.ge.s32.totalorder %s321, 1
                  %s326 = sphi %s269, %s269
                  %s327 = sphi %s265, %s265
                $region92: #{residual_block.5} parent=88 // loop_header_branch
                  %324 = sbr.rel (%p322) target = $region96
                $region93: #{residual_block.5} parent=88 // loop_body
                  %v328 = vld [vmem:[%s326] sm:$0xff]
                  %329 = vst [vmem:[%s327] sm:$0xff] %v328
                  %v330 = vld [vmem:[%s326 + $0x8] sm:$0xff]
                  %331 = vst [vmem:[%s327 + $0x8] sm:$0xff] %v330
                  %v332 = vld [vmem:[%s326 + $0x10] sm:$0xff]
                  %333 = vst [vmem:[%s327 + $0x10] sm:$0xff] %v332
                  %v334 = vld [vmem:[%s326 + $0x18] sm:$0xff]
                  %335 = vst [vmem:[%s327 + $0x18] sm:$0xff] %v334
                  %v336 = vld [vmem:[%s326 + $0x20] sm:$0xff]
                  %337 = vst [vmem:[%s327 + $0x20] sm:$0xff] %v336
                  %v338 = vld [vmem:[%s326 + $0x28] sm:$0xff]
                  %339 = vst [vmem:[%s327 + $0x28] sm:$0xff] %v338
                  %v340 = vld [vmem:[%s326 + $0x30] sm:$0xff]
                  %341 = vst [vmem:[%s327 + $0x30] sm:$0xff] %v340
                  %v342 = vld [vmem:[%s326 + $0x38] sm:$0xff]
                  %343 = vst [vmem:[%s327 + $0x38] sm:$0xff] %v342
                  %v344 = vld [vmem:[%s326 + $0x100] sm:$0xff]
                  %345 = vst [vmem:[%s327 + $0x40] sm:$0xff] %v344
                  %v346 = vld [vmem:[%s326 + $0x108] sm:$0xff]
                  %347 = vst [vmem:[%s327 + $0x48] sm:$0xff] %v346
                  %v348 = vld [vmem:[%s326 + $0x110] sm:$0xff]
                  %349 = vst [vmem:[%s327 + $0x50] sm:$0xff] %v348
                  %v350 = vld [vmem:[%s326 + $0x118] sm:$0xff]
                  %351 = vst [vmem:[%s327 + $0x58] sm:$0xff] %v350
                  %v352 = vld [vmem:[%s326 + $0x120] sm:$0xff]
                  %353 = vst [vmem:[%s327 + $0x60] sm:$0xff] %v352
                  %v354 = vld [vmem:[%s326 + $0x128] sm:$0xff]
                  %355 = vst [vmem:[%s327 + $0x68] sm:$0xff] %v354
                  %v356 = vld [vmem:[%s326 + $0x130] sm:$0xff]
                  %357 = vst [vmem:[%s327 + $0x70] sm:$0xff] %v356
                  %v358 = vld [vmem:[%s326 + $0x138] sm:$0xff]
                  %359 = vst [vmem:[%s327 + $0x78] sm:$0xff] %v358
                $region94: #{residual_block.5} parent=88 // loop_footer
                  %s325 = sadd.s32 1, %s321
                $region95: #{residual_block.5} parent=88 // loop_footer_branch
                  %320 = sbr.rel target = $region91
                $region96: #{residual_block.5} parent=88 // loop_exit
                  _
              $region89: #{residual_block.5} parent=73 // pred_fallthru
                _
              // Predicated region
              $region97: #{residual_block.5} parent=73 // pred_check
                _
              $region98: #{residual_block.5} parent=73 // pred_check_branch
                %361 = sbr.rel target = $region100
              $region99: #{residual_block.5} parent=73 // pred_region
                _
              $region100: #{residual_block.5} parent=73 // pred_fallthru
                _
            $region74: #{residual_block.5} parent=69 // pred_fallthru
              _
            // Predicated region
            $region75: #{residual_block.5} parent=69 // pred_check
              _
            $region76: #{residual_block.5} parent=69 // pred_check_branch
              %275 = sbr.rel target = $region78
            $region77: #{residual_block.5} parent=69 // pred_region
              %s277 = ssub.s32 256, 1
              loop: start=0, step=1, limit=1
              $region79: #{residual_block.5} parent=77 // loop_pre_header
                _
              $region80: #{residual_block.5} parent=77 // loop_header
                %s279 = sphi 0, %s283
                %p280 = scmp.ge.s32.totalorder %s279, 1
                %s284 = sphi %s269, %s269
                %s285 = sphi %s265, %s265
              $region81: #{residual_block.5} parent=77 // loop_header_branch
                %282 = sbr.rel (%p280) target = $region85
              $region82: #{residual_block.5} parent=77 // loop_body
                %v286 = vld [vmem:[%s284] sm:%s277]
                %287 = vst [vmem:[%s285] sm:%s277] %v286
                %v288 = vld [vmem:[%s284 + $0x8] sm:%s277]
                %289 = vst [vmem:[%s285 + $0x8] sm:%s277] %v288
                %v290 = vld [vmem:[%s284 + $0x10] sm:%s277]
                %291 = vst [vmem:[%s285 + $0x10] sm:%s277] %v290
                %v292 = vld [vmem:[%s284 + $0x18] sm:%s277]
                %293 = vst [vmem:[%s285 + $0x18] sm:%s277] %v292
                %v294 = vld [vmem:[%s284 + $0x20] sm:%s277]
                %295 = vst [vmem:[%s285 + $0x20] sm:%s277] %v294
                %v296 = vld [vmem:[%s284 + $0x28] sm:%s277]
                %297 = vst [vmem:[%s285 + $0x28] sm:%s277] %v296
                %v298 = vld [vmem:[%s284 + $0x30] sm:%s277]
                %299 = vst [vmem:[%s285 + $0x30] sm:%s277] %v298
                %v300 = vld [vmem:[%s284 + $0x38] sm:%s277]
                %301 = vst [vmem:[%s285 + $0x38] sm:%s277] %v300
                %v302 = vld [vmem:[%s284 + $0x100] sm:%s277]
                %303 = vst [vmem:[%s285 + $0x40] sm:%s277] %v302
                %v304 = vld [vmem:[%s284 + $0x108] sm:%s277]
                %305 = vst [vmem:[%s285 + $0x48] sm:%s277] %v304
                %v306 = vld [vmem:[%s284 + $0x110] sm:%s277]
                %307 = vst [vmem:[%s285 + $0x50] sm:%s277] %v306
                %v308 = vld [vmem:[%s284 + $0x118] sm:%s277]
                %309 = vst [vmem:[%s285 + $0x58] sm:%s277] %v308
                %v310 = vld [vmem:[%s284 + $0x120] sm:%s277]
                %311 = vst [vmem:[%s285 + $0x60] sm:%s277] %v310
                %v312 = vld [vmem:[%s284 + $0x128] sm:%s277]
                %313 = vst [vmem:[%s285 + $0x68] sm:%s277] %v312
                %v314 = vld [vmem:[%s284 + $0x130] sm:%s277]
                %315 = vst [vmem:[%s285 + $0x70] sm:%s277] %v314
                %v316 = vld [vmem:[%s284 + $0x138] sm:%s277]
                %317 = vst [vmem:[%s285 + $0x78] sm:%s277] %v316
              $region83: #{residual_block.5} parent=77 // loop_footer
                %s283 = sadd.s32 1, %s279
              $region84: #{residual_block.5} parent=77 // loop_footer_branch
                %278 = sbr.rel target = $region80
              $region85: #{residual_block.5} parent=77 // loop_exit
                _
            $region78: #{residual_block.5} parent=69 // pred_fallthru
              _
          $region70: #{residual_block.5} parent=65 // pred_fallthru
            _
          %362 = vnop
        $region66: #{residual_block.5} parent=23 // pred_fallthru
          _
      $region24: #{residual_block.5} parent=5 // pred_fallthru
        _
      %p363 = scmp.le.s32.totalorder 1, %s10
      %p364 = scmp.lt.s32.totalorder %s10, 5
      %p365 = pnand %p363, %p364
      %p366 = pneg %p365
      // Predicated region
      $region101: #{residual_block.5} parent=5 // pred_check
        _
      $region102: #{residual_block.5} parent=5 // pred_check_branch
        %368 = sbr.rel (%p365) target = $region104
      $region103: #{residual_block.5} parent=5 // pred_region
        %s369 = ssub.s32 %s10, 1
        %s370 = sand.u32 %s23, 1
        %s371 = sand.u32 %s23, 1
        %s372 = smul.addr %s371, 128
        %s373 = scalar_lea.vmem [#allocation2], %s372
        // Predicated region
        $region105: #{residual_block.5} parent=103 // pred_check
          %p374 = pneg %p36
        $region106: #{residual_block.5} parent=103 // pred_check_branch
          %376 = sbr.rel (%p374) target = $region108
        $region107: #{residual_block.5} parent=103 // pred_region
          _
        $region108: #{residual_block.5} parent=103 // pred_fallthru
          _
        %s377 = sand.u32 %s49, 1
        %s378 = sand.u32 %s49, 1
        %s379 = smul.addr %s378, 128
        %s380 = scalar_lea.vmem [#allocation3], %s379
        // Predicated region
        $region109: #{residual_block.5} parent=103 // pred_check
          %p381 = pneg %p62
        $region110: #{residual_block.5} parent=103 // pred_check_branch
          %383 = sbr.rel (%p381) target = $region112
        $region111: #{residual_block.5} parent=103 // pred_region
          _
        $region112: #{residual_block.5} parent=103 // pred_fallthru
          _
        %s384 = sand.u32 %s23, 1
        %s385 = sand.u32 %s23, 1
        %s386 = smul.addr %s385, 128
        %s387 = scalar_lea.vmem [#allocation2], %s386
        %p388 = pneg %p36
        %p389 = pneg %p33
        %s390 = sand.u32 %s49, 1
        %s391 = sand.u32 %s49, 1
        %s392 = smul.addr %s391, 128
        %s393 = scalar_lea.vmem [#allocation3], %s392
        %p394 = pneg %p62
        %p395 = pneg %p59
        %p396 = pneg %p83
        %p397 = pneg %p80
        %p398 = pneg %p104
        %p399 = pneg %p101
        %p400 = pneg %p130
        %p401 = pneg %p127
        %s402 = sand.u32 %s117, 1
        %s403 = sand.u32 %s117, 1
        %s404 = smul.addr %s403, 128
        %s405 = scalar_lea.vmem [#allocation4], %s404
        %s406 = smul.u32 4, %s15
        %s407 = smul.u32 4, %s15
        %s408 = smul.u32 4, %s15
        %v409 = vld [vmem:[%s373] sm:$0xff]
        %v410 = vld [vmem:[%s373 + $0x8] sm:$0xff]
        %v411 = vld [vmem:[%s373 + $0x10] sm:$0xff]
        %v412 = vld [vmem:[%s373 + $0x18] sm:$0xff]
        %v413 = vld [vmem:[%s373 + $0x20] sm:$0xff]
        %v414 = vld [vmem:[%s373 + $0x28] sm:$0xff]
        %v415 = vld [vmem:[%s373 + $0x30] sm:$0xff]
        %v416 = vld [vmem:[%s373 + $0x38] sm:$0xff]
        %v417 = vld [vmem:[%s373 + $0x40] sm:$0xff]
        %v418 = vld [vmem:[%s373 + $0x48] sm:$0xff]
        %v419 = vld [vmem:[%s373 + $0x50] sm:$0xff]
        %v420 = vld [vmem:[%s373 + $0x58] sm:$0xff]
        %v421 = vld [vmem:[%s373 + $0x60] sm:$0xff]
        %v422 = vld [vmem:[%s373 + $0x68] sm:$0xff]
        %v423 = vld [vmem:[%s373 + $0x70] sm:$0xff]
        %v424 = vld [vmem:[%s373 + $0x78] sm:$0xff]
        %v425 = vld [vmem:[%s380] sm:$0xff]
        %v426 = vld [vmem:[%s380 + $0x8] sm:$0xff]
        %v427 = vld [vmem:[%s380 + $0x10] sm:$0xff]
        %v428 = vld [vmem:[%s380 + $0x18] sm:$0xff]
        %v429 = vld [vmem:[%s380 + $0x20] sm:$0xff]
        %v430 = vld [vmem:[%s380 + $0x28] sm:$0xff]
        %v431 = vld [vmem:[%s380 + $0x30] sm:$0xff]
        %v432 = vld [vmem:[%s380 + $0x38] sm:$0xff]
        %v433 = vld [vmem:[%s380 + $0x40] sm:$0xff]
        %v434 = vld [vmem:[%s380 + $0x48] sm:$0xff]
        %v435 = vld [vmem:[%s380 + $0x50] sm:$0xff]
        %v436 = vld [vmem:[%s380 + $0x58] sm:$0xff]
        %v437 = vld [vmem:[%s380 + $0x60] sm:$0xff]
        %v438 = vld [vmem:[%s380 + $0x68] sm:$0xff]
        %v439 = vld [vmem:[%s380 + $0x70] sm:$0xff]
        %v440 = vld [vmem:[%s380 + $0x78] sm:$0xff]
        %v441 = vld [vmem:[%s2] sm:$0x1]
        %v443 = vperm.slane %v441, 0
        %v445 = vmul.f32 %v425, %v443
        %v446 = vmul.f32 %v426, %v443
        %v447 = vmul.f32 %v427, %v443
        %v448 = vmul.f32 %v428, %v443
        %v449 = vmul.f32 %v429, %v443
        %v450 = vmul.f32 %v430, %v443
        %v451 = vmul.f32 %v431, %v443
        %v452 = vmul.f32 %v432, %v443
        %v453 = vmul.f32 %v433, %v443
        %v454 = vmul.f32 %v434, %v443
        %v455 = vmul.f32 %v435, %v443
        %v456 = vmul.f32 %v436, %v443
        %v457 = vmul.f32 %v437, %v443
        %v458 = vmul.f32 %v438, %v443
        %v459 = vmul.f32 %v439, %v443
        %v460 = vmul.f32 %v440, %v443
        %v461 = vld [vmem:[%s3] sm:$0x1]
        %v463 = vperm.slane %v461, 0
        %v465 = vadd.f32 %v445, %v463
        %v466 = vadd.f32 %v446, %v463
        %v467 = vadd.f32 %v447, %v463
        %v468 = vadd.f32 %v448, %v463
        %v469 = vadd.f32 %v449, %v463
        %v470 = vadd.f32 %v450, %v463
        %v471 = vadd.f32 %v451, %v463
        %v472 = vadd.f32 %v452, %v463
        %v473 = vadd.f32 %v453, %v463
        %v474 = vadd.f32 %v454, %v463
        %v475 = vadd.f32 %v455, %v463
        %v476 = vadd.f32 %v456, %v463
        %v477 = vadd.f32 %v457, %v463
        %v478 = vadd.f32 %v458, %v463
        %v479 = vadd.f32 %v459, %v463
        %v480 = vadd.f32 %v460, %v463
        %v481 = vadd.f32 %v409, %v465
        %v482 = vadd.f32 %v410, %v466
        %v483 = vadd.f32 %v411, %v467
        %v484 = vadd.f32 %v412, %v468
        %v485 = vadd.f32 %v413, %v469
        %v486 = vadd.f32 %v414, %v470
        %v487 = vadd.f32 %v415, %v471
        %v488 = vadd.f32 %v416, %v472
        %v489 = vadd.f32 %v417, %v473
        %v490 = vadd.f32 %v418, %v474
        %v491 = vadd.f32 %v419, %v475
        %v492 = vadd.f32 %v420, %v476
        %v493 = vadd.f32 %v421, %v477
        %v494 = vadd.f32 %v422, %v478
        %v495 = vadd.f32 %v423, %v479
        %v496 = vadd.f32 %v424, %v480
        %vm497 = vcmask 64512
        %498 = vst.msk [vmem:[%s405] sm:$0xff] %vm497, %v481
        %499 = vst.msk [vmem:[%s405 + $0x8] sm:$0xff] %vm497, %v482
        %500 = vst.msk [vmem:[%s405 + $0x10] sm:$0xff] %vm497, %v483
        %501 = vst.msk [vmem:[%s405 + $0x18] sm:$0xff] %vm497, %v484
        %502 = vst.msk [vmem:[%s405 + $0x20] sm:$0xff] %vm497, %v485
        %503 = vst.msk [vmem:[%s405 + $0x28] sm:$0xff] %vm497, %v486
        %504 = vst.msk [vmem:[%s405 + $0x30] sm:$0xff] %vm497, %v487
        %505 = vst.msk [vmem:[%s405 + $0x38] sm:$0xff] %vm497, %v488
        %506 = vst.msk [vmem:[%s405 + $0x40] sm:$0xff] %vm497, %v489
        %507 = vst.msk [vmem:[%s405 + $0x48] sm:$0xff] %vm497, %v490
        %508 = vst.msk [vmem:[%s405 + $0x50] sm:$0xff] %vm497, %v491
        %509 = vst.msk [vmem:[%s405 + $0x58] sm:$0xff] %vm497, %v492
        %510 = vst.msk [vmem:[%s405 + $0x60] sm:$0xff] %vm497, %v493
        %511 = vst.msk [vmem:[%s405 + $0x68] sm:$0xff] %vm497, %v494
        %512 = vst.msk [vmem:[%s405 + $0x70] sm:$0xff] %vm497, %v495
        %513 = vst.msk [vmem:[%s405 + $0x78] sm:$0xff] %vm497, %v496
        %s514 = sand.u32 %s117, 1
        %s515 = sand.u32 %s117, 1
        %s516 = smul.addr %s515, 128
        %s517 = scalar_lea.vmem [#allocation4], %s516
        // Predicated region
        $region113: #{residual_block.5} parent=103 // pred_check
          %p518 = pneg %p127
        $region114: #{residual_block.5} parent=103 // pred_check_branch
          %520 = sbr.rel (%p518) target = $region116
        $region115: #{residual_block.5} parent=103 // pred_region
          %s521 = smul.u32 4, %s15
          %s522 = smul.addr %s521, 2
          %s523 = smul.addr %s522, 8
          %s524 = scalar_lea.vmem %s4, %s523
          // Predicated region
          $region117: #{residual_block.5} parent=115 // pred_check
            _
          $region118: #{residual_block.5} parent=115 // pred_check_branch
            %526 = sbr.rel (0) target = $region120
          $region119: #{residual_block.5} parent=115 // pred_region
            // Predicated region
            $region121: #{residual_block.5} parent=119 // pred_check
              _
            $region122: #{residual_block.5} parent=119 // pred_check_branch
              %528 = sbr.rel (0) target = $region124
            $region123: #{residual_block.5} parent=119 // pred_region
              // Predicated region
              $region136: #{residual_block.5} parent=123 // pred_check
                _
              $region137: #{residual_block.5} parent=123 // pred_check_branch
                %574 = sbr.rel (0) target = $region139
              $region138: #{residual_block.5} parent=123 // pred_region
                loop: start=0, step=1, limit=1
                $region140: #{residual_block.5} parent=138 // loop_pre_header
                  _
                $region141: #{residual_block.5} parent=138 // loop_header
                  %s576 = sphi 0, %s580
                  %p577 = scmp.ge.s32.totalorder %s576, 1
                  %s581 = sphi %s517, %s517
                  %s582 = sphi %s524, %s524
                $region142: #{residual_block.5} parent=138 // loop_header_branch
                  %579 = sbr.rel (%p577) target = $region146
                $region143: #{residual_block.5} parent=138 // loop_body
                  %v583 = vld [vmem:[%s581] sm:$0xff]
                  %584 = vst [vmem:[%s582] sm:$0xff] %v583
                  %v585 = vld [vmem:[%s581 + $0x8] sm:$0xff]
                  %586 = vst [vmem:[%s582 + $0x8] sm:$0xff] %v585
                  %v587 = vld [vmem:[%s581 + $0x10] sm:$0xff]
                  %588 = vst [vmem:[%s582 + $0x10] sm:$0xff] %v587
                  %v589 = vld [vmem:[%s581 + $0x18] sm:$0xff]
                  %590 = vst [vmem:[%s582 + $0x18] sm:$0xff] %v589
                  %v591 = vld [vmem:[%s581 + $0x20] sm:$0xff]
                  %592 = vst [vmem:[%s582 + $0x20] sm:$0xff] %v591
                  %v593 = vld [vmem:[%s581 + $0x28] sm:$0xff]
                  %594 = vst [vmem:[%s582 + $0x28] sm:$0xff] %v593
                  %v595 = vld [vmem:[%s581 + $0x30] sm:$0xff]
                  %596 = vst [vmem:[%s582 + $0x30] sm:$0xff] %v595
                  %v597 = vld [vmem:[%s581 + $0x38] sm:$0xff]
                  %598 = vst [vmem:[%s582 + $0x38] sm:$0xff] %v597
                  %v599 = vld [vmem:[%s581 + $0x40] sm:$0xff]
                  %600 = vst [vmem:[%s582 + $0x100] sm:$0xff] %v599
                  %v601 = vld [vmem:[%s581 + $0x48] sm:$0xff]
                  %602 = vst [vmem:[%s582 + $0x108] sm:$0xff] %v601
                  %v603 = vld [vmem:[%s581 + $0x50] sm:$0xff]
                  %604 = vst [vmem:[%s582 + $0x110] sm:$0xff] %v603
                  %v605 = vld [vmem:[%s581 + $0x58] sm:$0xff]
                  %606 = vst [vmem:[%s582 + $0x118] sm:$0xff] %v605
                  %v607 = vld [vmem:[%s581 + $0x60] sm:$0xff]
                  %608 = vst [vmem:[%s582 + $0x120] sm:$0xff] %v607
                  %v609 = vld [vmem:[%s581 + $0x68] sm:$0xff]
                  %610 = vst [vmem:[%s582 + $0x128] sm:$0xff] %v609
                  %v611 = vld [vmem:[%s581 + $0x70] sm:$0xff]
                  %612 = vst [vmem:[%s582 + $0x130] sm:$0xff] %v611
                  %v613 = vld [vmem:[%s581 + $0x78] sm:$0xff]
                  %614 = vst [vmem:[%s582 + $0x138] sm:$0xff] %v613
                $region144: #{residual_block.5} parent=138 // loop_footer
                  %s580 = sadd.s32 1, %s576
                $region145: #{residual_block.5} parent=138 // loop_footer_branch
                  %575 = sbr.rel target = $region141
                $region146: #{residual_block.5} parent=138 // loop_exit
                  _
              $region139: #{residual_block.5} parent=123 // pred_fallthru
                _
              // Predicated region
              $region147: #{residual_block.5} parent=123 // pred_check
                _
              $region148: #{residual_block.5} parent=123 // pred_check_branch
                %616 = sbr.rel target = $region150
              $region149: #{residual_block.5} parent=123 // pred_region
                _
              $region150: #{residual_block.5} parent=123 // pred_fallthru
                _
            $region124: #{residual_block.5} parent=119 // pred_fallthru
              _
            // Predicated region
            $region125: #{residual_block.5} parent=119 // pred_check
              _
            $region126: #{residual_block.5} parent=119 // pred_check_branch
              %530 = sbr.rel target = $region128
            $region127: #{residual_block.5} parent=119 // pred_region
              %s532 = ssub.s32 256, 1
              loop: start=0, step=1, limit=1
              $region129: #{residual_block.5} parent=127 // loop_pre_header
                _
              $region130: #{residual_block.5} parent=127 // loop_header
                %s534 = sphi 0, %s538
                %p535 = scmp.ge.s32.totalorder %s534, 1
                %s539 = sphi %s517, %s517
                %s540 = sphi %s524, %s524
              $region131: #{residual_block.5} parent=127 // loop_header_branch
                %537 = sbr.rel (%p535) target = $region135
              $region132: #{residual_block.5} parent=127 // loop_body
                %v541 = vld [vmem:[%s539] sm:%s532]
                %542 = vst [vmem:[%s540] sm:%s532] %v541
                %v543 = vld [vmem:[%s539 + $0x8] sm:%s532]
                %544 = vst [vmem:[%s540 + $0x8] sm:%s532] %v543
                %v545 = vld [vmem:[%s539 + $0x10] sm:%s532]
                %546 = vst [vmem:[%s540 + $0x10] sm:%s532] %v545
                %v547 = vld [vmem:[%s539 + $0x18] sm:%s532]
                %548 = vst [vmem:[%s540 + $0x18] sm:%s532] %v547
                %v549 = vld [vmem:[%s539 + $0x20] sm:%s532]
                %550 = vst [vmem:[%s540 + $0x20] sm:%s532] %v549
                %v551 = vld [vmem:[%s539 + $0x28] sm:%s532]
                %552 = vst [vmem:[%s540 + $0x28] sm:%s532] %v551
                %v553 = vld [vmem:[%s539 + $0x30] sm:%s532]
                %554 = vst [vmem:[%s540 + $0x30] sm:%s532] %v553
                %v555 = vld [vmem:[%s539 + $0x38] sm:%s532]
                %556 = vst [vmem:[%s540 + $0x38] sm:%s532] %v555
                %v557 = vld [vmem:[%s539 + $0x40] sm:%s532]
                %558 = vst [vmem:[%s540 + $0x100] sm:%s532] %v557
                %v559 = vld [vmem:[%s539 + $0x48] sm:%s532]
                %560 = vst [vmem:[%s540 + $0x108] sm:%s532] %v559
                %v561 = vld [vmem:[%s539 + $0x50] sm:%s532]
                %562 = vst [vmem:[%s540 + $0x110] sm:%s532] %v561
                %v563 = vld [vmem:[%s539 + $0x58] sm:%s532]
                %564 = vst [vmem:[%s540 + $0x118] sm:%s532] %v563
                %v565 = vld [vmem:[%s539 + $0x60] sm:%s532]
                %566 = vst [vmem:[%s540 + $0x120] sm:%s532] %v565
                %v567 = vld [vmem:[%s539 + $0x68] sm:%s532]
                %568 = vst [vmem:[%s540 + $0x128] sm:%s532] %v567
                %v569 = vld [vmem:[%s539 + $0x70] sm:%s532]
                %570 = vst [vmem:[%s540 + $0x130] sm:%s532] %v569
                %v571 = vld [vmem:[%s539 + $0x78] sm:%s532]
                %572 = vst [vmem:[%s540 + $0x138] sm:%s532] %v571
              $region133: #{residual_block.5} parent=127 // loop_footer
                %s538 = sadd.s32 1, %s534
              $region134: #{residual_block.5} parent=127 // loop_footer_branch
                %533 = sbr.rel target = $region130
              $region135: #{residual_block.5} parent=127 // loop_exit
                _
            $region128: #{residual_block.5} parent=119 // pred_fallthru
              _
          $region120: #{residual_block.5} parent=115 // pred_fallthru
            _
          %617 = vnop
        $region116: #{residual_block.5} parent=103 // pred_fallthru
          _
      $region104: #{residual_block.5} parent=5 // pred_fallthru
        _
      %p618 = scmp.le.s32.totalorder 2, %s10
      // Predicated region
      $region151: #{residual_block.5} parent=5 // pred_check
        %p619 = pneg %p618
      $region152: #{residual_block.5} parent=5 // pred_check_branch
        %621 = sbr.rel (%p619) target = $region154
      $region153: #{residual_block.5} parent=5 // pred_region
        %s622 = ssub.s32 %s10, 2
        // Predicated region
        $region155: #{residual_block.5} parent=153 // pred_check
          %p623 = pneg %p133
        $region156: #{residual_block.5} parent=153 // pred_check_branch
          %625 = sbr.rel (%p623) target = $region158
        $region157: #{residual_block.5} parent=153 // pred_region
          %s626 = sand.u32 %s118, 1
          %s627 = sand.u32 %s118, 1
          %s628 = smul.addr %s627, 128
          %s629 = scalar_lea.vmem [#allocation4], %s628
        $region158: #{residual_block.5} parent=153 // pred_fallthru
          _
      $region154: #{residual_block.5} parent=5 // pred_fallthru
        _
    $region6: #{residual_block.5} parent=1 // loop_footer
      %s14 = sadd.s32 1, %s10
    $region7: #{residual_block.5} parent=1 // loop_footer_branch
      %9 = sbr.rel target = $region3
    $region8: #{residual_block.5} parent=1 // loop_exit
      _

// kernel: residual_block.3
$region0: #{residual_block.3}
  #allocation0 [shape = 'u32[]', space=smem, size = 0x4, offset = 0x4, fixed_abs, tag = 'smem constant byte address 0x4 - core index']
  #allocation1 [shape = 'u32[72,128]{1,0:T(1,128)}', space=vmem, size = 0x9000, scoped, tag = 'internal scratch']
  #allocation2 [shape = 'f32[2,6,18,8]{3,2,1,0:T(8,128)}', space=vmem, size = 0x24000, scoped, tag = 'scratch operand']
  %s0 = inlined_call_operand.vmem [shape: f32[2,16,16,8], index: 0, kind: input, shape index: {}, may-alias: {0,1,2}]
  %s1 = inlined_call_operand.vmem [shape: f32[2,16,16,8], index: 1, kind: input, shape index: {}, may-alias: {0,1,2}]
  %s2 = inlined_call_operand.vmem [shape: f32[2,16,16,8], index: 2, kind: input, shape index: {}, may-alias: {0,1,2}]
  %s3 = inlined_call_operand.vmem [shape: f32[9,8,8], index: 3, kind: input, shape index: {}]
  %s4 = inlined_call_operand.vmem [shape: f32[1,8], index: 4, kind: input, shape index: {}]
  %s5 = inlined_call_operand.vmem [shape: f32[1,8], index: 5, kind: input, shape index: {}]
  %s6 = inlined_call_operand.vmem [shape: f32[2,16,16,8], index: 6, kind: output, shape index: {0}]
  %s7 = inlined_call_operand.vmem [shape: f32[4,2,8], index: 7, kind: output, shape index: {1}]
  %8 = xla_tuple %s6, %s7
  %s9 = sld [smem:[#allocation0]]
  $region213: #{residual_block.3} parent=0
    _
  %s11 = ssub.s32 1, %s9
  %s12 = scalar_select 0, %s11, %s9
  $region1: #{residual_block.3} parent=0
    #allocation3 [shape = 'u8[32768]{0}', space=vmem, size = 0x8000, scoped, tag = 'input window, operand 0']
    #allocation4 [shape = 'u8[131072]{0}', space=vmem, size = 0x20000, scoped, tag = 'input window, operand 1']
    #allocation5 [shape = 'u8[32768]{0}', space=vmem, size = 0x8000, scoped, tag = 'input window, operand 2']
    #allocation6 [shape = 'u8[131072]{0}', space=vmem, size = 0x20000, scoped, tag = 'output window, operand 0']
    loop: start=0, step=1, limit=6
    $region2: #{residual_block.3} parent=1 // loop_pre_header
      _
    $region3: #{residual_block.3} parent=1 // loop_header
      %s14 = sphi 0, %s18
      %p15 = scmp.ge.s32.totalorder %s14, 6
      %s32 = sphi 0, %s34
      %s35 = sphi 0, %s32
      %s36 = sphi 0, %s35
      %s52 = sphi 0, %s36
      %s58 = sphi 0, %s60
      %s61 = sphi 0, %s58
      %s62 = sphi 0, %s61
      %s78 = sphi 0, %s62
      %s92 = sphi 0, %s94
      %s95 = sphi 0, %s92
      %s96 = sphi 0, %s95
      %s112 = sphi 0, %s96
      %s116 = sphi 0, %s116
      %s118 = sphi 0, %s116
      %s119 = sphi 0, %s118
      %s133 = sphi 0, %s119
      %s137 = sphi 0, %s137
      %s139 = sphi 0, %s137
      %s140 = sphi 0, %s139
      %s154 = sphi 0, %s140
      %s158 = sphi 0, %s158
      %s160 = sphi 0, %s158
      %s161 = sphi 0, %s160
      %s175 = sphi 0, %s161
      %s181 = sphi 0, %s183
      %s184 = sphi 0, %s181
      %s185 = sphi 0, %s184
      %s201 = sphi 0, %s185
      %s207 = sphi 0, %s209
      %s210 = sphi 0, %s207
      %s211 = sphi 0, %s210
      %s227 = sphi 0, %s211
    $region4: #{residual_block.3} parent=1 // loop_header_branch
      %17 = sbr.rel (%p15) target = $region8
    $region5: #{residual_block.3} parent=1 // loop_body
      %s19 = ssub.s32 %s14, 1
      %s20 = ssub.s32 %s14, 2
      %s21 = sadd.s32 %s14, 1
      %s22 = smul.u32 %s14, 4
      %s23 = ssub.s32 %s22, 1
      %p24 = scmp.gt.s32.totalorder %s23, 0
      %s25 = scalar_select %p24, %s23, 0
      %s26 = smul.u32 %s21, 4
      %s27 = ssub.s32 %s26, 1
      %p28 = scmp.gt.s32.totalorder %s27, 0
      %s29 = scalar_select %p28, %s27, 0
      %s30 = ssub.s32 %s25, %s29
      %p31 = scmp.eq.s32.totalorder %s30, 0
      %s33 = sadd.s32 %s32, 1
      %s34 = scalar_select %p31, %s32, %s33
      %p37 = pneg %p31
      %p38 = scmp.eq.s32.totalorder %s14, 3
      %p39 = por %p37, %p38
      %p40 = scmp.ne.s32.totalorder %s32, %s35
      %p41 = scmp.eq.s32.totalorder %s14, 0
      %p42 = por %p40, %p41
      %p43 = scmp.ne.s32.totalorder %s32, %s35
      %p44 = scmp.eq.s32.totalorder %s19, 3
      %p45 = por %p43, %p44
      %p46 = scmp.ne.s32.totalorder %s35, %s36
      %p47 = scmp.eq.s32.totalorder %s19, 0
      %p48 = por %p46, %p47
      %p49 = scmp.ne.s32.totalorder %s35, %s36
      %p50 = scmp.eq.s32.totalorder %s20, 3
      %p51 = por %p49, %p50
      %p53 = scmp.ne.s32.totalorder %s36, %s52
      %p54 = scmp.eq.s32.totalorder %s20, 0
      %p55 = por %p53, %p54
      %s56 = ssub.s32 %s14, %s21
      %p57 = scmp.eq.s32.totalorder %s56, 0
      %s59 = sadd.s32 %s58, 1
      %s60 = scalar_select %p57, %s58, %s59
      %p63 = pneg %p57
      %p64 = scmp.eq.s32.totalorder %s14, 3
      %p65 = por %p63, %p64
      %p66 = scmp.ne.s32.totalorder %s58, %s61
      %p67 = scmp.eq.s32.totalorder %s14, 0
      %p68 = por %p66, %p67
      %p69 = scmp.ne.s32.totalorder %s58, %s61
      %p70 = scmp.eq.s32.totalorder %s19, 3
      %p71 = por %p69, %p70
      %p72 = scmp.ne.s32.totalorder %s61, %s62
      %p73 = scmp.eq.s32.totalorder %s19, 0
      %p74 = por %p72, %p73
      %p75 = scmp.ne.s32.totalorder %s61, %s62
      %p76 = scmp.eq.s32.totalorder %s20, 3
      %p77 = por %p75, %p76
      %p79 = scmp.ne.s32.totalorder %s62, %s78
      %p80 = scmp.eq.s32.totalorder %s20, 0
      %p81 = por %p79, %p80
      %s82 = smul.u32 %s14, 4
      %s83 = sadd.s32 %s82, 4
      %p84 = scmp.lt.s32.totalorder %s83, 15
      %s85 = scalar_select %p84, %s83, 15
      %s86 = smul.u32 %s21, 4
      %s87 = sadd.s32 %s86, 4
      %p88 = scmp.lt.s32.totalorder %s87, 15
      %s89 = scalar_select %p88, %s87, 15
      %s90 = ssub.s32 %s85, %s89
      %p91 = scmp.eq.s32.totalorder %s90, 0
      %s93 = sadd.s32 %s92, 1
      %s94 = scalar_select %p91, %s92, %s93
      %p97 = pneg %p91
      %p98 = scmp.eq.s32.totalorder %s14, 3
      %p99 = por %p97, %p98
      %p100 = scmp.ne.s32.totalorder %s92, %s95
      %p101 = scmp.eq.s32.totalorder %s14, 0
      %p102 = por %p100, %p101
      %p103 = scmp.ne.s32.totalorder %s92, %s95
      %p104 = scmp.eq.s32.totalorder %s19, 3
      %p105 = por %p103, %p104
      %p106 = scmp.ne.s32.totalorder %s95, %s96
      %p107 = scmp.eq.s32.totalorder %s19, 0
      %p108 = por %p106, %p107
      %p109 = scmp.ne.s32.totalorder %s95, %s96
      %p110 = scmp.eq.s32.totalorder %s20, 3
      %p111 = por %p109, %p110
      %p113 = scmp.ne.s32.totalorder %s96, %s112
      %p114 = scmp.eq.s32.totalorder %s20, 0
      %p115 = por %p113, %p114
      %s117 = sadd.s32 %s116, 1
      %p120 = scmp.eq.s32.totalorder %s14, 3
      %p121 = scmp.ne.s32.totalorder %s116, %s118
      %p122 = scmp.eq.s32.totalorder %s14, 0
      %p123 = por %p121, %p122
      %p124 = scmp.ne.s32.totalorder %s116, %s118
      %p125 = scmp.eq.s32.totalorder %s19, 3
      %p126 = por %p124, %p125
      %p127 = scmp.ne.s32.totalorder %s118, %s119
      %p128 = scmp.eq.s32.totalorder %s19, 0
      %p129 = por %p127, %p128
      %p130 = scmp.ne.s32.totalorder %s118, %s119
      %p131 = scmp.eq.s32.totalorder %s20, 3
      %p132 = por %p130, %p131
      %p134 = scmp.ne.s32.totalorder %s119, %s133
      %p135 = scmp.eq.s32.totalorder %s20, 0
      %p136 = por %p134, %p135
      %s138 = sadd.s32 %s137, 1
      %p141 = scmp.eq.s32.totalorder %s14, 3
      %p142 = scmp.ne.s32.totalorder %s137, %s139
      %p143 = scmp.eq.s32.totalorder %s14, 0
      %p144 = por %p142, %p143
      %p145 = scmp.ne.s32.totalorder %s137, %s139
      %p146 = scmp.eq.s32.totalorder %s19, 3
      %p147 = por %p145, %p146
      %p148 = scmp.ne.s32.totalorder %s139, %s140
      %p149 = scmp.eq.s32.totalorder %s19, 0
      %p150 = por %p148, %p149
      %p151 = scmp.ne.s32.totalorder %s139, %s140
      %p152 = scmp.eq.s32.totalorder %s20, 3
      %p153 = por %p151, %p152
      %p155 = scmp.ne.s32.totalorder %s140, %s154
      %p156 = scmp.eq.s32.totalorder %s20, 0
      %p157 = por %p155, %p156
      %s159 = sadd.s32 %s158, 1
      %p162 = scmp.eq.s32.totalorder %s14, 3
      %p163 = scmp.ne.s32.totalorder %s158, %s160
      %p164 = scmp.eq.s32.totalorder %s14, 0
      %p165 = por %p163, %p164
      %p166 = scmp.ne.s32.totalorder %s158, %s160
      %p167 = scmp.eq.s32.totalorder %s19, 3
      %p168 = por %p166, %p167
      %p169 = scmp.ne.s32.totalorder %s160, %s161
      %p170 = scmp.eq.s32.totalorder %s19, 0
      %p171 = por %p169, %p170
      %p172 = scmp.ne.s32.totalorder %s160, %s161
      %p173 = scmp.eq.s32.totalorder %s20, 3
      %p174 = por %p172, %p173
      %p176 = scmp.ne.s32.totalorder %s161, %s175
      %p177 = scmp.eq.s32.totalorder %s20, 0
      %p178 = por %p176, %p177
      %s179 = ssub.s32 %s14, %s21
      %p180 = scmp.eq.s32.totalorder %s179, 0
      %s182 = sadd.s32 %s181, 1
      %s183 = scalar_select %p180, %s181, %s182
      %p186 = pneg %p180
      %p187 = scmp.eq.s32.totalorder %s14, 3
      %p188 = por %p186, %p187
      %p189 = scmp.ne.s32.totalorder %s181, %s184
      %p190 = scmp.eq.s32.totalorder %s14, 0
      %p191 = por %p189, %p190
      %p192 = scmp.ne.s32.totalorder %s181, %s184
      %p193 = scmp.eq.s32.totalorder %s19, 3
      %p194 = por %p192, %p193
      %p195 = scmp.ne.s32.totalorder %s184, %s185
      %p196 = scmp.eq.s32.totalorder %s19, 0
      %p197 = por %p195, %p196
      %p198 = scmp.ne.s32.totalorder %s184, %s185
      %p199 = scmp.eq.s32.totalorder %s20, 3
      %p200 = por %p198, %p199
      %p202 = scmp.ne.s32.totalorder %s185, %s201
      %p203 = scmp.eq.s32.totalorder %s20, 0
      %p204 = por %p202, %p203
      %s205 = ssub.s32 %s14, %s21
      %p206 = scmp.eq.s32.totalorder %s205, 0
      %s208 = sadd.s32 %s207, 1
      %s209 = scalar_select %p206, %s207, %s208
      %p212 = pneg %p206
      %p213 = scmp.eq.s32.totalorder %s14, 3
      %p214 = por %p212, %p213
      %p215 = scmp.ne.s32.totalorder %s207, %s210
      %p216 = scmp.eq.s32.totalorder %s14, 0
      %p217 = por %p215, %p216
      %p218 = scmp.ne.s32.totalorder %s207, %s210
      %p219 = scmp.eq.s32.totalorder %s19, 3
      %p220 = por %p218, %p219
      %p221 = scmp.ne.s32.totalorder %s210, %s211
      %p222 = scmp.eq.s32.totalorder %s19, 0
      %p223 = por %p221, %p222
      %p224 = scmp.ne.s32.totalorder %s210, %s211
      %p225 = scmp.eq.s32.totalorder %s20, 3
      %p226 = por %p224, %p225
      %p228 = scmp.ne.s32.totalorder %s211, %s227
      %p229 = scmp.eq.s32.totalorder %s20, 0
      %p230 = por %p228, %p229
      %p231 = scmp.le.s32.totalorder 1, %s14
      %p232 = scmp.lt.s32.totalorder %s14, 5
      %p233 = pnand %p231, %p232
      %p234 = pneg %p233
      // Predicated region
      $region9: #{residual_block.3} parent=5 // pred_check
        _
      $region10: #{residual_block.3} parent=5 // pred_check_branch
        %236 = sbr.rel (%p233) target = $region12
      $region11: #{residual_block.3} parent=5 // pred_region
        %s237 = ssub.s32 %s14, 1
        // Predicated region
        $region13: #{residual_block.3} parent=11 // pred_check
          %p238 = pneg %p129
        $region14: #{residual_block.3} parent=11 // pred_check_branch
          %240 = sbr.rel (%p238) target = $region16
        $region15: #{residual_block.3} parent=11 // pred_region
          _
        $region16: #{residual_block.3} parent=11 // pred_fallthru
          _
        // Predicated region
        $region17: #{residual_block.3} parent=11 // pred_check
          %p241 = pneg %p150
        $region18: #{residual_block.3} parent=11 // pred_check_branch
          %243 = sbr.rel (%p241) target = $region20
        $region19: #{residual_block.3} parent=11 // pred_region
          _
        $region20: #{residual_block.3} parent=11 // pred_fallthru
          _
        // Predicated region
        $region21: #{residual_block.3} parent=11 // pred_check
          %p244 = pneg %p171
        $region22: #{residual_block.3} parent=11 // pred_check_branch
          %246 = sbr.rel (%p244) target = $region24
        $region23: #{residual_block.3} parent=11 // pred_region
          _
        $region24: #{residual_block.3} parent=11 // pred_fallthru
          _
      $region12: #{residual_block.3} parent=5 // pred_fallthru
        _
      %p247 = scmp.lt.s32.totalorder %s14, 4
      // Predicated region
      $region25: #{residual_block.3} parent=5 // pred_check
        %p248 = pneg %p247
      $region26: #{residual_block.3} parent=5 // pred_check_branch
        %250 = sbr.rel (%p248) target = $region28
      $region27: #{residual_block.3} parent=5 // pred_region
        // Predicated region
        $region29: #{residual_block.3} parent=27 // pred_check
          %p251 = pneg %p42
        $region30: #{residual_block.3} parent=27 // pred_check_branch
          %253 = sbr.rel (%p251) target = $region32
        $region31: #{residual_block.3} parent=27 // pred_region
          %s254 = sand.u32 %s32, 1
          %s255 = sand.u32 %s32, 1
          %s256 = smul.addr %s255, 32
          %s257 = scalar_lea.vmem [#allocation3], %s256
          %s258 = smul.u32 %s14, 4
          %s259 = ssub.s32 %s258, 1
          %p260 = scmp.gt.s32.totalorder %s259, 0
          %s261 = scalar_select %p260, %s259, 0
          %s262 = smul.addr %s261, 2
          %s263 = smul.addr %s262, 8
          %s264 = scalar_lea.vmem %s0, %s263
          // Predicated region
          $region33: #{residual_block.3} parent=31 // pred_check
            _
          $region34: #{residual_block.3} parent=31 // pred_check_branch
            %266 = sbr.rel (0) target = $region36
          $region35: #{residual_block.3} parent=31 // pred_region
            // Predicated region
            $region37: #{residual_block.3} parent=35 // pred_check
              _
            $region38: #{residual_block.3} parent=35 // pred_check_branch
              %268 = sbr.rel (0) target = $region40
            $region39: #{residual_block.3} parent=35 // pred_region
              // Predicated region
              $region52: #{residual_block.3} parent=39 // pred_check
                _
              $region53: #{residual_block.3} parent=39 // pred_check_branch
                %290 = sbr.rel (0) target = $region55
              $region54: #{residual_block.3} parent=39 // pred_region
                loop: start=0, step=1, limit=1
                $region56: #{residual_block.3} parent=54 // loop_pre_header
                  _
                $region57: #{residual_block.3} parent=54 // loop_header
                  %s292 = sphi 0, %s296
                  %p293 = scmp.ge.s32.totalorder %s292, 1
                  %s297 = sphi %s264, %s264
                  %s298 = sphi %s257, %s257
                $region58: #{residual_block.3} parent=54 // loop_header_branch
                  %295 = sbr.rel (%p293) target = $region62
                $region59: #{residual_block.3} parent=54 // loop_body
                  %v299 = vld [vmem:[%s297] sm:$0xff]
                  %300 = vst [vmem:[%s298] sm:$0xff] %v299
                  %v301 = vld [vmem:[%s297 + $0x8] sm:$0xff]
                  %302 = vst [vmem:[%s298 + $0x8] sm:$0xff] %v301
                  %v303 = vld [vmem:[%s297 + $0x100] sm:$0xff]
                  %304 = vst [vmem:[%s298 + $0x10] sm:$0xff] %v303
                  %v305 = vld [vmem:[%s297 + $0x108] sm:$0xff]
                  %306 = vst [vmem:[%s298 + $0x18] sm:$0xff] %v305
                $region60: #{residual_block.3} parent=54 // loop_footer
                  %s296 = sadd.s32 1, %s292
                $region61: #{residual_block.3} parent=54 // loop_footer_branch
                  %291 = sbr.rel target = $region57
                $region62: #{residual_block.3} parent=54 // loop_exit
                  _
              $region55: #{residual_block.3} parent=39 // pred_fallthru
                _
              // Predicated region
              $region63: #{residual_block.3} parent=39 // pred_check
                _
              $region64: #{residual_block.3} parent=39 // pred_check_branch
                %308 = sbr.rel target = $region66
              $region65: #{residual_block.3} parent=39 // pred_region
                _
              $region66: #{residual_block.3} parent=39 // pred_fallthru
                _
            $region40: #{residual_block.3} parent=35 // pred_fallthru
              _
            // Predicated region
            $region41: #{residual_block.3} parent=35 // pred_check
              _
            $region42: #{residual_block.3} parent=35 // pred_check_branch
              %270 = sbr.rel target = $region44
            $region43: #{residual_block.3} parent=35 // pred_region
              %s272 = ssub.s32 256, 1
              loop: start=0, step=1, limit=1
              $region45: #{residual_block.3} parent=43 // loop_pre_header
                _
              $region46: #{residual_block.3} parent=43 // loop_header
                %s274 = sphi 0, %s278
                %p275 = scmp.ge.s32.totalorder %s274, 1
                %s279 = sphi %s264, %s264
                %s280 = sphi %s257, %s257
              $region47: #{residual_block.3} parent=43 // loop_header_branch
                %277 = sbr.rel (%p275) target = $region51
              $region48: #{residual_block.3} parent=43 // loop_body
                %v281 = vld [vmem:[%s279] sm:%s272]
                %282 = vst [vmem:[%s280] sm:%s272] %v281
                %v283 = vld [vmem:[%s279 + $0x8] sm:%s272]
                %284 = vst [vmem:[%s280 + $0x8] sm:%s272] %v283
                %v285 = vld [vmem:[%s279 + $0x100] sm:%s272]
                %286 = vst [vmem:[%s280 + $0x10] sm:%s272] %v285
                %v287 = vld [vmem:[%s279 + $0x108] sm:%s272]
                %288 = vst [vmem:[%s280 + $0x18] sm:%s272] %v287
              $region49: #{residual_block.3} parent=43 // loop_footer
                %s278 = sadd.s32 1, %s274
              $region50: #{residual_block.3} parent=43 // loop_footer_branch
                %273 = sbr.rel target = $region46
              $region51: #{residual_block.3} parent=43 // loop_exit
                _
            $region44: #{residual_block.3} parent=35 // pred_fallthru
              _
          $region36: #{residual_block.3} parent=31 // pred_fallthru
            _
          %309 = vnop
        $region32: #{residual_block.3} parent=27 // pred_fallthru
          _
        // Predicated region
        $region67: #{residual_block.3} parent=27 // pred_check
          %p310 = pneg %p68
        $region68: #{residual_block.3} parent=27 // pred_check_branch
          %312 = sbr.rel (%p310) target = $region70
        $region69: #{residual_block.3} parent=27 // pred_region
          %s313 = sand.u32 %s58, 1
          %s314 = sand.u32 %s58, 1
          %s315 = smul.addr %s314, 128
          %s316 = scalar_lea.vmem [#allocation4], %s315
          %s317 = smul.u32 4, %s14
          %s318 = smul.addr %s317, 2
          %s319 = smul.addr %s318, 8
          %s320 = scalar_lea.vmem %s1, %s319
          // Predicated region
          $region71: #{residual_block.3} parent=69 // pred_check
            _
          $region72: #{residual_block.3} parent=69 // pred_check_branch
            %322 = sbr.rel (0) target = $region74
          $region73: #{residual_block.3} parent=69 // pred_region
            // Predicated region
            $region75: #{residual_block.3} parent=73 // pred_check
              _
            $region76: #{residual_block.3} parent=73 // pred_check_branch
              %324 = sbr.rel (0) target = $region78
            $region77: #{residual_block.3} parent=73 // pred_region
              // Predicated region
              $region90: #{residual_block.3} parent=77 // pred_check
                _
              $region91: #{residual_block.3} parent=77 // pred_check_branch
                %370 = sbr.rel (0) target = $region93
              $region92: #{residual_block.3} parent=77 // pred_region
                loop: start=0, step=1, limit=1
                $region94: #{residual_block.3} parent=92 // loop_pre_header
                  _
                $region95: #{residual_block.3} parent=92 // loop_header
                  %s372 = sphi 0, %s376
                  %p373 = scmp.ge.s32.totalorder %s372, 1
                  %s377 = sphi %s320, %s320
                  %s378 = sphi %s316, %s316
                $region96: #{residual_block.3} parent=92 // loop_header_branch
                  %375 = sbr.rel (%p373) target = $region100
                $region97: #{residual_block.3} parent=92 // loop_body
                  %v379 = vld [vmem:[%s377] sm:$0xff]
                  %380 = vst [vmem:[%s378] sm:$0xff] %v379
                  %v381 = vld [vmem:[%s377 + $0x8] sm:$0xff]
                  %382 = vst [vmem:[%s378 + $0x8] sm:$0xff] %v381
                  %v383 = vld [vmem:[%s377 + $0x10] sm:$0xff]
                  %384 = vst [vmem:[%s378 + $0x10] sm:$0xff] %v383
                  %v385 = vld [vmem:[%s377 + $0x18] sm:$0xff]
                  %386 = vst [vmem:[%s378 + $0x18] sm:$0xff] %v385
                  %v387 = vld [vmem:[%s377 + $0x20] sm:$0xff]
                  %388 = vst [vmem:[%s378 + $0x20] sm:$0xff] %v387
                  %v389 = vld [vmem:[%s377 + $0x28] sm:$0xff]
                  %390 = vst [vmem:[%s378 + $0x28] sm:$0xff] %v389
                  %v391 = vld [vmem:[%s377 + $0x30] sm:$0xff]
                  %392 = vst [vmem:[%s378 + $0x30] sm:$0xff] %v391
                  %v393 = vld [vmem:[%s377 + $0x38] sm:$0xff]
                  %394 = vst [vmem:[%s378 + $0x38] sm:$0xff] %v393
                  %v395 = vld [vmem:[%s377 + $0x100] sm:$0xff]
                  %396 = vst [vmem:[%s378 + $0x40] sm:$0xff] %v395
                  %v397 = vld [vmem:[%s377 + $0x108] sm:$0xff]
                  %398 = vst [vmem:[%s378 + $0x48] sm:$0xff] %v397
                  %v399 = vld [vmem:[%s377 + $0x110] sm:$0xff]
                  %400 = vst [vmem:[%s378 + $0x50] sm:$0xff] %v399
                  %v401 = vld [vmem:[%s377 + $0x118] sm:$0xff]
                  %402 = vst [vmem:[%s378 + $0x58] sm:$0xff] %v401
                  %v403 = vld [vmem:[%s377 + $0x120] sm:$0xff]
                  %404 = vst [vmem:[%s378 + $0x60] sm:$0xff] %v403
                  %v405 = vld [vmem:[%s377 + $0x128] sm:$0xff]
                  %406 = vst [vmem:[%s378 + $0x68] sm:$0xff] %v405
                  %v407 = vld [vmem:[%s377 + $0x130] sm:$0xff]
                  %408 = vst [vmem:[%s378 + $0x70] sm:$0xff] %v407
                  %v409 = vld [vmem:[%s377 + $0x138] sm:$0xff]
                  %410 = vst [vmem:[%s378 + $0x78] sm:$0xff] %v409
                $region98: #{residual_block.3} parent=92 // loop_footer
                  %s376 = sadd.s32 1, %s372
                $region99: #{residual_block.3} parent=92 // loop_footer_branch
                  %371 = sbr.rel target = $region95
                $region100: #{residual_block.3} parent=92 // loop_exit
                  _
              $region93: #{residual_block.3} parent=77 // pred_fallthru
                _
              // Predicated region
              $region101: #{residual_block.3} parent=77 // pred_check
                _
              $region102: #{residual_block.3} parent=77 // pred_check_branch
                %412 = sbr.rel target = $region104
              $region103: #{residual_block.3} parent=77 // pred_region
                _
              $region104: #{residual_block.3} parent=77 // pred_fallthru
                _
            $region78: #{residual_block.3} parent=73 // pred_fallthru
              _
            // Predicated region
            $region79: #{residual_block.3} parent=73 // pred_check
              _
            $region80: #{residual_block.3} parent=73 // pred_check_branch
              %326 = sbr.rel target = $region82
            $region81: #{residual_block.3} parent=73 // pred_region
              %s328 = ssub.s32 256, 1
              loop: start=0, step=1, limit=1
              $region83: #{residual_block.3} parent=81 // loop_pre_header
                _
              $region84: #{residual_block.3} parent=81 // loop_header
                %s330 = sphi 0, %s334
                %p331 = scmp.ge.s32.totalorder %s330, 1
                %s335 = sphi %s320, %s320
                %s336 = sphi %s316, %s316
              $region85: #{residual_block.3} parent=81 // loop_header_branch
                %333 = sbr.rel (%p331) target = $region89
              $region86: #{residual_block.3} parent=81 // loop_body
                %v337 = vld [vmem:[%s335] sm:%s328]
                %338 = vst [vmem:[%s336] sm:%s328] %v337
                %v339 = vld [vmem:[%s335 + $0x8] sm:%s328]
                %340 = vst [vmem:[%s336 + $0x8] sm:%s328] %v339
                %v341 = vld [vmem:[%s335 + $0x10] sm:%s328]
                %342 = vst [vmem:[%s336 + $0x10] sm:%s328] %v341
                %v343 = vld [vmem:[%s335 + $0x18] sm:%s328]
                %344 = vst [vmem:[%s336 + $0x18] sm:%s328] %v343
                %v345 = vld [vmem:[%s335 + $0x20] sm:%s328]
                %346 = vst [vmem:[%s336 + $0x20] sm:%s328] %v345
                %v347 = vld [vmem:[%s335 + $0x28] sm:%s328]
                %348 = vst [vmem:[%s336 + $0x28] sm:%s328] %v347
                %v349 = vld [vmem:[%s335 + $0x30] sm:%s328]
                %350 = vst [vmem:[%s336 + $0x30] sm:%s328] %v349
                %v351 = vld [vmem:[%s335 + $0x38] sm:%s328]
                %352 = vst [vmem:[%s336 + $0x38] sm:%s328] %v351
                %v353 = vld [vmem:[%s335 + $0x100] sm:%s328]
                %354 = vst [vmem:[%s336 + $0x40] sm:%s328] %v353
                %v355 = vld [vmem:[%s335 + $0x108] sm:%s328]
                %356 = vst [vmem:[%s336 + $0x48] sm:%s328] %v355
                %v357 = vld [vmem:[%s335 + $0x110] sm:%s328]
                %358 = vst [vmem:[%s336 + $0x50] sm:%s328] %v357
                %v359 = vld [vmem:[%s335 + $0x118] sm:%s328]
                %360 = vst [vmem:[%s336 + $0x58] sm:%s328] %v359
                %v361 = vld [vmem:[%s335 + $0x120] sm:%s328]
                %362 = vst [vmem:[%s336 + $0x60] sm:%s328] %v361
                %v363 = vld [vmem:[%s335 + $0x128] sm:%s328]
                %364 = vst [vmem:[%s336 + $0x68] sm:%s328] %v363
                %v365 = vld [vmem:[%s335 + $0x130] sm:%s328]
                %366 = vst [vmem:[%s336 + $0x70] sm:%s328] %v365
                %v367 = vld [vmem:[%s335 + $0x138] sm:%s328]
                %368 = vst [vmem:[%s336 + $0x78] sm:%s328] %v367
              $region87: #{residual_block.3} parent=81 // loop_footer
                %s334 = sadd.s32 1, %s330
              $region88: #{residual_block.3} parent=81 // loop_footer_branch
                %329 = sbr.rel target = $region84
              $region89: #{residual_block.3} parent=81 // loop_exit
                _
            $region82: #{residual_block.3} parent=73 // pred_fallthru
              _
          $region74: #{residual_block.3} parent=69 // pred_fallthru
            _
          %413 = vnop
        $region70: #{residual_block.3} parent=27 // pred_fallthru
          _
        // Predicated region
        $region105: #{residual_block.3} parent=27 // pred_check
          %p414 = pneg %p102
        $region106: #{residual_block.3} parent=27 // pred_check_branch
          %416 = sbr.rel (%p414) target = $region108
        $region107: #{residual_block.3} parent=27 // pred_region
          %s417 = sand.u32 %s92, 1
          %s418 = sand.u32 %s92, 1
          %s419 = smul.addr %s418, 32
          %s420 = scalar_lea.vmem [#allocation5], %s419
          %s421 = smul.u32 %s14, 4
          %s422 = sadd.s32 %s421, 4
          %p423 = scmp.lt.s32.totalorder %s422, 15
          %s424 = scalar_select %p423, %s422, 15
          %s425 = smul.addr %s424, 2
          %s426 = smul.addr %s425, 8
          %s427 = scalar_lea.vmem %s2, %s426
          // Predicated region
          $region109: #{residual_block.3} parent=107 // pred_check
            _
          $region110: #{residual_block.3} parent=107 // pred_check_branch
            %429 = sbr.rel (0) target = $region112
          $region111: #{residual_block.3} parent=107 // pred_region
            // Predicated region
            $region113: #{residual_block.3} parent=111 // pred_check
              _
            $region114: #{residual_block.3} parent=111 // pred_check_branch
              %431 = sbr.rel (0) target = $region116
            $region115: #{residual_block.3} parent=111 // pred_region
              // Predicated region
              $region128: #{residual_block.3} parent=115 // pred_check
                _
              $region129: #{residual_block.3} parent=115 // pred_check_branch
                %453 = sbr.rel (0) target = $region131
              $region130: #{residual_block.3} parent=115 // pred_region
                loop: start=0, step=1, limit=1
                $region132: #{residual_block.3} parent=130 // loop_pre_header
                  _
                $region133: #{residual_block.3} parent=130 // loop_header
                  %s455 = sphi 0, %s459
                  %p456 = scmp.ge.s32.totalorder %s455, 1
                  %s460 = sphi %s427, %s427
                  %s461 = sphi %s420, %s420
                $region134: #{residual_block.3} parent=130 // loop_header_branch
                  %458 = sbr.rel (%p456) target = $region138
                $region135: #{residual_block.3} parent=130 // loop_body
                  %v462 = vld [vmem:[%s460] sm:$0xff]
                  %463 = vst [vmem:[%s461] sm:$0xff] %v462
                  %v464 = vld [vmem:[%s460 + $0x8] sm:$0xff]
                  %465 = vst [vmem:[%s461 + $0x8] sm:$0xff] %v464
                  %v466 = vld [vmem:[%s460 + $0x100] sm:$0xff]
                  %467 = vst [vmem:[%s461 + $0x10] sm:$0xff] %v466
                  %v468 = vld [vmem:[%s460 + $0x108] sm:$0xff]
                  %469 = vst [vmem:[%s461 + $0x18] sm:$0xff] %v468
                $region136: #{residual_block.3} parent=130 // loop_footer
                  %s459 = sadd.s32 1, %s455
                $region137: #{residual_block.3} parent=130 // loop_footer_branch
                  %454 = sbr.rel target = $region133
                $region138: #{residual_block.3} parent=130 // loop_exit
                  _
              $region131: #{residual_block.3} parent=115 // pred_fallthru
                _
              // Predicated region
              $region139: #{residual_block.3} parent=115 // pred_check
                _
              $region140: #{residual_block.3} parent=115 // pred_check_branch
                %471 = sbr.rel target = $region142
              $region141: #{residual_block.3} parent=115 // pred_region
                _
              $region142: #{residual_block.3} parent=115 // pred_fallthru
                _
            $region116: #{residual_block.3} parent=111 // pred_fallthru
              _
            // Predicated region
            $region117: #{residual_block.3} parent=111 // pred_check
              _
            $region118: #{residual_block.3} parent=111 // pred_check_branch
              %433 = sbr.rel target = $region120
            $region119: #{residual_block.3} parent=111 // pred_region
              %s435 = ssub.s32 256, 1
              loop: start=0, step=1, limit=1
              $region121: #{residual_block.3} parent=119 // loop_pre_header
                _
              $region122: #{residual_block.3} parent=119 // loop_header
                %s437 = sphi 0, %s441
                %p438 = scmp.ge.s32.totalorder %s437, 1
                %s442 = sphi %s427, %s427
                %s443 = sphi %s420, %s420
              $region123: #{residual_block.3} parent=119 // loop_header_branch
                %440 = sbr.rel (%p438) target = $region127
              $region124: #{residual_block.3} parent=119 // loop_body
                %v444 = vld [vmem:[%s442] sm:%s435]
                %445 = vst [vmem:[%s443] sm:%s435] %v444
                %v446 = vld [vmem:[%s442 + $0x8] sm:%s435]
                %447 = vst [vmem:[%s443 + $0x8] sm:%s435] %v446
                %v448 = vld [vmem:[%s442 + $0x100] sm:%s435]
                %449 = vst [vmem:[%s443 + $0x10] sm:%s435] %v448
                %v450 = vld [vmem:[%s442 + $0x108] sm:%s435]
                %451 = vst [vmem:[%s443 + $0x18] sm:%s435] %v450
              $region125: #{residual_block.3} parent=119 // loop_footer
                %s441 = sadd.s32 1, %s437
              $region126: #{residual_block.3} parent=119 // loop_footer_branch
                %436 = sbr.rel target = $region122
              $region127: #{residual_block.3} parent=119 // loop_exit
                _
            $region120: #{residual_block.3} parent=111 // pred_fallthru
              _
          $region112: #{residual_block.3} parent=107 // pred_fallthru
            _
          %472 = vnop
        $region108: #{residual_block.3} parent=27 // pred_fallthru
          _
      $region28: #{residual_block.3} parent=5 // pred_fallthru
        _
      %p473 = scmp.le.s32.totalorder 1, %s14
      %p474 = scmp.lt.s32.totalorder %s14, 5
      %p475 = pnand %p473, %p474
      %p476 = pneg %p475
      // Predicated region
      $region143: #{residual_block.3} parent=5 // pred_check
        _
      $region144: #{residual_block.3} parent=5 // pred_check_branch
        %478 = sbr.rel (%p475) target = $region146
      $region145: #{residual_block.3} parent=5 // pred_region
        %s479 = ssub.s32 %s14, 1
        %s480 = sand.u32 %s35, 1
        %s481 = sand.u32 %s35, 1
        %s482 = smul.addr %s481, 32
        %s483 = scalar_lea.vmem [#allocation3], %s482
        // Predicated region
        $region147: #{residual_block.3} parent=145 // pred_check
          %p484 = pneg %p48
        $region148: #{residual_block.3} parent=145 // pred_check_branch
          %486 = sbr.rel (%p484) target = $region150
        $region149: #{residual_block.3} parent=145 // pred_region
          _
        $region150: #{residual_block.3} parent=145 // pred_fallthru
          _
        %s487 = sand.u32 %s61, 1
        %s488 = sand.u32 %s61, 1
        %s489 = smul.addr %s488, 128
        %s490 = scalar_lea.vmem [#allocation4], %s489
        // Predicated region
        $region151: #{residual_block.3} parent=145 // pred_check
          %p491 = pneg %p74
        $region152: #{residual_block.3} parent=145 // pred_check_branch
          %493 = sbr.rel (%p491) target = $region154
        $region153: #{residual_block.3} parent=145 // pred_region
          _
        $region154: #{residual_block.3} parent=145 // pred_fallthru
          _
        %s494 = sand.u32 %s95, 1
        %s495 = sand.u32 %s95, 1
        %s496 = smul.addr %s495, 32
        %s497 = scalar_lea.vmem [#allocation5], %s496
        // Predicated region
        $region155: #{residual_block.3} parent=145 // pred_check
          %p498 = pneg %p108
        $region156: #{residual_block.3} parent=145 // pred_check_branch
          %500 = sbr.rel (%p498) target = $region158
        $region157: #{residual_block.3} parent=145 // pred_region
          _
        $region158: #{residual_block.3} parent=145 // pred_fallthru
          _
        %s501 = sand.u32 %s35, 1
        %s502 = sand.u32 %s35, 1
        %s503 = smul.addr %s502, 32
        %s504 = scalar_lea.vmem [#allocation3], %s503
        %p505 = pneg %p48
        %p506 = pneg %p45
        %s507 = sand.u32 %s61, 1
        %s508 = sand.u32 %s61, 1
        %s509 = smul.addr %s508, 128
        %s510 = scalar_lea.vmem [#allocation4], %s509
        %p511 = pneg %p74
        %p512 = pneg %p71
        %s513 = sand.u32 %s95, 1
        %s514 = sand.u32 %s95, 1
        %s515 = smul.addr %s514, 32
        %s516 = scalar_lea.vmem [#allocation5], %s515
        %p517 = pneg %p108
        %p518 = pneg %p105
        %p519 = pneg %p129
        %p520 = pneg %p126
        %p521 = pneg %p150
        %p522 = pneg %p147
        %p523 = pneg %p171
        %p524 = pneg %p168
        %p525 = pneg %p197
        %p526 = pneg %p194
        %s527 = sand.u32 %s184, 1
        %s528 = sand.u32 %s184, 1
        %s529 = smul.addr %s528, 128
        %s530 = scalar_lea.vmem [#allocation6], %s529
        %p531 = pneg %p223
        %p532 = pneg %p220
        %p533 = scmp.lt.s32.totalorder %s19, 3
        %s534 = scalar_select %p533, %s19, 3
        %s535 = smul.addr %s534, 2
        %s536 = scalar_lea.vmem %s7, %s535
        %s537 = smul.u32 %s19, 4
        %s538 = ssub.s32 %s537, 1
        %p539 = scmp.gt.s32.totalorder %s538, 0
        %s540 = scalar_select %p539, %s538, 0
        %s541 = smul.u32 4, %s19
        %s542 = smul.u32 %s19, 4
        %s543 = sadd.s32 %s542, 4
        %p544 = scmp.lt.s32.totalorder %s543, 15
        %s545 = scalar_select %p544, %s543, 15
        %s546 = smul.u32 4, %s19
        %p547 = scmp.lt.s32.totalorder %s19, 3
        %s548 = scalar_select %p547, %s19, 3
        %s549 = smul.addr %s548, 2
        %s550 = scalar_lea.vmem %s7, %s549
        %v551 = vld [vmem:[%s483] sm:$0xff]
        %v552 = vld [vmem:[%s483 + $0x8] sm:$0xff]
        %v553 = vld [vmem:[%s483 + $0x10] sm:$0xff]
        %v554 = vld [vmem:[%s483 + $0x18] sm:$0xff]
        %v555 = vld [vmem:[%s490] sm:$0xff]
        %v556 = vld [vmem:[%s490 + $0x8] sm:$0xff]
        %v557 = vld [vmem:[%s490 + $0x10] sm:$0xff]
        %v558 = vld [vmem:[%s490 + $0x18] sm:$0xff]
        %v559 = vld [vmem:[%s490 + $0x20] sm:$0xff]
        %v560 = vld [vmem:[%s490 + $0x28] sm:$0xff]
        %v561 = vld [vmem:[%s490 + $0x30] sm:$0xff]
        %v562 = vld [vmem:[%s490 + $0x38] sm:$0xff]
        %v563 = vld [vmem:[%s490 + $0x40] sm:$0xff]
        %v564 = vld [vmem:[%s490 + $0x48] sm:$0xff]
        %v565 = vld [vmem:[%s490 + $0x50] sm:$0xff]
        %v566 = vld [vmem:[%s490 + $0x58] sm:$0xff]
        %v567 = vld [vmem:[%s490 + $0x60] sm:$0xff]
        %v568 = vld [vmem:[%s490 + $0x68] sm:$0xff]
        %v569 = vld [vmem:[%s490 + $0x70] sm:$0xff]
        %v570 = vld [vmem:[%s490 + $0x78] sm:$0xff]
        %v571 = vld [vmem:[%s497] sm:$0xff]
        %v572 = vld [vmem:[%s497 + $0x8] sm:$0xff]
        %v573 = vld [vmem:[%s497 + $0x10] sm:$0xff]
        %v574 = vld [vmem:[%s497 + $0x18] sm:$0xff]
        %p575 = scmp.eq.s32.totalorder %s19, 0
        %s576 = scalar_select %p575, 0.0, 1.0
        %v577 = vstv %s576
        %v578 = vmul.f32 %v551, %v577
        %v579 = vmul.f32 %v552, %v577
        %v580 = vmul.f32 %v553, %v577
        %v581 = vmul.f32 %v554, %v577
        %p582 = scmp.eq.s32.totalorder %s19, 3
        %s583 = scalar_select %p582, 0.0, 1.0
        %v584 = vstv %s583
        %v585 = vmul.f32 %v571, %v584
        %v586 = vmul.f32 %v572, %v584
        %v587 = vmul.f32 %v573, %v584
        %v588 = vmul.f32 %v574, %v584
        %vm589 = vcmask 57344
        %590 = vst.msk [vmem:[#allocation2] sm:$0x1] %vm589, 0.0
        %591 = vst.msk [vmem:[#allocation2 + $0x18] sm:$0x1] %vm589, 0.0
        %592 = vst.msk [vmem:[#allocation2 + $0x30] sm:$0x1] %vm589, 0.0
        %593 = vst.msk [vmem:[#allocation2 + $0x48] sm:$0x1] %vm589, 0.0
        %594 = vst.msk [vmem:[#allocation2 + $0x60] sm:$0x1] %vm589, 0.0
        %595 = vst.msk [vmem:[#allocation2 + $0x78] sm:$0x1] %vm589, 0.0
        %596 = vst.msk [vmem:[#allocation2 + $0x90] sm:$0x1] %vm589, 0.0
        %597 = vst.msk [vmem:[#allocation2 + $0xa8] sm:$0x1] %vm589, 0.0
        %598 = vst.msk [vmem:[#allocation2 + $0xc0] sm:$0x1] %vm589, 0.0
        %599 = vst.msk [vmem:[#allocation2 + $0xd8] sm:$0x1] %vm589, 0.0
        %600 = vst.msk [vmem:[#allocation2 + $0xf0] sm:$0x1] %vm589, 0.0
        %601 = vst.msk [vmem:[#allocation2 + $0x108] sm:$0x1] %vm589, 0.0
        %602 = vst.msk [vmem:[#allocation2 + $0x11] sm:$0x1] %vm589, 0.0
        %603 = vst.msk [vmem:[#allocation2 + $0x29] sm:$0x1] %vm589, 0.0
        %604 = vst.msk [vmem:[#allocation2 + $0x41] sm:$0x1] %vm589, 0.0
        %605 = vst.msk [vmem:[#allocation2 + $0x59] sm:$0x1] %vm589, 0.0
        %606 = vst.msk [vmem:[#allocation2 + $0x71] sm:$0x1] %vm589, 0.0
        %607 = vst.msk [vmem:[#allocation2 + $0x89] sm:$0x1] %vm589, 0.0
        %608 = vst.msk [vmem:[#allocation2 + $0xa1] sm:$0x1] %vm589, 0.0
        %609 = vst.msk [vmem:[#allocation2 + $0xb9] sm:$0x1] %vm589, 0.0
        %610 = vst.msk [vmem:[#allocation2 + $0xd1] sm:$0x1] %vm589, 0.0
        %611 = vst.msk [vmem:[#allocation2 + $0xe9] sm:$0x1] %vm589, 0.0
        %612 = vst.msk [vmem:[#allocation2 + $0x101] sm:$0x1] %vm589, 0.0
        %613 = vst.msk [vmem:[#allocation2 + $0x119] sm:$0x1] %vm589, 0.0
        %vm614 = vcmask 64512
        %615 = vst.msk [vmem:[#allocation2 + $0x1] sm:$0xff] %vm614, %v578
        %616 = vst.msk [vmem:[#allocation2 + $0x9] sm:$0xff] %vm614, %v579
        %617 = vst.msk [vmem:[#allocation2 + $0x91] sm:$0xff] %vm614, %v580
        %618 = vst.msk [vmem:[#allocation2 + $0x99] sm:$0xff] %vm614, %v581
        %s619 = scalar_lea.vmem [#allocation2], 24
        %620 = vst.msk [vmem:[%s619 + $0x1] sm:$0xff] %vm614, %v555
        %621 = vst.msk [vmem:[%s619 + $0x9] sm:$0xff] %vm614, %v556
        %622 = vst.msk [vmem:[%s619 + $0x19] sm:$0xff] %vm614, %v557
        %623 = vst.msk [vmem:[%s619 + $0x21] sm:$0xff] %vm614, %v558
        %624 = vst.msk [vmem:[%s619 + $0x31] sm:$0xff] %vm614, %v559
        %625 = vst.msk [vmem:[%s619 + $0x39] sm:$0xff] %vm614, %v560
        %626 = vst.msk [vmem:[%s619 + $0x49] sm:$0xff] %vm614, %v561
        %627 = vst.msk [vmem:[%s619 + $0x51] sm:$0xff] %vm614, %v562
        %628 = vst.msk [vmem:[%s619 + $0x91] sm:$0xff] %vm614, %v563
        %629 = vst.msk [vmem:[%s619 + $0x99] sm:$0xff] %vm614, %v564
        %630 = vst.msk [vmem:[%s619 + $0xa9] sm:$0xff] %vm614, %v565
        %631 = vst.msk [vmem:[%s619 + $0xb1] sm:$0xff] %vm614, %v566
        %632 = vst.msk [vmem:[%s619 + $0xc1] sm:$0xff] %vm614, %v567
        %633 = vst.msk [vmem:[%s619 + $0xc9] sm:$0xff] %vm614, %v568
        %634 = vst.msk [vmem:[%s619 + $0xd9] sm:$0xff] %vm614, %v569
        %635 = vst.msk [vmem:[%s619 + $0xe1] sm:$0xff] %vm614, %v570
        %s636 = scalar_lea.vmem [#allocation2], 120
        %637 = vst.msk [vmem:[%s636 + $0x1] sm:$0xff] %vm614, %v585
        %638 = vst.msk [vmem:[%s636 + $0x9] sm:$0xff] %vm614, %v586
        %639 = vst.msk [vmem:[%s636 + $0x91] sm:$0xff] %vm614, %v587
        %640 = vst.msk [vmem:[%s636 + $0x99] sm:$0xff] %vm614, %v588
        %v641 = vld [vmem:[#allocation2] sm:$0xff]
        %v642 = vld [vmem:[#allocation2 + $0x8] sm:$0xff]
        %v643 = vld [vmem:[#allocation2 + $0x18] sm:$0xff]
        %v644 = vld [vmem:[#allocation2 + $0x20] sm:$0xff]
        %v645 = vld [vmem:[#allocation2 + $0x30] sm:$0xff]
        %v646 = vld [vmem:[#allocation2 + $0x38] sm:$0xff]
        %v647 = vld [vmem:[#allocation2 + $0x48] sm:$0xff]
        %v648 = vld [vmem:[#allocation2 + $0x50] sm:$0xff]
        %v649 = vld [vmem:[#allocation2 + $0x90] sm:$0xff]
        %v650 = vld [vmem:[#allocation2 + $0x98] sm:$0xff]
        %v651 = vld [vmem:[#allocation2 + $0xa8] sm:$0xff]
        %v652 = vld [vmem:[#allocation2 + $0xb0] sm:$0xff]
        %v653 = vld [vmem:[#allocation2 + $0xc0] sm:$0xff]
        %v654 = vld [vmem:[#allocation2 + $0xc8] sm:$0xff]
        %v655 = vld [vmem:[#allocation2 + $0xd8] sm:$0xff]
        %v656 = vld [vmem:[#allocation2 + $0xe0] sm:$0xff]
        %v657 = vld [vmem:[%s3] sm:$0xff]
        %v658 = vld [vmem:[#allocation2 + $0x1] sm:$0xff]
        %v659 = vld [vmem:[#allocation2 + $0x9] sm:$0xff]
        %v660 = vld [vmem:[#allocation2 + $0x19] sm:$0xff]
        %v661 = vld [vmem:[#allocation2 + $0x21] sm:$0xff]
        %v662 = vld [vmem:[#allocation2 + $0x31] sm:$0xff]
        %v663 = vld [vmem:[#allocation2 + $0x39] sm:$0xff]
        %v664 = vld [vmem:[#allocation2 + $0x49] sm:$0xff]
        %v665 = vld [vmem:[#allocation2 + $0x51] sm:$0xff]
        %v666 = vld [vmem:[#allocation2 + $0x91] sm:$0xff]
        %v667 = vld [vmem:[#allocation2 + $0x99] sm:$0xff]
        %v668 = vld [vmem:[#allocation2 + $0xa9] sm:$0xff]
        %v669 = vld [vmem:[#allocation2 + $0xb1] sm:$0xff]
        %v670 = vld [vmem:[#allocation2 + $0xc1] sm:$0xff]
        %v671 = vld [vmem:[#allocation2 + $0xc9] sm:$0xff]
        %v672 = vld [vmem:[#allocation2 + $0xd9] sm:$0xff]
        %v673 = vld [vmem:[#allocation2 + $0xe1] sm:$0xff]
        %s674 = scalar_lea.vmem %s3, 8
        %v675 = vld [vmem:[%s674] sm:$0xff]
        %v677 = vsel %vm614, %v658, 0
        %v680 = vsel %vm614, %v659, 0
        %v683 = vsel %vm614, %v660, 0
        %v686 = vsel %vm614, %v661, 0
        %v689 = vsel %vm614, %v662, 0
        %v692 = vsel %vm614, %v663, 0
        %v695 = vsel %vm614, %v664, 0
        %v698 = vsel %vm614, %v665, 0
        %v701 = vsel %vm614, %v666, 0
        %v704 = vsel %vm614, %v667, 0
        %v707 = vsel %vm614, %v668, 0
        %v710 = vsel %vm614, %v669, 0
        %v713 = vsel %vm614, %v670, 0
        %v716 = vsel %vm614, %v671, 0
        %v719 = vsel %vm614, %v672, 0
        %v722 = vsel %vm614, %v673, 0
        %724 = vmatpush.msra.mxu0 0.0
        %725 = vmatpush.msra.mxu0 0.0
        %726 = vmatpush.msra.mxu0 0.0
        %727 = vmatpush.msra.mxu0 0.0
        %728 = vmatpush.msra.mxu0 0.0
        %729 = vmatpush.msra.mxu0 0.0
        %730 = vmatpush.msra.mxu0 0.0
        %731 = vmatpush.msra.mxu0 0.0
        %732 = vmatpush.msra.mxu0 0.0
        %733 = vmatpush.msra.mxu0 0.0
        %734 = vmatpush.msra.mxu0 0.0
        %735 = vmatpush.msra.mxu0 0.0
        %736 = vmatpush.msra.mxu0 0.0
        %737 = vmatpush.msra.mxu0 0.0
        %738 = vmatpush.msra.mxu0 0.0
        %739 = vmatpush.msra.mxu0 %v675
        %740 = vmatmul.f32.gmra.mxu0 %v677
        %v741 = vpop.f32.mrf.mxu0
        %v742 = vadd.f32 0.0, %v741
        %743 = vmatmul.f32.gmra.mxu0 %v680
        %v744 = vpop.f32.mrf.mxu0
        %v745 = vadd.f32 0.0, %v744
        %746 = vmatmul.f32.gmra.mxu0 %v683
        %v747 = vpop.f32.mrf.mxu0
        %v748 = vadd.f32 0.0, %v747
        %749 = vmatmul.f32.gmra.mxu0 %v686
        %v750 = vpop.f32.mrf.mxu0
        %v751 = vadd.f32 0.0, %v750
        %752 = vmatmul.f32.gmra.mxu0 %v689
        %v753 = vpop.f32.mrf.mxu0
        %v754 = vadd.f32 0.0, %v753
        %755 = vmatmul.f32.gmra.mxu0 %v692
        %v756 = vpop.f32.mrf.mxu0
        %v757 = vadd.f32 0.0, %v756
        %758 = vmatmul.f32.gmra.mxu0 %v695
        %v759 = vpop.f32.mrf.mxu0
        %v760 = vadd.f32 0.0, %v759
        %761 = vmatmul.f32.gmra.mxu0 %v698
        %v762 = vpop.f32.mrf.mxu0
        %v763 = vadd.f32 0.0, %v762
        %764 = vmatmul.f32.gmra.mxu0 %v701
        %v765 = vpop.f32.mrf.mxu0
        %v766 = vadd.f32 0.0, %v765
        %767 = vmatmul.f32.gmra.mxu0 %v704
        %v768 = vpop.f32.mrf.mxu0
        %v769 = vadd.f32 0.0, %v768
        %770 = vmatmul.f32.gmra.mxu0 %v707
        %v771 = vpop.f32.mrf.mxu0
        %v772 = vadd.f32 0.0, %v771
        %773 = vmatmul.f32.gmra.mxu0 %v710
        %v774 = vpop.f32.mrf.mxu0
        %v775 = vadd.f32 0.0, %v774
        %776 = vmatmul.f32.gmra.mxu0 %v713
        %v777 = vpop.f32.mrf.mxu0
        %v778 = vadd.f32 0.0, %v777
        %779 = vmatmul.f32.gmra.mxu0 %v716
        %v780 = vpop.f32.mrf.mxu0
        %v781 = vadd.f32 0.0, %v780
        %782 = vmatmul.f32.gmra.mxu0 %v719
        %v783 = vpop.f32.mrf.mxu0
        %v784 = vadd.f32 0.0, %v783
        %785 = vmatmul.f32.gmra.mxu0 %v722
        %v786 = vpop.f32.mrf.mxu0
        %v787 = vadd.f32 0.0, %v786
        %788 = vdwg.mxu0
        %v790 = vsel %vm614, %v641, 0
        %v793 = vsel %vm614, %v642, 0
        %v796 = vsel %vm614, %v643, 0
        %v799 = vsel %vm614, %v644, 0
        %v802 = vsel %vm614, %v645, 0
        %v805 = vsel %vm614, %v646, 0
        %v808 = vsel %vm614, %v647, 0
        %v811 = vsel %vm614, %v648, 0
        %v814 = vsel %vm614, %v649, 0
        %v817 = vsel %vm614, %v650, 0
        %v820 = vsel %vm614, %v651, 0
        %v823 = vsel %vm614, %v652, 0
        %v826 = vsel %vm614, %v653, 0
        %v829 = vsel %vm614, %v654, 0
        %v832 = vsel %vm614, %v655, 0
        %v835 = vsel %vm614, %v656, 0
        %837 = vmatpush.msra.mxu0 0.0
        %838 = vmatpush.msra.mxu0 0.0
        %839 = vmatpush.msra.mxu0 0.0
        %840 = vmatpush.msra.mxu0 0.0
        %841 = vmatpush.msra.mxu0 0.0
        %842 = vmatpush.msra.mxu0 0.0
        %843 = vmatpush.msra.mxu0 0.0
        %844 = vmatpush.msra.mxu0 0.0
        %845 = vmatpush.msra.mxu0 0.0
        %846 = vmatpush.msra.mxu0 0.0
        %847 = vmatpush.msra.mxu0 0.0
        %848 = vmatpush.msra.mxu0 0.0
        %849 = vmatpush.msra.mxu0 0.0
        %850 = vmatpush.msra.mxu0 0.0
        %851 = vmatpush.msra.mxu0 0.0
        %852 = vmatpush.msra.mxu0 %v657
        %853 = vmatmul.f32.gmra.mxu0 %v790
        %v854 = vpop.f32.mrf.mxu0
        %v855 = vadd.f32 %v742, %v854
        %856 = vmatmul.f32.gmra.mxu0 %v793
        %v857 = vpop.f32.mrf.mxu0
        %v858 = vadd.f32 %v745, %v857
        %859 = vmatmul.f32.gmra.mxu0 %v796
        %v860 = vpop.f32.mrf.mxu0
        %v861 = vadd.f32 %v748, %v860
        %862 = vmatmul.f32.gmra.mxu0 %v799
        %v863 = vpop.f32.mrf.mxu0
        %v864 = vadd.f32 %v751, %v863
        %865 = vmatmul.f32.gmra.mxu0 %v802
        %v866 = vpop.f32.mrf.mxu0
        %v867 = vadd.f32 %v754, %v866
        %868 = vmatmul.f32.gmra.mxu0 %v805
        %v869 = vpop.f32.mrf.mxu0
        %v870 = vadd.f32 %v757, %v869
        %871 = vmatmul.f32.gmra.mxu0 %v808
        %v872 = vpop.f32.mrf.mxu0
        %v873 = vadd.f32 %v760, %v872
        %874 = vmatmul.f32.gmra.mxu0 %v811
        %v875 = vpop.f32.mrf.mxu0
        %v876 = vadd.f32 %v763, %v875
        %877 = vmatmul.f32.gmra.mxu0 %v814
        %v878 = vpop.f32.mrf.mxu0
        %v879 = vadd.f32 %v766, %v878
        %880 = vmatmul.f32.gmra.mxu0 %v817
        %v881 = vpop.f32.mrf.mxu0
        %v882 = vadd.f32 %v769, %v881
        %883 = vmatmul.f32.gmra.mxu0 %v820
        %v884 = vpop.f32.mrf.mxu0
        %v885 = vadd.f32 %v772, %v884
        %886 = vmatmul.f32.gmra.mxu0 %v823
        %v887 = vpop.f32.mrf.mxu0
        %v888 = vadd.f32 %v775, %v887
        %889 = vmatmul.f32.gmra.mxu0 %v826
        %v890 = vpop.f32.mrf.mxu0
        %v891 = vadd.f32 %v778, %v890
        %892 = vmatmul.f32.gmra.mxu0 %v829
        %v893 = vpop.f32.mrf.mxu0
        %v894 = vadd.f32 %v781, %v893
        %895 = vmatmul.f32.gmra.mxu0 %v832
        %v896 = vpop.f32.mrf.mxu0
        %v897 = vadd.f32 %v784, %v896
        %898 = vmatmul.f32.gmra.mxu0 %v835
        %v899 = vpop.f32.mrf.mxu0
        %v900 = vadd.f32 %v787, %v899
        %901 = vdwg.mxu0
        %v902 = vld [vmem:[#allocation2 + $0x2] sm:$0xff]
        %v903 = vld [vmem:[#allocation2 + $0xa] sm:$0xff]
        %v904 = vld [vmem:[#allocation2 + $0x1a] sm:$0xff]
        %v905 = vld [vmem:[#allocation2 + $0x22] sm:$0xff]
        %v906 = vld [vmem:[#allocation2 + $0x32] sm:$0xff]
        %v907 = vld [vmem:[#allocation2 + $0x3a] sm:$0xff]
        %v908 = vld [vmem:[#allocation2 + $0x4a] sm:$0xff]
        %v909 = vld [vmem:[#allocation2 + $0x52] sm:$0xff]
        %v910 = vld [vmem:[#allocation2 + $0x92] sm:$0xff]
        %v911 = vld [vmem:[#allocation2 + $0x9a] sm:$0xff]
        %v912 = vld [vmem:[#allocation2 + $0xaa] sm:$0xff]
        %v913 = vld [vmem:[#allocation2 + $0xb2] sm:$0xff]
        %v914 = vld [vmem:[#allocation2 + $0xc2] sm:$0xff]
        %v915 = vld [vmem:[#allocation2 + $0xca] sm:$0xff]
        %v916 = vld [vmem:[#allocation2 + $0xda] sm:$0xff]
        %v917 = vld [vmem:[#allocation2 + $0xe2] sm:$0xff]
        %s918 = scalar_lea.vmem %s3, 16
        %v919 = vld [vmem:[%s918] sm:$0xff]
        %v921 = vsel %vm614, %v902, 0
        %v924 = vsel %vm614, %v903, 0
        %v927 = vsel %vm614, %v904, 0
        %v930 = vsel %vm614, %v905, 0
        %v933 = vsel %vm614, %v906, 0
        %v936 = vsel %vm614, %v907, 0
        %v939 = vsel %vm614, %v908, 0
        %v942 = vsel %vm614, %v909, 0
        %v945 = vsel %vm614, %v910, 0
        %v948 = vsel %vm614, %v911, 0
        %v951 = vsel %vm614, %v912, 0
        %v954 = vsel %vm614, %v913, 0
        %v957 = vsel %vm614, %v914, 0
        %v960 = vsel %vm614, %v915, 0
        %v963 = vsel %vm614, %v916, 0
        %v966 = vsel %vm614, %v917, 0
        %968 = vmatpush.msra.mxu0 0.0
        %969 = vmatpush.msra.mxu0 0.0
        %970 = vmatpush.msra.mxu0 0.0
        %971 = vmatpush.msra.mxu0 0.0
        %972 = vmatpush.msra.mxu0 0.0
        %973 = vmatpush.msra.mxu0 0.0
        %974 = vmatpush.msra.mxu0 0.0
        %975 = vmatpush.msra.mxu0 0.0
        %976 = vmatpush.msra.mxu0 0.0
        %977 = vmatpush.msra.mxu0 0.0
        %978 = vmatpush.msra.mxu0 0.0
        %979 = vmatpush.msra.mxu0 0.0
        %980 = vmatpush.msra.mxu0 0.0
        %981 = vmatpush.msra.mxu0 0.0
        %982 = vmatpush.msra.mxu0 0.0
        %983 = vmatpush.msra.mxu0 %v919
        %984 = vmatmul.f32.gmra.mxu0 %v921
        %v985 = vpop.f32.mrf.mxu0
        %v986 = vadd.f32 0.0, %v985
        %987 = vmatmul.f32.gmra.mxu0 %v924
        %v988 = vpop.f32.mrf.mxu0
        %v989 = vadd.f32 0.0, %v988
        %990 = vmatmul.f32.gmra.mxu0 %v927
        %v991 = vpop.f32.mrf.mxu0
        %v992 = vadd.f32 0.0, %v991
        %993 = vmatmul.f32.gmra.mxu0 %v930
        %v994 = vpop.f32.mrf.mxu0
        %v995 = vadd.f32 0.0, %v994
        %996 = vmatmul.f32.gmra.mxu0 %v933
        %v997 = vpop.f32.mrf.mxu0
        %v998 = vadd.f32 0.0, %v997
        %999 = vmatmul.f32.gmra.mxu0 %v936
        %v1000 = vpop.f32.mrf.mxu0
        %v1001 = vadd.f32 0.0, %v1000
        %1002 = vmatmul.f32.gmra.mxu0 %v939
        %v1003 = vpop.f32.mrf.mxu0
        %v1004 = vadd.f32 0.0, %v1003
        %1005 = vmatmul.f32.gmra.mxu0 %v942
        %v1006 = vpop.f32.mrf.mxu0
        %v1007 = vadd.f32 0.0, %v1006
        %1008 = vmatmul.f32.gmra.mxu0 %v945
        %v1009 = vpop.f32.mrf.mxu0
        %v1010 = vadd.f32 0.0, %v1009
        %1011 = vmatmul.f32.gmra.mxu0 %v948
        %v1012 = vpop.f32.mrf.mxu0
        %v1013 = vadd.f32 0.0, %v1012
        %1014 = vmatmul.f32.gmra.mxu0 %v951
        %v1015 = vpop.f32.mrf.mxu0
        %v1016 = vadd.f32 0.0, %v1015
        %1017 = vmatmul.f32.gmra.mxu0 %v954
        %v1018 = vpop.f32.mrf.mxu0
        %v1019 = vadd.f32 0.0, %v1018
        %1020 = vmatmul.f32.gmra.mxu0 %v957
        %v1021 = vpop.f32.mrf.mxu0
        %v1022 = vadd.f32 0.0, %v1021
        %1023 = vmatmul.f32.gmra.mxu0 %v960
        %v1024 = vpop.f32.mrf.mxu0
        %v1025 = vadd.f32 0.0, %v1024
        %1026 = vmatmul.f32.gmra.mxu0 %v963
        %v1027 = vpop.f32.mrf.mxu0
        %v1028 = vadd.f32 0.0, %v1027
        %1029 = vmatmul.f32.gmra.mxu0 %v966
        %v1030 = vpop.f32.mrf.mxu0
        %v1031 = vadd.f32 0.0, %v1030
        %1032 = vdwg.mxu0
        %v1033 = vadd.f32 %v855, %v986
        %v1034 = vadd.f32 %v858, %v989
        %v1035 = vadd.f32 %v861, %v992
        %v1036 = vadd.f32 %v864, %v995
        %v1037 = vadd.f32 %v867, %v998
        %v1038 = vadd.f32 %v870, %v1001
        %v1039 = vadd.f32 %v873, %v1004
        %v1040 = vadd.f32 %v876, %v1007
        %v1041 = vadd.f32 %v879, %v1010
        %v1042 = vadd.f32 %v882, %v1013
        %v1043 = vadd.f32 %v885, %v1016
        %v1044 = vadd.f32 %v888, %v1019
        %v1045 = vadd.f32 %v891, %v1022
        %v1046 = vadd.f32 %v894, %v1025
        %v1047 = vadd.f32 %v897, %v1028
        %v1048 = vadd.f32 %v900, %v1031
        %v1049 = vld [vmem:[%s619] sm:$0xff]
        %v1050 = vld [vmem:[%s619 + $0x8] sm:$0xff]
        %v1051 = vld [vmem:[%s619 + $0x18] sm:$0xff]
        %v1052 = vld [vmem:[%s619 + $0x20] sm:$0xff]
        %v1053 = vld [vmem:[%s619 + $0x30] sm:$0xff]
        %v1054 = vld [vmem:[%s619 + $0x38] sm:$0xff]
        %v1055 = vld [vmem:[%s619 + $0x48] sm:$0xff]
        %v1056 = vld [vmem:[%s619 + $0x50] sm:$0xff]
        %v1057 = vld [vmem:[%s619 + $0x90] sm:$0xff]
        %v1058 = vld [vmem:[%s619 + $0x98] sm:$0xff]
        %v1059 = vld [vmem:[%s619 + $0xa8] sm:$0xff]
        %v1060 = vld [vmem:[%s619 + $0xb0] sm:$0xff]
        %v1061 = vld [vmem:[%s619 + $0xc0] sm:$0xff]
        %v1062 = vld [vmem:[%s619 + $0xc8] sm:$0xff]
        %v1063 = vld [vmem:[%s619 + $0xd8] sm:$0xff]
        %v1064 = vld [vmem:[%s619 + $0xe0] sm:$0xff]
        %s1065 = scalar_lea.vmem %s3, 24
        %v1066 = vld [vmem:[%s1065] sm:$0xff]
        %v1068 = vsel %vm614, %v1049, 0
        %v1071 = vsel %vm614, %v1050, 0
        %v1074 = vsel %vm614, %v1051, 0
        %v1077 = vsel %vm614, %v1052, 0
        %v1080 = vsel %vm614, %v1053, 0
        %v1083 = vsel %vm614, %v1054, 0
        %v1086 = vsel %vm614, %v1055, 0
        %v1089 = vsel %vm614, %v1056, 0
        %v1092 = vsel %vm614, %v1057, 0
        %v1095 = vsel %vm614, %v1058, 0
        %v1098 = vsel %vm614, %v1059, 0
        %v1101 = vsel %vm614, %v1060, 0
        %v1104 = vsel %vm614, %v1061, 0
        %v1107 = vsel %vm614, %v1062, 0
        %v1110 = vsel %vm614, %v1063, 0
        %v1113 = vsel %vm614, %v1064, 0
        %1115 = vmatpush.msra.mxu0 0.0
        %1116 = vmatpush.msra.mxu0 0.0
        %1117 = vmatpush.msra.mxu0 0.0
        %1118 = vmatpush.msra.mxu0 0.0
        %1119 = vmatpush.msra.mxu0 0.0
        %1120 = vmatpush.msra.mxu0 0.0
        %1121 = vmatpush.msra.mxu0 0.0
        %1122 = vmatpush.msra.mxu0 0.0
        %1123 = vmatpush.msra.mxu0 0.0
        %1124 = vmatpush.msra.mxu0 0.0
        %1125 = vmatpush.msra.mxu0 0.0
        %1126 = vmatpush.msra.mxu0 0.0
        %1127 = vmatpush.msra.mxu0 0.0
        %1128 = vmatpush.msra.mxu0 0.0
        %1129 = vmatpush.msra.mxu0 0.0
        %1130 = vmatpush.msra.mxu0 %v1066
        %1131 = vmatmul.f32.gmra.mxu0 %v1068
        %v1132 = vpop.f32.mrf.mxu0
        %v1133 = vadd.f32 0.0, %v1132
        %1134 = vmatmul.f32.gmra.mxu0 %v1071
        %v1135 = vpop.f32.mrf.mxu0
        %v1136 = vadd.f32 0.0, %v1135
        %1137 = vmatmul.f32.gmra.mxu0 %v1074
        %v1138 = vpop.f32.mrf.mxu0
        %v1139 = vadd.f32 0.0, %v1138
        %1140 = vmatmul.f32.gmra.mxu0 %v1077
        %v1141 = vpop.f32.mrf.mxu0
        %v1142 = vadd.f32 0.0, %v1141
        %1143 = vmatmul.f32.gmra.mxu0 %v1080
        %v1144 = vpop.f32.mrf.mxu0
        %v1145 = vadd.f32 0.0, %v1144
        %1146 = vmatmul.f32.gmra.mxu0 %v1083
        %v1147 = vpop.f32.mrf.mxu0
        %v1148 = vadd.f32 0.0, %v1147
        %1149 = vmatmul.f32.gmra.mxu0 %v1086
        %v1150 = vpop.f32.mrf.mxu0
        %v1151 = vadd.f32 0.0, %v1150
        %1152 = vmatmul.f32.gmra.mxu0 %v1089
        %v1153 = vpop.f32.mrf.mxu0
        %v1154 = vadd.f32 0.0, %v1153
        %1155 = vmatmul.f32.gmra.mxu0 %v1092
        %v1156 = vpop.f32.mrf.mxu0
        %v1157 = vadd.f32 0.0, %v1156
        %1158 = vmatmul.f32.gmra.mxu0 %v1095
        %v1159 = vpop.f32.mrf.mxu0
        %v1160 = vadd.f32 0.0, %v1159
        %1161 = vmatmul.f32.gmra.mxu0 %v1098
        %v1162 = vpop.f32.mrf.mxu0
        %v1163 = vadd.f32 0.0, %v1162
        %1164 = vmatmul.f32.gmra.mxu0 %v1101
        %v1165 = vpop.f32.mrf.mxu0
        %v1166 = vadd.f32 0.0, %v1165
        %1167 = vmatmul.f32.gmra.mxu0 %v1104
        %v1168 = vpop.f32.mrf.mxu0
        %v1169 = vadd.f32 0.0, %v1168
        %1170 = vmatmul.f32.gmra.mxu0 %v1107
        %v1171 = vpop.f32.mrf.mxu0
        %v1172 = vadd.f32 0.0, %v1171
        %1173 = vmatmul.f32.gmra.mxu0 %v1110
        %v1174 = vpop.f32.mrf.mxu0
        %v1175 = vadd.f32 0.0, %v1174
        %1176 = vmatmul.f32.gmra.mxu0 %v1113
        %v1177 = vpop.f32.mrf.mxu0
        %v1178 = vadd.f32 0.0, %v1177
        %1179 = vdwg.mxu0
        %v1180 = vadd.f32 %v1033, %v1133
        %v1181 = vadd.f32 %v1034, %v1136
        %v1182 = vadd.f32 %v1035, %v1139
        %v1183 = vadd.f32 %v1036, %v1142
        %v1184 = vadd.f32 %v1037, %v1145
        %v1185 = vadd.f32 %v1038, %v1148
        %v1186 = vadd.f32 %v1039, %v1151
        %v1187 = vadd.f32 %v1040, %v1154
        %v1188 = vadd.f32 %v1041, %v1157
        %v1189 = vadd.f32 %v1042, %v1160
        %v1190 = vadd.f32 %v1043, %v1163
        %v1191 = vadd.f32 %v1044, %v1166
        %v1192 = vadd.f32 %v1045, %v1169
        %v1193 = vadd.f32 %v1046, %v1172
        %v1194 = vadd.f32 %v1047, %v1175
        %v1195 = vadd.f32 %v1048, %v1178
        %v1196 = vld [vmem:[%s619 + $0x1] sm:$0xff]
        %v1197 = vld [vmem:[%s619 + $0x9] sm:$0xff]
        %v1198 = vld [vmem:[%s619 + $0x19] sm:$0xff]
        %v1199 = vld [vmem:[%s619 + $0x21] sm:$0xff]
        %v1200 = vld [vmem:[%s619 + $0x31] sm:$0xff]
        %v1201 = vld [vmem:[%s619 + $0x39] sm:$0xff]
        %v1202 = vld [vmem:[%s619 + $0x49] sm:$0xff]
        %v1203 = vld [vmem:[%s619 + $0x51] sm:$0xff]
        %v1204 = vld [vmem:[%s619 + $0x91] sm:$0xff]
        %v1205 = vld [vmem:[%s619 + $0x99] sm:$0xff]
        %v1206 = vld [vmem:[%s619 + $0xa9] sm:$0xff]
        %v1207 = vld [vmem:[%s619 + $0xb1] sm:$0xff]
        %v1208 = vld [vmem:[%s619 + $0xc1] sm:$0xff]
        %v1209 = vld [vmem:[%s619 + $0xc9] sm:$0xff]
        %v1210 = vld [vmem:[%s619 + $0xd9] sm:$0xff]
        %v1211 = vld [vmem:[%s619 + $0xe1] sm:$0xff]
        %s1212 = scalar_lea.vmem %s3, 32
        %v1213 = vld [vmem:[%s1212] sm:$0xff]
        %v1215 = vsel %vm614, %v1196, 0
        %v1218 = vsel %vm614, %v1197, 0
        %v1221 = vsel %vm614, %v1198, 0
        %v1224 = vsel %vm614, %v1199, 0
        %v1227 = vsel %vm614, %v1200, 0
        %v1230 = vsel %vm614, %v1201, 0
        %v1233 = vsel %vm614, %v1202, 0
        %v1236 = vsel %vm614, %v1203, 0
        %v1239 = vsel %vm614, %v1204, 0
        %v1242 = vsel %vm614, %v1205, 0
        %v1245 = vsel %vm614, %v1206, 0
        %v1248 = vsel %vm614, %v1207, 0
        %v1251 = vsel %vm614, %v1208, 0
        %v1254 = vsel %vm614, %v1209, 0
        %v1257 = vsel %vm614, %v1210, 0
        %v1260 = vsel %vm614, %v1211, 0
        %1262 = vmatpush.msra.mxu0 0.0
        %1263 = vmatpush.msra.mxu0 0.0
        %1264 = vmatpush.msra.mxu0 0.0
        %1265 = vmatpush.msra.mxu0 0.0
        %1266 = vmatpush.msra.mxu0 0.0
        %1267 = vmatpush.msra.mxu0 0.0
        %1268 = vmatpush.msra.mxu0 0.0
        %1269 = vmatpush.msra.mxu0 0.0
        %1270 = vmatpush.msra.mxu0 0.0
        %1271 = vmatpush.msra.mxu0 0.0
        %1272 = vmatpush.msra.mxu0 0.0
        %1273 = vmatpush.msra.mxu0 0.0
        %1274 = vmatpush.msra.mxu0 0.0
        %1275 = vmatpush.msra.mxu0 0.0
        %1276 = vmatpush.msra.mxu0 0.0
        %1277 = vmatpush.msra.mxu0 %v1213
        %1278 = vmatmul.f32.gmra.mxu0 %v1215
        %v1279 = vpop.f32.mrf.mxu0
        %v1280 = vadd.f32 0.0, %v1279
        %1281 = vmatmul.f32.gmra.mxu0 %v1218
        %v1282 = vpop.f32.mrf.mxu0
        %v1283 = vadd.f32 0.0, %v1282
        %1284 = vmatmul.f32.gmra.mxu0 %v1221
        %v1285 = vpop.f32.mrf.mxu0
        %v1286 = vadd.f32 0.0, %v1285
        %1287 = vmatmul.f32.gmra.mxu0 %v1224
        %v1288 = vpop.f32.mrf.mxu0
        %v1289 = vadd.f32 0.0, %v1288
        %1290 = vmatmul.f32.gmra.mxu0 %v1227
        %v1291 = vpop.f32.mrf.mxu0
        %v1292 = vadd.f32 0.0, %v1291
        %1293 = vmatmul.f32.gmra.mxu0 %v1230
        %v1294 = vpop.f32.mrf.mxu0
        %v1295 = vadd.f32 0.0, %v1294
        %1296 = vmatmul.f32.gmra.mxu0 %v1233
        %v1297 = vpop.f32.mrf.mxu0
        %v1298 = vadd.f32 0.0, %v1297
        %1299 = vmatmul.f32.gmra.mxu0 %v1236
        %v1300 = vpop.f32.mrf.mxu0
        %v1301 = vadd.f32 0.0, %v1300
        %1302 = vmatmul.f32.gmra.mxu0 %v1239
        %v1303 = vpop.f32.mrf.mxu0
        %v1304 = vadd.f32 0.0, %v1303
        %1305 = vmatmul.f32.gmra.mxu0 %v1242
        %v1306 = vpop.f32.mrf.mxu0
        %v1307 = vadd.f32 0.0, %v1306
        %1308 = vmatmul.f32.gmra.mxu0 %v1245
        %v1309 = vpop.f32.mrf.mxu0
        %v1310 = vadd.f32 0.0, %v1309
        %1311 = vmatmul.f32.gmra.mxu0 %v1248
        %v1312 = vpop.f32.mrf.mxu0
        %v1313 = vadd.f32 0.0, %v1312
        %1314 = vmatmul.f32.gmra.mxu0 %v1251
        %v1315 = vpop.f32.mrf.mxu0
        %v1316 = vadd.f32 0.0, %v1315
        %1317 = vmatmul.f32.gmra.mxu0 %v1254
        %v1318 = vpop.f32.mrf.mxu0
        %v1319 = vadd.f32 0.0, %v1318
        %1320 = vmatmul.f32.gmra.mxu0 %v1257
        %v1321 = vpop.f32.mrf.mxu0
        %v1322 = vadd.f32 0.0, %v1321
        %1323 = vmatmul.f32.gmra.mxu0 %v1260
        %v1324 = vpop.f32.mrf.mxu0
        %v1325 = vadd.f32 0.0, %v1324
        %1326 = vdwg.mxu0
        %v1327 = vadd.f32 %v1180, %v1280
        %v1328 = vadd.f32 %v1181, %v1283
        %v1329 = vadd.f32 %v1182, %v1286
        %v1330 = vadd.f32 %v1183, %v1289
        %v1331 = vadd.f32 %v1184, %v1292
        %v1332 = vadd.f32 %v1185, %v1295
        %v1333 = vadd.f32 %v1186, %v1298
        %v1334 = vadd.f32 %v1187, %v1301
        %v1335 = vadd.f32 %v1188, %v1304
        %v1336 = vadd.f32 %v1189, %v1307
        %v1337 = vadd.f32 %v1190, %v1310
        %v1338 = vadd.f32 %v1191, %v1313
        %v1339 = vadd.f32 %v1192, %v1316
        %v1340 = vadd.f32 %v1193, %v1319
        %v1341 = vadd.f32 %v1194, %v1322
        %v1342 = vadd.f32 %v1195, %v1325
        %v1343 = vld [vmem:[%s619 + $0x2] sm:$0xff]
        %v1344 = vld [vmem:[%s619 + $0xa] sm:$0xff]
        %v1345 = vld [vmem:[%s619 + $0x1a] sm:$0xff]
        %v1346 = vld [vmem:[%s619 + $0x22] sm:$0xff]
        %v1347 = vld [vmem:[%s619 + $0x32] sm:$0xff]
        %v1348 = vld [vmem:[%s619 + $0x3a] sm:$0xff]
        %v1349 = vld [vmem:[%s619 + $0x4a] sm:$0xff]
        %v1350 = vld [vmem:[%s619 + $0x52] sm:$0xff]
        %v1351 = vld [vmem:[%s619 + $0x92] sm:$0xff]
        %v1352 = vld [vmem:[%s619 + $0x9a] sm:$0xff]
        %v1353 = vld [vmem:[%s619 + $0xaa] sm:$0xff]
        %v1354 = vld [vmem:[%s619 + $0xb2] sm:$0xff]
        %v1355 = vld [vmem:[%s619 + $0xc2] sm:$0xff]
        %v1356 = vld [vmem:[%s619 + $0xca] sm:$0xff]
        %v1357 = vld [vmem:[%s619 + $0xda] sm:$0xff]
        %v1358 = vld [vmem:[%s619 + $0xe2] sm:$0xff]
        %s1359 = scalar_lea.vmem %s3, 40
        %v1360 = vld [vmem:[%s1359] sm:$0xff]
        %v1362 = vsel %vm614, %v1343, 0
        %v1365 = vsel %vm614, %v1344, 0
        %v1368 = vsel %vm614, %v1345, 0
        %v1371 = vsel %vm614, %v1346, 0
        %v1374 = vsel %vm614, %v1347, 0
        %v1377 = vsel %vm614, %v1348, 0
        %v1380 = vsel %vm614, %v1349, 0
        %v1383 = vsel %vm614, %v1350, 0
        %v1386 = vsel %vm614, %v1351, 0
        %v1389 = vsel %vm614, %v1352, 0
        %v1392 = vsel %vm614, %v1353, 0
        %v1395 = vsel %vm614, %v1354, 0
        %v1398 = vsel %vm614, %v1355, 0
        %v1401 = vsel %vm614, %v1356, 0
        %v1404 = vsel %vm614, %v1357, 0
        %v1407 = vsel %vm614, %v1358, 0
        %1409 = vmatpush.msra.mxu0 0.0
        %1410 = vmatpush.msra.mxu0 0.0
        %1411 = vmatpush.msra.mxu0 0.0
        %1412 = vmatpush.msra.mxu0 0.0
        %1413 = vmatpush.msra.mxu0 0.0
        %1414 = vmatpush.msra.mxu0 0.0
        %1415 = vmatpush.msra.mxu0 0.0
        %1416 = vmatpush.msra.mxu0 0.0
        %1417 = vmatpush.msra.mxu0 0.0
        %1418 = vmatpush.msra.mxu0 0.0
        %1419 = vmatpush.msra.mxu0 0.0
        %1420 = vmatpush.msra.mxu0 0.0
        %1421 = vmatpush.msra.mxu0 0.0
        %1422 = vmatpush.msra.mxu0 0.0
        %1423 = vmatpush.msra.mxu0 0.0
        %1424 = vmatpush.msra.mxu0 %v1360
        %1425 = vmatmul.f32.gmra.mxu0 %v1362
        %v1426 = vpop.f32.mrf.mxu0
        %v1427 = vadd.f32 0.0, %v1426
        %1428 = vmatmul.f32.gmra.mxu0 %v1365
        %v1429 = vpop.f32.mrf.mxu0
        %v1430 = vadd.f32 0.0, %v1429
        %1431 = vmatmul.f32.gmra.mxu0 %v1368
        %v1432 = vpop.f32.mrf.mxu0
        %v1433 = vadd.f32 0.0, %v1432
        %1434 = vmatmul.f32.gmra.mxu0 %v1371
        %v1435 = vpop.f32.mrf.mxu0
        %v1436 = vadd.f32 0.0, %v1435
        %1437 = vmatmul.f32.gmra.mxu0 %v1374
        %v1438 = vpop.f32.mrf.mxu0
        %v1439 = vadd.f32 0.0, %v1438
        %1440 = vmatmul.f32.gmra.mxu0 %v1377
        %v1441 = vpop.f32.mrf.mxu0
        %v1442 = vadd.f32 0.0, %v1441
        %1443 = vmatmul.f32.gmra.mxu0 %v1380
        %v1444 = vpop.f32.mrf.mxu0
        %v1445 = vadd.f32 0.0, %v1444
        %1446 = vmatmul.f32.gmra.mxu0 %v1383
        %v1447 = vpop.f32.mrf.mxu0
        %v1448 = vadd.f32 0.0, %v1447
        %1449 = vmatmul.f32.gmra.mxu0 %v1386
        %v1450 = vpop.f32.mrf.mxu0
        %v1451 = vadd.f32 0.0, %v1450
        %1452 = vmatmul.f32.gmra.mxu0 %v1389
        %v1453 = vpop.f32.mrf.mxu0
        %v1454 = vadd.f32 0.0, %v1453
        %1455 = vmatmul.f32.gmra.mxu0 %v1392
        %v1456 = vpop.f32.mrf.mxu0
        %v1457 = vadd.f32 0.0, %v1456
        %1458 = vmatmul.f32.gmra.mxu0 %v1395
        %v1459 = vpop.f32.mrf.mxu0
        %v1460 = vadd.f32 0.0, %v1459
        %1461 = vmatmul.f32.gmra.mxu0 %v1398
        %v1462 = vpop.f32.mrf.mxu0
        %v1463 = vadd.f32 0.0, %v1462
        %1464 = vmatmul.f32.gmra.mxu0 %v1401
        %v1465 = vpop.f32.mrf.mxu0
        %v1466 = vadd.f32 0.0, %v1465
        %1467 = vmatmul.f32.gmra.mxu0 %v1404
        %v1468 = vpop.f32.mrf.mxu0
        %v1469 = vadd.f32 0.0, %v1468
        %1470 = vmatmul.f32.gmra.mxu0 %v1407
        %v1471 = vpop.f32.mrf.mxu0
        %v1472 = vadd.f32 0.0, %v1471
        %1473 = vdwg.mxu0
        %v1474 = vadd.f32 %v1327, %v1427
        %v1475 = vadd.f32 %v1328, %v1430
        %v1476 = vadd.f32 %v1329, %v1433
        %v1477 = vadd.f32 %v1330, %v1436
        %v1478 = vadd.f32 %v1331, %v1439
        %v1479 = vadd.f32 %v1332, %v1442
        %v1480 = vadd.f32 %v1333, %v1445
        %v1481 = vadd.f32 %v1334, %v1448
        %v1482 = vadd.f32 %v1335, %v1451
        %v1483 = vadd.f32 %v1336, %v1454
        %v1484 = vadd.f32 %v1337, %v1457
        %v1485 = vadd.f32 %v1338, %v1460
        %v1486 = vadd.f32 %v1339, %v1463
        %v1487 = vadd.f32 %v1340, %v1466
        %v1488 = vadd.f32 %v1341, %v1469
        %v1489 = vadd.f32 %v1342, %v1472
        %s1490 = scalar_lea.vmem [#allocation2], 48
        %v1491 = vld [vmem:[%s1490] sm:$0xff]
        %v1492 = vld [vmem:[%s1490 + $0x8] sm:$0xff]
        %v1493 = vld [vmem:[%s1490 + $0x18] sm:$0xff]
        %v1494 = vld [vmem:[%s1490 + $0x20] sm:$0xff]
        %v1495 = vld [vmem:[%s1490 + $0x30] sm:$0xff]
        %v1496 = vld [vmem:[%s1490 + $0x38] sm:$0xff]
        %v1497 = vld [vmem:[%s1490 + $0x48] sm:$0xff]
        %v1498 = vld [vmem:[%s1490 + $0x50] sm:$0xff]
        %v1499 = vld [vmem:[%s1490 + $0x90] sm:$0xff]
        %v1500 = vld [vmem:[%s1490 + $0x98] sm:$0xff]
        %v1501 = vld [vmem:[%s1490 + $0xa8] sm:$0xff]
        %v1502 = vld [vmem:[%s1490 + $0xb0] sm:$0xff]
        %v1503 = vld [vmem:[%s1490 + $0xc0] sm:$0xff]
        %v1504 = vld [vmem:[%s1490 + $0xc8] sm:$0xff]
        %v1505 = vld [vmem:[%s1490 + $0xd8] sm:$0xff]
        %v1506 = vld [vmem:[%s1490 + $0xe0] sm:$0xff]
        %s1507 = scalar_lea.vmem %s3, 48
        %v1508 = vld [vmem:[%s1507] sm:$0xff]
        %v1510 = vsel %vm614, %v1491, 0
        %v1513 = vsel %vm614, %v1492, 0
        %v1516 = vsel %vm614, %v1493, 0
        %v1519 = vsel %vm614, %v1494, 0
        %v1522 = vsel %vm614, %v1495, 0
        %v1525 = vsel %vm614, %v1496, 0
        %v1528 = vsel %vm614, %v1497, 0
        %v1531 = vsel %vm614, %v1498, 0
        %v1534 = vsel %vm614, %v1499, 0
        %v1537 = vsel %vm614, %v1500, 0
        %v1540 = vsel %vm614, %v1501, 0
        %v1543 = vsel %vm614, %v1502, 0
        %v1546 = vsel %vm614, %v1503, 0
        %v1549 = vsel %vm614, %v1504, 0
        %v1552 = vsel %vm614, %v1505, 0
        %v1555 = vsel %vm614, %v1506, 0
        %1557 = vmatpush.msra.mxu0 0.0
        %1558 = vmatpush.msra.mxu0 0.0
        %1559 = vmatpush.msra.mxu0 0.0
        %1560 = vmatpush.msra.mxu0 0.0
        %1561 = vmatpush.msra.mxu0 0.0
        %1562 = vmatpush.msra.mxu0 0.0
        %1563 = vmatpush.msra.mxu0 0.0
        %1564 = vmatpush.msra.mxu0 0.0
        %1565 = vmatpush.msra.mxu0 0.0
        %1566 = vmatpush.msra.mxu0 0.0
        %1567 = vmatpush.msra.mxu0 0.0
        %1568 = vmatpush.msra.mxu0 0.0
        %1569 = vmatpush.msra.mxu0 0.0
        %1570 = vmatpush.msra.mxu0 0.0
        %1571 = vmatpush.msra.mxu0 0.0
        %1572 = vmatpush.msra.mxu0 %v1508
        %1573 = vmatmul.f32.gmra.mxu0 %v1510
        %v1574 = vpop.f32.mrf.mxu0
        %v1575 = vadd.f32 0.0, %v1574
        %1576 = vmatmul.f32.gmra.mxu0 %v1513
        %v1577 = vpop.f32.mrf.mxu0
        %v1578 = vadd.f32 0.0, %v1577
        %1579 = vmatmul.f32.gmra.mxu0 %v1516
        %v1580 = vpop.f32.mrf.mxu0
        %v1581 = vadd.f32 0.0, %v1580
        %1582 = vmatmul.f32.gmra.mxu0 %v1519
        %v1583 = vpop.f32.mrf.mxu0
        %v1584 = vadd.f32 0.0, %v1583
        %1585 = vmatmul.f32.gmra.mxu0 %v1522
        %v1586 = vpop.f32.mrf.mxu0
        %v1587 = vadd.f32 0.0, %v1586
        %1588 = vmatmul.f32.gmra.mxu0 %v1525
        %v1589 = vpop.f32.mrf.mxu0
        %v1590 = vadd.f32 0.0, %v1589
        %1591 = vmatmul.f32.gmra.mxu0 %v1528
        %v1592 = vpop.f32.mrf.mxu0
        %v1593 = vadd.f32 0.0, %v1592
        %1594 = vmatmul.f32.gmra.mxu0 %v1531
        %v1595 = vpop.f32.mrf.mxu0
        %v1596 = vadd.f32 0.0, %v1595
        %1597 = vmatmul.f32.gmra.mxu0 %v1534
        %v1598 = vpop.f32.mrf.mxu0
        %v1599 = vadd.f32 0.0, %v1598
        %1600 = vmatmul.f32.gmra.mxu0 %v1537
        %v1601 = vpop.f32.mrf.mxu0
        %v1602 = vadd.f32 0.0, %v1601
        %1603 = vmatmul.f32.gmra.mxu0 %v1540
        %v1604 = vpop.f32.mrf.mxu0
        %v1605 = vadd.f32 0.0, %v1604
        %1606 = vmatmul.f32.gmra.mxu0 %v1543
        %v1607 = vpop.f32.mrf.mxu0
        %v1608 = vadd.f32 0.0, %v1607
        %1609 = vmatmul.f32.gmra.mxu0 %v1546
        %v1610 = vpop.f32.mrf.mxu0
        %v1611 = vadd.f32 0.0, %v1610
        %1612 = vmatmul.f32.gmra.mxu0 %v1549
        %v1613 = vpop.f32.mrf.mxu0
        %v1614 = vadd.f32 0.0, %v1613
        %1615 = vmatmul.f32.gmra.mxu0 %v1552
        %v1616 = vpop.f32.mrf.mxu0
        %v1617 = vadd.f32 0.0, %v1616
        %1618 = vmatmul.f32.gmra.mxu0 %v1555
        %v1619 = vpop.f32.mrf.mxu0
        %v1620 = vadd.f32 0.0, %v1619
        %1621 = vdwg.mxu0
        %v1622 = vadd.f32 %v1474, %v1575
        %v1623 = vadd.f32 %v1475, %v1578
        %v1624 = vadd.f32 %v1476, %v1581
        %v1625 = vadd.f32 %v1477, %v1584
        %v1626 = vadd.f32 %v1478, %v1587
        %v1627 = vadd.f32 %v1479, %v1590
        %v1628 = vadd.f32 %v1480, %v1593
        %v1629 = vadd.f32 %v1481, %v1596
        %v1630 = vadd.f32 %v1482, %v1599
        %v1631 = vadd.f32 %v1483, %v1602
        %v1632 = vadd.f32 %v1484, %v1605
        %v1633 = vadd.f32 %v1485, %v1608
        %v1634 = vadd.f32 %v1486, %v1611
        %v1635 = vadd.f32 %v1487, %v1614
        %v1636 = vadd.f32 %v1488, %v1617
        %v1637 = vadd.f32 %v1489, %v1620
        %v1638 = vld [vmem:[%s1490 + $0x1] sm:$0xff]
        %v1639 = vld [vmem:[%s1490 + $0x9] sm:$0xff]
        %v1640 = vld [vmem:[%s1490 + $0x19] sm:$0xff]
        %v1641 = vld [vmem:[%s1490 + $0x21] sm:$0xff]
        %v1642 = vld [vmem:[%s1490 + $0x31] sm:$0xff]
        %v1643 = vld [vmem:[%s1490 + $0x39] sm:$0xff]
        %v1644 = vld [vmem:[%s1490 + $0x49] sm:$0xff]
        %v1645 = vld [vmem:[%s1490 + $0x51] sm:$0xff]
        %v1646 = vld [vmem:[%s1490 + $0x91] sm:$0xff]
        %v1647 = vld [vmem:[%s1490 + $0x99] sm:$0xff]
        %v1648 = vld [vmem:[%s1490 + $0xa9] sm:$0xff]
        %v1649 = vld [vmem:[%s1490 + $0xb1] sm:$0xff]
        %v1650 = vld [vmem:[%s1490 + $0xc1] sm:$0xff]
        %v1651 = vld [vmem:[%s1490 + $0xc9] sm:$0xff]
        %v1652 = vld [vmem:[%s1490 + $0xd9] sm:$0xff]
        %v1653 = vld [vmem:[%s1490 + $0xe1] sm:$0xff]
        %s1654 = scalar_lea.vmem %s3, 56
        %v1655 = vld [vmem:[%s1654] sm:$0xff]
        %v1657 = vsel %vm614, %v1638, 0
        %v1660 = vsel %vm614, %v1639, 0
        %v1663 = vsel %vm614, %v1640, 0
        %v1666 = vsel %vm614, %v1641, 0
        %v1669 = vsel %vm614, %v1642, 0
        %v1672 = vsel %vm614, %v1643, 0
        %v1675 = vsel %vm614, %v1644, 0
        %v1678 = vsel %vm614, %v1645, 0
        %v1681 = vsel %vm614, %v1646, 0
        %v1684 = vsel %vm614, %v1647, 0
        %v1687 = vsel %vm614, %v1648, 0
        %v1690 = vsel %vm614, %v1649, 0
        %v1693 = vsel %vm614, %v1650, 0
        %v1696 = vsel %vm614, %v1651, 0
        %v1699 = vsel %vm614, %v1652, 0
        %v1702 = vsel %vm614, %v1653, 0
        %1704 = vmatpush.msra.mxu0 0.0
        %1705 = vmatpush.msra.mxu0 0.0
        %1706 = vmatpush.msra.mxu0 0.0
        %1707 = vmatpush.msra.mxu0 0.0
        %1708 = vmatpush.msra.mxu0 0.0
        %1709 = vmatpush.msra.mxu0 0.0
        %1710 = vmatpush.msra.mxu0 0.0
        %1711 = vmatpush.msra.mxu0 0.0
        %1712 = vmatpush.msra.mxu0 0.0
        %1713 = vmatpush.msra.mxu0 0.0
        %1714 = vmatpush.msra.mxu0 0.0
        %1715 = vmatpush.msra.mxu0 0.0
        %1716 = vmatpush.msra.mxu0 0.0
        %1717 = vmatpush.msra.mxu0 0.0
        %1718 = vmatpush.msra.mxu0 0.0
        %1719 = vmatpush.msra.mxu0 %v1655
        %1720 = vmatmul.f32.gmra.mxu0 %v1657
        %v1721 = vpop.f32.mrf.mxu0
        %v1722 = vadd.f32 0.0, %v1721
        %1723 = vmatmul.f32.gmra.mxu0 %v1660
        %v1724 = vpop.f32.mrf.mxu0
        %v1725 = vadd.f32 0.0, %v1724
        %1726 = vmatmul.f32.gmra.mxu0 %v1663
        %v1727 = vpop.f32.mrf.mxu0
        %v1728 = vadd.f32 0.0, %v1727
        %1729 = vmatmul.f32.gmra.mxu0 %v1666
        %v1730 = vpop.f32.mrf.mxu0
        %v1731 = vadd.f32 0.0, %v1730
        %1732 = vmatmul.f32.gmra.mxu0 %v1669
        %v1733 = vpop.f32.mrf.mxu0
        %v1734 = vadd.f32 0.0, %v1733
        %1735 = vmatmul.f32.gmra.mxu0 %v1672
        %v1736 = vpop.f32.mrf.mxu0
        %v1737 = vadd.f32 0.0, %v1736
        %1738 = vmatmul.f32.gmra.mxu0 %v1675
        %v1739 = vpop.f32.mrf.mxu0
        %v1740 = vadd.f32 0.0, %v1739
        %1741 = vmatmul.f32.gmra.mxu0 %v1678
        %v1742 = vpop.f32.mrf.mxu0
        %v1743 = vadd.f32 0.0, %v1742
        %1744 = vmatmul.f32.gmra.mxu0 %v1681
        %v1745 = vpop.f32.mrf.mxu0
        %v1746 = vadd.f32 0.0, %v1745
        %1747 = vmatmul.f32.gmra.mxu0 %v1684
        %v1748 = vpop.f32.mrf.mxu0
        %v1749 = vadd.f32 0.0, %v1748
        %1750 = vmatmul.f32.gmra.mxu0 %v1687
        %v1751 = vpop.f32.mrf.mxu0
        %v1752 = vadd.f32 0.0, %v1751
        %1753 = vmatmul.f32.gmra.mxu0 %v1690
        %v1754 = vpop.f32.mrf.mxu0
        %v1755 = vadd.f32 0.0, %v1754
        %1756 = vmatmul.f32.gmra.mxu0 %v1693
        %v1757 = vpop.f32.mrf.mxu0
        %v1758 = vadd.f32 0.0, %v1757
        %1759 = vmatmul.f32.gmra.mxu0 %v1696
        %v1760 = vpop.f32.mrf.mxu0
        %v1761 = vadd.f32 0.0, %v1760
        %1762 = vmatmul.f32.gmra.mxu0 %v1699
        %v1763 = vpop.f32.mrf.mxu0
        %v1764 = vadd.f32 0.0, %v1763
        %1765 = vmatmul.f32.gmra.mxu0 %v1702
        %v1766 = vpop.f32.mrf.mxu0
        %v1767 = vadd.f32 0.0, %v1766
        %1768 = vdwg.mxu0
        %v1769 = vadd.f32 %v1622, %v1722
        %v1770 = vadd.f32 %v1623, %v1725
        %v1771 = vadd.f32 %v1624, %v1728
        %v1772 = vadd.f32 %v1625, %v1731
        %v1773 = vadd.f32 %v1626, %v1734
        %v1774 = vadd.f32 %v1627, %v1737
        %v1775 = vadd.f32 %v1628, %v1740
        %v1776 = vadd.f32 %v1629, %v1743
        %v1777 = vadd.f32 %v1630, %v1746
        %v1778 = vadd.f32 %v1631, %v1749
        %v1779 = vadd.f32 %v1632, %v1752
        %v1780 = vadd.f32 %v1633, %v1755
        %v1781 = vadd.f32 %v1634, %v1758
        %v1782 = vadd.f32 %v1635, %v1761
        %v1783 = vadd.f32 %v1636, %v1764
        %v1784 = vadd.f32 %v1637, %v1767
        %v1785 = vld [vmem:[%s1490 + $0x2] sm:$0xff]
        %v1786 = vld [vmem:[%s1490 + $0xa] sm:$0xff]
        %v1787 = vld [vmem:[%s1490 + $0x1a] sm:$0xff]
        %v1788 = vld [vmem:[%s1490 + $0x22] sm:$0xff]
        %v1789 = vld [vmem:[%s1490 + $0x32] sm:$0xff]
        %v1790 = vld [vmem:[%s1490 + $0x3a] sm:$0xff]
        %v1791 = vld [vmem:[%s1490 + $0x4a] sm:$0xff]
        %v1792 = vld [vmem:[%s1490 + $0x52] sm:$0xff]
        %v1793 = vld [vmem:[%s1490 + $0x92] sm:$0xff]
        %v1794 = vld [vmem:[%s1490 + $0x9a] sm:$0xff]
        %v1795 = vld [vmem:[%s1490 + $0xaa] sm:$0xff]
        %v1796 = vld [vmem:[%s1490 + $0xb2] sm:$0xff]
        %v1797 = vld [vmem:[%s1490 + $0xc2] sm:$0xff]
        %v1798 = vld [vmem:[%s1490 + $0xca] sm:$0xff]
        %v1799 = vld [vmem:[%s1490 + $0xda] sm:$0xff]
        %v1800 = vld [vmem:[%s1490 + $0xe2] sm:$0xff]
        %s1801 = scalar_lea.vmem %s3, 64
        %v1802 = vld [vmem:[%s1801] sm:$0xff]
        %v1804 = vsel %vm614, %v1785, 0
        %v1807 = vsel %vm614, %v1786, 0
        %v1810 = vsel %vm614, %v1787, 0
        %v1813 = vsel %vm614, %v1788, 0
        %v1816 = vsel %vm614, %v1789, 0
        %v1819 = vsel %vm614, %v1790, 0
        %v1822 = vsel %vm614, %v1791, 0
        %v1825 = vsel %vm614, %v1792, 0
        %v1828 = vsel %vm614, %v1793, 0
        %v1831 = vsel %vm614, %v1794, 0
        %v1834 = vsel %vm614, %v1795, 0
        %v1837 = vsel %vm614, %v1796, 0
        %v1840 = vsel %vm614, %v1797, 0
        %v1843 = vsel %vm614, %v1798, 0
        %v1846 = vsel %vm614, %v1799, 0
        %v1849 = vsel %vm614, %v1800, 0
        %1851 = vmatpush.msra.mxu0 0.0
        %1852 = vmatpush.msra.mxu0 0.0
        %1853 = vmatpush.msra.mxu0 0.0
        %1854 = vmatpush.msra.mxu0 0.0
        %1855 = vmatpush.msra.mxu0 0.0
        %1856 = vmatpush.msra.mxu0 0.0
        %1857 = vmatpush.msra.mxu0 0.0
        %1858 = vmatpush.msra.mxu0 0.0
        %1859 = vmatpush.msra.mxu0 0.0
        %1860 = vmatpush.msra.mxu0 0.0
        %1861 = vmatpush.msra.mxu0 0.0
        %1862 = vmatpush.msra.mxu0 0.0
        %1863 = vmatpush.msra.mxu0 0.0
        %1864 = vmatpush.msra.mxu0 0.0
        %1865 = vmatpush.msra.mxu0 0.0
        %1866 = vmatpush.msra.mxu0 %v1802
        %1867 = vmatmul.f32.gmra.mxu0 %v1804
        %v1868 = vpop.f32.mrf.mxu0
        %v1869 = vadd.f32 0.0, %v1868
        %1870 = vmatmul.f32.gmra.mxu0 %v1807
        %v1871 = vpop.f32.mrf.mxu0
        %v1872 = vadd.f32 0.0, %v1871
        %1873 = vmatmul.f32.gmra.mxu0 %v1810
        %v1874 = vpop.f32.mrf.mxu0
        %v1875 = vadd.f32 0.0, %v1874
        %1876 = vmatmul.f32.gmra.mxu0 %v1813
        %v1877 = vpop.f32.mrf.mxu0
        %v1878 = vadd.f32 0.0, %v1877
        %1879 = vmatmul.f32.gmra.mxu0 %v1816
        %v1880 = vpop.f32.mrf.mxu0
        %v1881 = vadd.f32 0.0, %v1880
        %1882 = vmatmul.f32.gmra.mxu0 %v1819
        %v1883 = vpop.f32.mrf.mxu0
        %v1884 = vadd.f32 0.0, %v1883
        %1885 = vmatmul.f32.gmra.mxu0 %v1822
        %v1886 = vpop.f32.mrf.mxu0
        %v1887 = vadd.f32 0.0, %v1886
        %1888 = vmatmul.f32.gmra.mxu0 %v1825
        %v1889 = vpop.f32.mrf.mxu0
        %v1890 = vadd.f32 0.0, %v1889
        %1891 = vmatmul.f32.gmra.mxu0 %v1828
        %v1892 = vpop.f32.mrf.mxu0
        %v1893 = vadd.f32 0.0, %v1892
        %1894 = vmatmul.f32.gmra.mxu0 %v1831
        %v1895 = vpop.f32.mrf.mxu0
        %v1896 = vadd.f32 0.0, %v1895
        %1897 = vmatmul.f32.gmra.mxu0 %v1834
        %v1898 = vpop.f32.mrf.mxu0
        %v1899 = vadd.f32 0.0, %v1898
        %1900 = vmatmul.f32.gmra.mxu0 %v1837
        %v1901 = vpop.f32.mrf.mxu0
        %v1902 = vadd.f32 0.0, %v1901
        %1903 = vmatmul.f32.gmra.mxu0 %v1840
        %v1904 = vpop.f32.mrf.mxu0
        %v1905 = vadd.f32 0.0, %v1904
        %1906 = vmatmul.f32.gmra.mxu0 %v1843
        %v1907 = vpop.f32.mrf.mxu0
        %v1908 = vadd.f32 0.0, %v1907
        %1909 = vmatmul.f32.gmra.mxu0 %v1846
        %v1910 = vpop.f32.mrf.mxu0
        %v1911 = vadd.f32 0.0, %v1910
        %1912 = vmatmul.f32.gmra.mxu0 %v1849
        %v1913 = vpop.f32.mrf.mxu0
        %v1914 = vadd.f32 0.0, %v1913
        %1915 = vdwg.mxu0
        %v1916 = vadd.f32 %v1769, %v1869
        %v1917 = vadd.f32 %v1770, %v1872
        %v1918 = vadd.f32 %v1771, %v1875
        %v1919 = vadd.f32 %v1772, %v1878
        %v1920 = vadd.f32 %v1773, %v1881
        %v1921 = vadd.f32 %v1774, %v1884
        %v1922 = vadd.f32 %v1775, %v1887
        %v1923 = vadd.f32 %v1776, %v1890
        %v1924 = vadd.f32 %v1777, %v1893
        %v1925 = vadd.f32 %v1778, %v1896
        %v1926 = vadd.f32 %v1779, %v1899
        %v1927 = vadd.f32 %v1780, %v1902
        %v1928 = vadd.f32 %v1781, %v1905
        %v1929 = vadd.f32 %v1782, %v1908
        %v1930 = vadd.f32 %v1783, %v1911
        %v1931 = vadd.f32 %v1784, %v1914
        %v1932 = vsel %vm614, %v1916, 0.0
        %v1933 = vsel %vm614, %v1917, 0.0
        %v1934 = vadd.f32 %v1932, %v1933
        %v1935 = vsel %vm614, %v1918, 0.0
        %v1936 = vadd.f32 %v1934, %v1935
        %v1937 = vsel %vm614, %v1919, 0.0
        %v1938 = vadd.f32 %v1936, %v1937
        %v1939 = vsel %vm614, %v1920, 0.0
        %v1940 = vadd.f32 %v1938, %v1939
        %v1941 = vsel %vm614, %v1921, 0.0
        %v1942 = vadd.f32 %v1940, %v1941
        %v1943 = vsel %vm614, %v1922, 0.0
        %v1944 = vadd.f32 %v1942, %v1943
        %v1945 = vsel %vm614, %v1923, 0.0
        %v1946 = vadd.f32 %v1944, %v1945
        %v1947 = vsel %vm614, %v1924, 0.0
        %v1948 = vadd.f32 %v1946, %v1947
        %v1949 = vsel %vm614, %v1925, 0.0
        %v1950 = vadd.f32 %v1948, %v1949
        %v1951 = vsel %vm614, %v1926, 0.0
        %v1952 = vadd.f32 %v1950, %v1951
        %v1953 = vsel %vm614, %v1927, 0.0
        %v1954 = vadd.f32 %v1952, %v1953
        %v1955 = vsel %vm614, %v1928, 0.0
        %v1956 = vadd.f32 %v1954, %v1955
        %v1957 = vsel %vm614, %v1929, 0.0
        %v1958 = vadd.f32 %v1956, %v1957
        %v1959 = vsel %vm614, %v1930, 0.0
        %v1960 = vadd.f32 %v1958, %v1959
        %v1961 = vsel %vm614, %v1931, 0.0
        %v1962 = vadd.f32 %v1960, %v1961
        %v1963 = vrot.slane %v1962, 4
        %v1964 = vadd.f32 %v1962, %v1963
        %v1965 = vrot.slane %v1964, 2
        %v1966 = vadd.f32 %v1964, %v1965
        %v1967 = vrot.slane %v1966, 1
        %v1968 = vadd.f32 %v1966, %v1967
        %v1969 = vmul.f32 %v1968, 0.0078125
        %v1970 = vsub.f32 %v1916, %v1969
        %v1971 = vsub.f32 %v1917, %v1969
        %v1972 = vsub.f32 %v1918, %v1969
        %v1973 = vsub.f32 %v1919, %v1969
        %v1974 = vsub.f32 %v1920, %v1969
        %v1975 = vsub.f32 %v1921, %v1969
        %v1976 = vsub.f32 %v1922, %v1969
        %v1977 = vsub.f32 %v1923, %v1969
        %v1978 = vsub.f32 %v1924, %v1969
        %v1979 = vsub.f32 %v1925, %v1969
        %v1980 = vsub.f32 %v1926, %v1969
        %v1981 = vsub.f32 %v1927, %v1969
        %v1982 = vsub.f32 %v1928, %v1969
        %v1983 = vsub.f32 %v1929, %v1969
        %v1984 = vsub.f32 %v1930, %v1969
        %v1985 = vsub.f32 %v1931, %v1969
        %1986 = vst.msk [vmem:[%s550] sm:$0x1] %vm589, %v1968
        %v1987 = vmul.f32 %v1970, %v1970
        %v1988 = vmul.f32 %v1971, %v1971
        %v1989 = vmul.f32 %v1972, %v1972
        %v1990 = vmul.f32 %v1973, %v1973
        %v1991 = vmul.f32 %v1974, %v1974
        %v1992 = vmul.f32 %v1975, %v1975
        %v1993 = vmul.f32 %v1976, %v1976
        %v1994 = vmul.f32 %v1977, %v1977
        %v1995 = vmul.f32 %v1978, %v1978
        %v1996 = vmul.f32 %v1979, %v1979
        %v1997 = vmul.f32 %v1980, %v1980
        %v1998 = vmul.f32 %v1981, %v1981
        %v1999 = vmul.f32 %v1982, %v1982
        %v2000 = vmul.f32 %v1983, %v1983
        %v2001 = vmul.f32 %v1984, %v1984
        %v2002 = vmul.f32 %v1985, %v1985
        %v2003 = vsel %vm614, %v1987, 0.0
        %v2004 = vsel %vm614, %v1988, 0.0
        %v2005 = vadd.f32 %v2003, %v2004
        %v2006 = vsel %vm614, %v1989, 0.0
        %v2007 = vadd.f32 %v2005, %v2006
        %v2008 = vsel %vm614, %v1990, 0.0
        %v2009 = vadd.f32 %v2007, %v2008
        %v2010 = vsel %vm614, %v1991, 0.0
        %v2011 = vadd.f32 %v2009, %v2010
        %v2012 = vsel %vm614, %v1992, 0.0
        %v2013 = vadd.f32 %v2011, %v2012
        %v2014 = vsel %vm614, %v1993, 0.0
        %v2015 = vadd.f32 %v2013, %v2014
        %v2016 = vsel %vm614, %v1994, 0.0
        %v2017 = vadd.f32 %v2015, %v2016
        %v2018 = vsel %vm614, %v1995, 0.0
        %v2019 = vadd.f32 %v2017, %v2018
        %v2020 = vsel %vm614, %v1996, 0.0
        %v2021 = vadd.f32 %v2019, %v2020
        %v2022 = vsel %vm614, %v1997, 0.0
        %v2023 = vadd.f32 %v2021, %v2022
        %v2024 = vsel %vm614, %v1998, 0.0
        %v2025 = vadd.f32 %v2023, %v2024
        %v2026 = vsel %vm614, %v1999, 0.0
        %v2027 = vadd.f32 %v2025, %v2026
        %v2028 = vsel %vm614, %v2000, 0.0
        %v2029 = vadd.f32 %v2027, %v2028
        %v2030 = vsel %vm614, %v2001, 0.0
        %v2031 = vadd.f32 %v2029, %v2030
        %v2032 = vsel %vm614, %v2002, 0.0
        %v2033 = vadd.f32 %v2031, %v2032
        %v2034 = vrot.slane %v2033, 4
        %v2035 = vadd.f32 %v2033, %v2034
        %v2036 = vrot.slane %v2035, 2
        %v2037 = vadd.f32 %v2035, %v2036
        %v2038 = vrot.slane %v2037, 1
        %v2039 = vadd.f32 %v2037, %v2038
        %2040 = vst.msk [vmem:[%s550 + $0x1] sm:$0x1] %vm589, %v2039
        %2041 = vst.msk [vmem:[%s530] sm:$0xff] %vm614, %v1916
        %2042 = vst.msk [vmem:[%s530 + $0x8] sm:$0xff] %vm614, %v1917
        %2043 = vst.msk [vmem:[%s530 + $0x10] sm:$0xff] %vm614, %v1918
        %2044 = vst.msk [vmem:[%s530 + $0x18] sm:$0xff] %vm614, %v1919
        %2045 = vst.msk [vmem:[%s530 + $0x20] sm:$0xff] %vm614, %v1920
        %2046 = vst.msk [vmem:[%s530 + $0x28] sm:$0xff] %vm614, %v1921
        %2047 = vst.msk [vmem:[%s530 + $0x30] sm:$0xff] %vm614, %v1922
        %2048 = vst.msk [vmem:[%s530 + $0x38] sm:$0xff] %vm614, %v1923
        %2049 = vst.msk [vmem:[%s530 + $0x40] sm:$0xff] %vm614, %v1924
        %2050 = vst.msk [vmem:[%s530 + $0x48] sm:$0xff] %vm614, %v1925
        %2051 = vst.msk [vmem:[%s530 + $0x50] sm:$0xff] %vm614, %v1926
        %2052 = vst.msk [vmem:[%s530 + $0x58] sm:$0xff] %vm614, %v1927
        %2053 = vst.msk [vmem:[%s530 + $0x60] sm:$0xff] %vm614, %v1928
        %2054 = vst.msk [vmem:[%s530 + $0x68] sm:$0xff] %vm614, %v1929
        %2055 = vst.msk [vmem:[%s530 + $0x70] sm:$0xff] %vm614, %v1930
        %2056 = vst.msk [vmem:[%s530 + $0x78] sm:$0xff] %vm614, %v1931
        %s2057 = sand.u32 %s184, 1
        %s2058 = sand.u32 %s184, 1
        %s2059 = smul.addr %s2058, 128
        %s2060 = scalar_lea.vmem [#allocation6], %s2059
        %p2061 = scmp.lt.s32.totalorder %s19, 3
        %s2062 = scalar_select %p2061, %s19, 3
        %s2063 = smul.addr %s2062, 2
        %s2064 = scalar_lea.vmem %s7, %s2063
        // Predicated region
        $region159: #{residual_block.3} parent=145 // pred_check
          %p2065 = pneg %p194
        $region160: #{residual_block.3} parent=145 // pred_check_branch
          %2067 = sbr.rel (%p2065) target = $region162
        $region161: #{residual_block.3} parent=145 // pred_region
          %s2068 = smul.u32 4, %s19
          %s2069 = smul.addr %s2068, 2
          %s2070 = smul.addr %s2069, 8
          %s2071 = scalar_lea.vmem %s6, %s2070
          // Predicated region
          $region163: #{residual_block.3} parent=161 // pred_check
            _
          $region164: #{residual_block.3} parent=161 // pred_check_branch
            %2073 = sbr.rel (0) target = $region166
          $region165: #{residual_block.3} parent=161 // pred_region
            // Predicated region
            $region167: #{residual_block.3} parent=165 // pred_check
              _
            $region168: #{residual_block.3} parent=165 // pred_check_branch
              %2075 = sbr.rel (0) target = $region170
            $region169: #{residual_block.3} parent=165 // pred_region
              // Predicated region
              $region182: #{residual_block.3} parent=169 // pred_check
                _
              $region183: #{residual_block.3} parent=169 // pred_check_branch
                %2121 = sbr.rel (0) target = $region185
              $region184: #{residual_block.3} parent=169 // pred_region
                loop: start=0, step=1, limit=1
                $region186: #{residual_block.3} parent=184 // loop_pre_header
                  _
                $region187: #{residual_block.3} parent=184 // loop_header
                  %s2123 = sphi 0, %s2127
                  %p2124 = scmp.ge.s32.totalorder %s2123, 1
                  %s2128 = sphi %s2060, %s2060
                  %s2129 = sphi %s2071, %s2071
                $region188: #{residual_block.3} parent=184 // loop_header_branch
                  %2126 = sbr.rel (%p2124) target = $region192
                $region189: #{residual_block.3} parent=184 // loop_body
                  %v2130 = vld [vmem:[%s2128] sm:$0xff]
                  %2131 = vst [vmem:[%s2129] sm:$0xff] %v2130
                  %v2132 = vld [vmem:[%s2128 + $0x8] sm:$0xff]
                  %2133 = vst [vmem:[%s2129 + $0x8] sm:$0xff] %v2132
                  %v2134 = vld [vmem:[%s2128 + $0x10] sm:$0xff]
                  %2135 = vst [vmem:[%s2129 + $0x10] sm:$0xff] %v2134
                  %v2136 = vld [vmem:[%s2128 + $0x18] sm:$0xff]
                  %2137 = vst [vmem:[%s2129 + $0x18] sm:$0xff] %v2136
                  %v2138 = vld [vmem:[%s2128 + $0x20] sm:$0xff]
                  %2139 = vst [vmem:[%s2129 + $0x20] sm:$0xff] %v2138
                  %v2140 = vld [vmem:[%s2128 + $0x28] sm:$0xff]
                  %2141 = vst [vmem:[%s2129 + $0x28] sm:$0xff] %v2140
                  %v2142 = vld [vmem:[%s2128 + $0x30] sm:$0xff]
                  %2143 = vst [vmem:[%s2129 + $0x30] sm:$0xff] %v2142
                  %v2144 = vld [vmem:[%s2128 + $0x38] sm:$0xff]
                  %2145 = vst [vmem:[%s2129 + $0x38] sm:$0xff] %v2144
                  %v2146 = vld [vmem:[%s2128 + $0x40] sm:$0xff]
                  %2147 = vst [vmem:[%s2129 + $0x100] sm:$0xff] %v2146
                  %v2148 = vld [vmem:[%s2128 + $0x48] sm:$0xff]
                  %2149 = vst [vmem:[%s2129 + $0x108] sm:$0xff] %v2148
                  %v2150 = vld [vmem:[%s2128 + $0x50] sm:$0xff]
                  %2151 = vst [vmem:[%s2129 + $0x110] sm:$0xff] %v2150
                  %v2152 = vld [vmem:[%s2128 + $0x58] sm:$0xff]
                  %2153 = vst [vmem:[%s2129 + $0x118] sm:$0xff] %v2152
                  %v2154 = vld [vmem:[%s2128 + $0x60] sm:$0xff]
                  %2155 = vst [vmem:[%s2129 + $0x120] sm:$0xff] %v2154
                  %v2156 = vld [vmem:[%s2128 + $0x68] sm:$0xff]
                  %2157 = vst [vmem:[%s2129 + $0x128] sm:$0xff] %v2156
                  %v2158 = vld [vmem:[%s2128 + $0x70] sm:$0xff]
                  %2159 = vst [vmem:[%s2129 + $0x130] sm:$0xff] %v2158
                  %v2160 = vld [vmem:[%s2128 + $0x78] sm:$0xff]
                  %2161 = vst [vmem:[%s2129 + $0x138] sm:$0xff] %v2160
                $region190: #{residual_block.3} parent=184 // loop_footer
                  %s2127 = sadd.s32 1, %s2123
                $region191: #{residual_block.3} parent=184 // loop_footer_branch
                  %2122 = sbr.rel target = $region187
                $region192: #{residual_block.3} parent=184 // loop_exit
                  _
              $region185: #{residual_block.3} parent=169 // pred_fallthru
                _
              // Predicated region
              $region193: #{residual_block.3} parent=169 // pred_check
                _
              $region194: #{residual_block.3} parent=169 // pred_check_branch
                %2163 = sbr.rel target = $region196
              $region195: #{residual_block.3} parent=169 // pred_region
                _
              $region196: #{residual_block.3} parent=169 // pred_fallthru
                _
            $region170: #{residual_block.3} parent=165 // pred_fallthru
              _
            // Predicated region
            $region171: #{residual_block.3} parent=165 // pred_check
              _
            $region172: #{residual_block.3} parent=165 // pred_check_branch
              %2077 = sbr.rel target = $region174
            $region173: #{residual_block.3} parent=165 // pred_region
              %s2079 = ssub.s32 256, 1
              loop: start=0, step=1, limit=1
              $region175: #{residual_block.3} parent=173 // loop_pre_header
                _
              $region176: #{residual_block.3} parent=173 // loop_header
                %s2081 = sphi 0, %s2085
                %p2082 = scmp.ge.s32.totalorder %s2081, 1
                %s2086 = sphi %s2060, %s2060
                %s2087 = sphi %s2071, %s2071
              $region177: #{residual_block.3} parent=173 // loop_header_branch
                %2084 = sbr.rel (%p2082) target = $region181
              $region178: #{residual_block.3} parent=173 // loop_body
                %v2088 = vld [vmem:[%s2086] sm:%s2079]
                %2089 = vst [vmem:[%s2087] sm:%s2079] %v2088
                %v2090 = vld [vmem:[%s2086 + $0x8] sm:%s2079]
                %2091 = vst [vmem:[%s2087 + $0x8] sm:%s2079] %v2090
                %v2092 = vld [vmem:[%s2086 + $0x10] sm:%s2079]
                %2093 = vst [vmem:[%s2087 + $0x10] sm:%s2079] %v2092
                %v2094 = vld [vmem:[%s2086 + $0x18] sm:%s2079]
                %2095 = vst [vmem:[%s2087 + $0x18] sm:%s2079] %v2094
                %v2096 = vld [vmem:[%s2086 + $0x20] sm:%s2079]
                %2097 = vst [vmem:[%s2087 + $0x20] sm:%s2079] %v2096
                %v2098 = vld [vmem:[%s2086 + $0x28] sm:%s2079]
                %2099 = vst [vmem:[%s2087 + $0x28] sm:%s2079] %v2098
                %v2100 = vld [vmem:[%s2086 + $0x30] sm:%s2079]
                %2101 = vst [vmem:[%s2087 + $0x30] sm:%s2079] %v2100
                %v2102 = vld [vmem:[%s2086 + $0x38] sm:%s2079]
                %2103 = vst [vmem:[%s2087 + $0x38] sm:%s2079] %v2102
                %v2104 = vld [vmem:[%s2086 + $0x40] sm:%s2079]
                %2105 = vst [vmem:[%s2087 + $0x100] sm:%s2079] %v2104
                %v2106 = vld [vmem:[%s2086 + $0x48] sm:%s2079]
                %2107 = vst [vmem:[%s2087 + $0x108] sm:%s2079] %v2106
                %v2108 = vld [vmem:[%s2086 + $0x50] sm:%s2079]
                %2109 = vst [vmem:[%s2087 + $0x110] sm:%s2079] %v2108
                %v2110 = vld [vmem:[%s2086 + $0x58] sm:%s2079]
                %2111 = vst [vmem:[%s2087 + $0x118] sm:%s2079] %v2110
                %v2112 = vld [vmem:[%s2086 + $0x60] sm:%s2079]
                %2113 = vst [vmem:[%s2087 + $0x120] sm:%s2079] %v2112
                %v2114 = vld [vmem:[%s2086 + $0x68] sm:%s2079]
                %2115 = vst [vmem:[%s2087 + $0x128] sm:%s2079] %v2114
                %v2116 = vld [vmem:[%s2086 + $0x70] sm:%s2079]
                %2117 = vst [vmem:[%s2087 + $0x130] sm:%s2079] %v2116
                %v2118 = vld [vmem:[%s2086 + $0x78] sm:%s2079]
                %2119 = vst [vmem:[%s2087 + $0x138] sm:%s2079] %v2118
              $region179: #{residual_block.3} parent=173 // loop_footer
                %s2085 = sadd.s32 1, %s2081
              $region180: #{residual_block.3} parent=173 // loop_footer_branch
                %2080 = sbr.rel target = $region176
              $region181: #{residual_block.3} parent=173 // loop_exit
                _
            $region174: #{residual_block.3} parent=165 // pred_fallthru
              _
          $region166: #{residual_block.3} parent=161 // pred_fallthru
            _
          %2164 = vnop
        $region162: #{residual_block.3} parent=145 // pred_fallthru
          _
        // Predicated region
        $region197: #{residual_block.3} parent=145 // pred_check
          %p2165 = pneg %p220
        $region198: #{residual_block.3} parent=145 // pred_check_branch
          %2167 = sbr.rel (%p2165) target = $region200
        $region199: #{residual_block.3} parent=145 // pred_region
          _
        $region200: #{residual_block.3} parent=145 // pred_fallthru
          _
      $region146: #{residual_block.3} parent=5 // pred_fallthru
        _
      %p2168 = scmp.le.s32.totalorder 2, %s14
      // Predicated region
      $region201: #{residual_block.3} parent=5 // pred_check
        %p2169 = pneg %p2168
      $region202: #{residual_block.3} parent=5 // pred_check_branch
        %2171 = sbr.rel (%p2169) target = $region204
      $region203: #{residual_block.3} parent=5 // pred_region
        %s2172 = ssub.s32 %s14, 2
        // Predicated region
        $region205: #{residual_block.3} parent=203 // pred_check
          %p2173 = pneg %p200
        $region206: #{residual_block.3} parent=203 // pred_check_branch
          %2175 = sbr.rel (%p2173) target = $region208
        $region207: #{residual_block.3} parent=203 // pred_region
          %s2176 = sand.u32 %s185, 1
          %s2177 = sand.u32 %s185, 1
          %s2178 = smul.addr %s2177, 128
          %s2179 = scalar_lea.vmem [#allocation6], %s2178
        $region208: #{residual_block.3} parent=203 // pred_fallthru
          _
        // Predicated region
        $region209: #{residual_block.3} parent=203 // pred_check
          %p2180 = pneg %p226
        $region210: #{residual_block.3} parent=203 // pred_check_branch
          %2182 = sbr.rel (%p2180) target = $region212
        $region211: #{residual_block.3} parent=203 // pred_region
          %p2183 = scmp.lt.s32.totalorder %s20, 3
          %s2184 = scalar_select %p2183, %s20, 3
          %s2185 = smul.addr %s2184, 2
          %s2186 = scalar_lea.vmem %s7, %s2185
        $region212: #{residual_block.3} parent=203 // pred_fallthru
          _
      $region204: #{residual_block.3} parent=5 // pred_fallthru
        _
    $region6: #{residual_block.3} parent=1 // loop_footer
      %s18 = sadd.s32 1, %s14
    $region7: #{residual_block.3} parent=1 // loop_footer_branch
      %13 = sbr.rel target = $region3
    $region8: #{residual_block.3} parent=1 // loop_exit
      _

// kernel: residual_block.4
$region0: #{residual_block.4}
  #allocation0 [shape = 'u32[]', space=smem, size = 0x4, offset = 0x4, fixed_abs, tag = 'smem constant byte address 0x4 - core index']
  #allocation1 [shape = 'u32[72,128]{1,0:T(1,128)}', space=vmem, size = 0x9000, scoped, tag = 'internal scratch']
  #allocation2 [shape = 'f32[2,6,18,8]{3,2,1,0:T(8,128)}', space=vmem, size = 0x24000, scoped, tag = 'scratch operand']
  %s0 = inlined_call_operand.vmem [shape: f32[2,16,16,8], index: 0, kind: input, shape index: {}, may-alias: {0,1,2}]
  %s1 = inlined_call_operand.vmem [shape: f32[2,16,16,8], index: 1, kind: input, shape index: {}, may-alias: {0,1,2}]
  %s2 = inlined_call_operand.vmem [shape: f32[2,16,16,8], index: 2, kind: input, shape index: {}, may-alias: {0,1,2}]
  %s3 = inlined_call_operand.vmem [shape: f32[9,8,8], index: 3, kind: input, shape index: {}]
  %s4 = inlined_call_operand.vmem [shape: f32[1,8], index: 4, kind: input, shape index: {}]
  %s5 = inlined_call_operand.vmem [shape: f32[1,8], index: 5, kind: input, shape index: {}]
  %s6 = inlined_call_operand.vmem [shape: f32[2,16,16,8], index: 6, kind: output, shape index: {0}]
  %s7 = inlined_call_operand.vmem [shape: f32[4,2,8], index: 7, kind: output, shape index: {1}]
  %8 = xla_tuple %s6, %s7
  %s9 = sld [smem:[#allocation0]]
  $region213: #{residual_block.4} parent=0
    _
  %s11 = ssub.s32 1, %s9
  %s12 = scalar_select 0, %s11, %s9
  $region1: #{residual_block.4} parent=0
    #allocation3 [shape = 'u8[32768]{0}', space=vmem, size = 0x8000, scoped, tag = 'input window, operand 0']
    #allocation4 [shape = 'u8[131072]{0}', space=vmem, size = 0x20000, scoped, tag = 'input window, operand 1']
    #allocation5 [shape = 'u8[32768]{0}', space=vmem, size = 0x8000, scoped, tag = 'input window, operand 2']
    #allocation6 [shape = 'u8[131072]{0}', space=vmem, size = 0x20000, scoped, tag = 'output window, operand 0']
    loop: start=0, step=1, limit=6
    $region2: #{residual_block.4} parent=1 // loop_pre_header
      _
    $region3: #{residual_block.4} parent=1 // loop_header
      %s14 = sphi 0, %s18
      %p15 = scmp.ge.s32.totalorder %s14, 6
      %s32 = sphi 0, %s34
      %s35 = sphi 0, %s32
      %s36 = sphi 0, %s35
      %s52 = sphi 0, %s36
      %s58 = sphi 0, %s60
      %s61 = sphi 0, %s58
      %s62 = sphi 0, %s61
      %s78 = sphi 0, %s62
      %s92 = sphi 0, %s94
      %s95 = sphi 0, %s92
      %s96 = sphi 0, %s95
      %s112 = sphi 0, %s96
      %s116 = sphi 0, %s116
      %s118 = sphi 0, %s116
      %s119 = sphi 0, %s118
      %s133 = sphi 0, %s119
      %s137 = sphi 0, %s137
      %s139 = sphi 0, %s137
      %s140 = sphi 0, %s139
      %s154 = sphi 0, %s140
      %s158 = sphi 0, %s158
      %s160 = sphi 0, %s158
      %s161 = sphi 0, %s160
      %s175 = sphi 0, %s161
      %s181 = sphi 0, %s183
      %s184 = sphi 0, %s181
      %s185 = sphi 0, %s184
      %s201 = sphi 0, %s185
      %s207 = sphi 0, %s209
      %s210 = sphi 0, %s207
      %s211 = sphi 0, %s210
      %s227 = sphi 0, %s211
    $region4: #{residual_block.4} parent=1 // loop_header_branch
      %17 = sbr.rel (%p15) target = $region8
    $region5: #{residual_block.4} parent=1 // loop_body
      %s19 = ssub.s32 %s14, 1
      %s20 = ssub.s32 %s14, 2
      %s21 = sadd.s32 %s14, 1
      %s22 = smul.u32 %s14, 4
      %s23 = ssub.s32 %s22, 1
      %p24 = scmp.gt.s32.totalorder %s23, 0
      %s25 = scalar_select %p24, %s23, 0
      %s26 = smul.u32 %s21, 4
      %s27 = ssub.s32 %s26, 1
      %p28 = scmp.gt.s32.totalorder %s27, 0
      %s29 = scalar_select %p28, %s27, 0
      %s30 = ssub.s32 %s25, %s29
      %p31 = scmp.eq.s32.totalorder %s30, 0
      %s33 = sadd.s32 %s32, 1
      %s34 = scalar_select %p31, %s32, %s33
      %p37 = pneg %p31
      %p38 = scmp.eq.s32.totalorder %s14, 3
      %p39 = por %p37, %p38
      %p40 = scmp.ne.s32.totalorder %s32, %s35
      %p41 = scmp.eq.s32.totalorder %s14, 0
      %p42 = por %p40, %p41
      %p43 = scmp.ne.s32.totalorder %s32, %s35
      %p44 = scmp.eq.s32.totalorder %s19, 3
      %p45 = por %p43, %p44
      %p46 = scmp.ne.s32.totalorder %s35, %s36
      %p47 = scmp.eq.s32.totalorder %s19, 0
      %p48 = por %p46, %p47
      %p49 = scmp.ne.s32.totalorder %s35, %s36
      %p50 = scmp.eq.s32.totalorder %s20, 3
      %p51 = por %p49, %p50
      %p53 = scmp.ne.s32.totalorder %s36, %s52
      %p54 = scmp.eq.s32.totalorder %s20, 0
      %p55 = por %p53, %p54
      %s56 = ssub.s32 %s14, %s21
      %p57 = scmp.eq.s32.totalorder %s56, 0
      %s59 = sadd.s32 %s58, 1
      %s60 = scalar_select %p57, %s58, %s59
      %p63 = pneg %p57
      %p64 = scmp.eq.s32.totalorder %s14, 3
      %p65 = por %p63, %p64
      %p66 = scmp.ne.s32.totalorder %s58, %s61
      %p67 = scmp.eq.s32.totalorder %s14, 0
      %p68 = por %p66, %p67
      %p69 = scmp.ne.s32.totalorder %s58, %s61
      %p70 = scmp.eq.s32.totalorder %s19, 3
      %p71 = por %p69, %p70
      %p72 = scmp.ne.s32.totalorder %s61, %s62
      %p73 = scmp.eq.s32.totalorder %s19, 0
      %p74 = por %p72, %p73
      %p75 = scmp.ne.s32.totalorder %s61, %s62
      %p76 = scmp.eq.s32.totalorder %s20, 3
      %p77 = por %p75, %p76
      %p79 = scmp.ne.s32.totalorder %s62, %s78
      %p80 = scmp.eq.s32.totalorder %s20, 0
      %p81 = por %p79, %p80
      %s82 = smul.u32 %s14, 4
      %s83 = sadd.s32 %s82, 4
      %p84 = scmp.lt.s32.totalorder %s83, 15
      %s85 = scalar_select %p84, %s83, 15
      %s86 = smul.u32 %s21, 4
      %s87 = sadd.s32 %s86, 4
      %p88 = scmp.lt.s32.totalorder %s87, 15
      %s89 = scalar_select %p88, %s87, 15
      %s90 = ssub.s32 %s85, %s89
      %p91 = scmp.eq.s32.totalorder %s90, 0
      %s93 = sadd.s32 %s92, 1
      %s94 = scalar_select %p91, %s92, %s93
      %p97 = pneg %p91
      %p98 = scmp.eq.s32.totalorder %s14, 3
      %p99 = por %p97, %p98
      %p100 = scmp.ne.s32.totalorder %s92, %s95
      %p101 = scmp.eq.s32.totalorder %s14, 0
      %p102 = por %p100, %p101
      %p103 = scmp.ne.s32.totalorder %s92, %s95
      %p104 = scmp.eq.s32.totalorder %s19, 3
      %p105 = por %p103, %p104
      %p106 = scmp.ne.s32.totalorder %s95, %s96
      %p107 = scmp.eq.s32.totalorder %s19, 0
      %p108 = por %p106, %p107
      %p109 = scmp.ne.s32.totalorder %s95, %s96
      %p110 = scmp.eq.s32.totalorder %s20, 3
      %p111 = por %p109, %p110
      %p113 = scmp.ne.s32.totalorder %s96, %s112
      %p114 = scmp.eq.s32.totalorder %s20, 0
      %p115 = por %p113, %p114
      %s117 = sadd.s32 %s116, 1
      %p120 = scmp.eq.s32.totalorder %s14, 3
      %p121 = scmp.ne.s32.totalorder %s116, %s118
      %p122 = scmp.eq.s32.totalorder %s14, 0
      %p123 = por %p121, %p122
      %p124 = scmp.ne.s32.totalorder %s116, %s118
      %p125 = scmp.eq.s32.totalorder %s19, 3
      %p126 = por %p124, %p125
      %p127 = scmp.ne.s32.totalorder %s118, %s119
      %p128 = scmp.eq.s32.totalorder %s19, 0
      %p129 = por %p127, %p128
      %p130 = scmp.ne.s32.totalorder %s118, %s119
      %p131 = scmp.eq.s32.totalorder %s20, 3
      %p132 = por %p130, %p131
      %p134 = scmp.ne.s32.totalorder %s119, %s133
      %p135 = scmp.eq.s32.totalorder %s20, 0
      %p136 = por %p134, %p135
      %s138 = sadd.s32 %s137, 1
      %p141 = scmp.eq.s32.totalorder %s14, 3
      %p142 = scmp.ne.s32.totalorder %s137, %s139
      %p143 = scmp.eq.s32.totalorder %s14, 0
      %p144 = por %p142, %p143
      %p145 = scmp.ne.s32.totalorder %s137, %s139
      %p146 = scmp.eq.s32.totalorder %s19, 3
      %p147 = por %p145, %p146
      %p148 = scmp.ne.s32.totalorder %s139, %s140
      %p149 = scmp.eq.s32.totalorder %s19, 0
      %p150 = por %p148, %p149
      %p151 = scmp.ne.s32.totalorder %s139, %s140
      %p152 = scmp.eq.s32.totalorder %s20, 3
      %p153 = por %p151, %p152
      %p155 = scmp.ne.s32.totalorder %s140, %s154
      %p156 = scmp.eq.s32.totalorder %s20, 0
      %p157 = por %p155, %p156
      %s159 = sadd.s32 %s158, 1
      %p162 = scmp.eq.s32.totalorder %s14, 3
      %p163 = scmp.ne.s32.totalorder %s158, %s160
      %p164 = scmp.eq.s32.totalorder %s14, 0
      %p165 = por %p163, %p164
      %p166 = scmp.ne.s32.totalorder %s158, %s160
      %p167 = scmp.eq.s32.totalorder %s19, 3
      %p168 = por %p166, %p167
      %p169 = scmp.ne.s32.totalorder %s160, %s161
      %p170 = scmp.eq.s32.totalorder %s19, 0
      %p171 = por %p169, %p170
      %p172 = scmp.ne.s32.totalorder %s160, %s161
      %p173 = scmp.eq.s32.totalorder %s20, 3
      %p174 = por %p172, %p173
      %p176 = scmp.ne.s32.totalorder %s161, %s175
      %p177 = scmp.eq.s32.totalorder %s20, 0
      %p178 = por %p176, %p177
      %s179 = ssub.s32 %s14, %s21
      %p180 = scmp.eq.s32.totalorder %s179, 0
      %s182 = sadd.s32 %s181, 1
      %s183 = scalar_select %p180, %s181, %s182
      %p186 = pneg %p180
      %p187 = scmp.eq.s32.totalorder %s14, 3
      %p188 = por %p186, %p187
      %p189 = scmp.ne.s32.totalorder %s181, %s184
      %p190 = scmp.eq.s32.totalorder %s14, 0
      %p191 = por %p189, %p190
      %p192 = scmp.ne.s32.totalorder %s181, %s184
      %p193 = scmp.eq.s32.totalorder %s19, 3
      %p194 = por %p192, %p193
      %p195 = scmp.ne.s32.totalorder %s184, %s185
      %p196 = scmp.eq.s32.totalorder %s19, 0
      %p197 = por %p195, %p196
      %p198 = scmp.ne.s32.totalorder %s184, %s185
      %p199 = scmp.eq.s32.totalorder %s20, 3
      %p200 = por %p198, %p199
      %p202 = scmp.ne.s32.totalorder %s185, %s201
      %p203 = scmp.eq.s32.totalorder %s20, 0
      %p204 = por %p202, %p203
      %s205 = ssub.s32 %s14, %s21
      %p206 = scmp.eq.s32.totalorder %s205, 0
      %s208 = sadd.s32 %s207, 1
      %s209 = scalar_select %p206, %s207, %s208
      %p212 = pneg %p206
      %p213 = scmp.eq.s32.totalorder %s14, 3
      %p214 = por %p212, %p213
      %p215 = scmp.ne.s32.totalorder %s207, %s210
      %p216 = scmp.eq.s32.totalorder %s14, 0
      %p217 = por %p215, %p216
      %p218 = scmp.ne.s32.totalorder %s207, %s210
      %p219 = scmp.eq.s32.totalorder %s19, 3
      %p220 = por %p218, %p219
      %p221 = scmp.ne.s32.totalorder %s210, %s211
      %p222 = scmp.eq.s32.totalorder %s19, 0
      %p223 = por %p221, %p222
      %p224 = scmp.ne.s32.totalorder %s210, %s211
      %p225 = scmp.eq.s32.totalorder %s20, 3
      %p226 = por %p224, %p225
      %p228 = scmp.ne.s32.totalorder %s211, %s227
      %p229 = scmp.eq.s32.totalorder %s20, 0
      %p230 = por %p228, %p229
      %p231 = scmp.le.s32.totalorder 1, %s14
      %p232 = scmp.lt.s32.totalorder %s14, 5
      %p233 = pnand %p231, %p232
      %p234 = pneg %p233
      // Predicated region
      $region9: #{residual_block.4} parent=5 // pred_check
        _
      $region10: #{residual_block.4} parent=5 // pred_check_branch
        %236 = sbr.rel (%p233) target = $region12
      $region11: #{residual_block.4} parent=5 // pred_region
        %s237 = ssub.s32 %s14, 1
        // Predicated region
        $region13: #{residual_block.4} parent=11 // pred_check
          %p238 = pneg %p129
        $region14: #{residual_block.4} parent=11 // pred_check_branch
          %240 = sbr.rel (%p238) target = $region16
        $region15: #{residual_block.4} parent=11 // pred_region
          _
        $region16: #{residual_block.4} parent=11 // pred_fallthru
          _
        // Predicated region
        $region17: #{residual_block.4} parent=11 // pred_check
          %p241 = pneg %p150
        $region18: #{residual_block.4} parent=11 // pred_check_branch
          %243 = sbr.rel (%p241) target = $region20
        $region19: #{residual_block.4} parent=11 // pred_region
          _
        $region20: #{residual_block.4} parent=11 // pred_fallthru
          _
        // Predicated region
        $region21: #{residual_block.4} parent=11 // pred_check
          %p244 = pneg %p171
        $region22: #{residual_block.4} parent=11 // pred_check_branch
          %246 = sbr.rel (%p244) target = $region24
        $region23: #{residual_block.4} parent=11 // pred_region
          _
        $region24: #{residual_block.4} parent=11 // pred_fallthru
          _
      $region12: #{residual_block.4} parent=5 // pred_fallthru
        _
      %p247 = scmp.lt.s32.totalorder %s14, 4
      // Predicated region
      $region25: #{residual_block.4} parent=5 // pred_check
        %p248 = pneg %p247
      $region26: #{residual_block.4} parent=5 // pred_check_branch
        %250 = sbr.rel (%p248) target = $region28
      $region27: #{residual_block.4} parent=5 // pred_region
        // Predicated region
        $region29: #{residual_block.4} parent=27 // pred_check
          %p251 = pneg %p42
        $region30: #{residual_block.4} parent=27 // pred_check_branch
          %253 = sbr.rel (%p251) target = $region32
        $region31: #{residual_block.4} parent=27 // pred_region
          %s254 = sand.u32 %s32, 1
          %s255 = sand.u32 %s32, 1
          %s256 = smul.addr %s255, 32
          %s257 = scalar_lea.vmem [#allocation3], %s256
          %s258 = smul.u32 %s14, 4
          %s259 = ssub.s32 %s258, 1
          %p260 = scmp.gt.s32.totalorder %s259, 0
          %s261 = scalar_select %p260, %s259, 0
          %s262 = smul.addr %s261, 2
          %s263 = smul.addr %s262, 8
          %s264 = scalar_lea.vmem %s0, %s263
          // Predicated region
          $region33: #{residual_block.4} parent=31 // pred_check
            _
          $region34: #{residual_block.4} parent=31 // pred_check_branch
            %266 = sbr.rel (0) target = $region36
          $region35: #{residual_block.4} parent=31 // pred_region
            // Predicated region
            $region37: #{residual_block.4} parent=35 // pred_check
              _
            $region38: #{residual_block.4} parent=35 // pred_check_branch
              %268 = sbr.rel (0) target = $region40
            $region39: #{residual_block.4} parent=35 // pred_region
              // Predicated region
              $region52: #{residual_block.4} parent=39 // pred_check
                _
              $region53: #{residual_block.4} parent=39 // pred_check_branch
                %290 = sbr.rel (0) target = $region55
              $region54: #{residual_block.4} parent=39 // pred_region
                loop: start=0, step=1, limit=1
                $region56: #{residual_block.4} parent=54 // loop_pre_header
                  _
                $region57: #{residual_block.4} parent=54 // loop_header
                  %s292 = sphi 0, %s296
                  %p293 = scmp.ge.s32.totalorder %s292, 1
                  %s297 = sphi %s264, %s264
                  %s298 = sphi %s257, %s257
                $region58: #{residual_block.4} parent=54 // loop_header_branch
                  %295 = sbr.rel (%p293) target = $region62
                $region59: #{residual_block.4} parent=54 // loop_body
                  %v299 = vld [vmem:[%s297] sm:$0xff]
                  %300 = vst [vmem:[%s298] sm:$0xff] %v299
                  %v301 = vld [vmem:[%s297 + $0x8] sm:$0xff]
                  %302 = vst [vmem:[%s298 + $0x8] sm:$0xff] %v301
                  %v303 = vld [vmem:[%s297 + $0x100] sm:$0xff]
                  %304 = vst [vmem:[%s298 + $0x10] sm:$0xff] %v303
                  %v305 = vld [vmem:[%s297 + $0x108] sm:$0xff]
                  %306 = vst [vmem:[%s298 + $0x18] sm:$0xff] %v305
                $region60: #{residual_block.4} parent=54 // loop_footer
                  %s296 = sadd.s32 1, %s292
                $region61: #{residual_block.4} parent=54 // loop_footer_branch
                  %291 = sbr.rel target = $region57
                $region62: #{residual_block.4} parent=54 // loop_exit
                  _
              $region55: #{residual_block.4} parent=39 // pred_fallthru
                _
              // Predicated region
              $region63: #{residual_block.4} parent=39 // pred_check
                _
              $region64: #{residual_block.4} parent=39 // pred_check_branch
                %308 = sbr.rel target = $region66
              $region65: #{residual_block.4} parent=39 // pred_region
                _
              $region66: #{residual_block.4} parent=39 // pred_fallthru
                _
            $region40: #{residual_block.4} parent=35 // pred_fallthru
              _
            // Predicated region
            $region41: #{residual_block.4} parent=35 // pred_check
              _
            $region42: #{residual_block.4} parent=35 // pred_check_branch
              %270 = sbr.rel target = $region44
            $region43: #{residual_block.4} parent=35 // pred_region
              %s272 = ssub.s32 256, 1
              loop: start=0, step=1, limit=1
              $region45: #{residual_block.4} parent=43 // loop_pre_header
                _
              $region46: #{residual_block.4} parent=43 // loop_header
                %s274 = sphi 0, %s278
                %p275 = scmp.ge.s32.totalorder %s274, 1
                %s279 = sphi %s264, %s264
                %s280 = sphi %s257, %s257
              $region47: #{residual_block.4} parent=43 // loop_header_branch
                %277 = sbr.rel (%p275) target = $region51
              $region48: #{residual_block.4} parent=43 // loop_body
                %v281 = vld [vmem:[%s279] sm:%s272]
                %282 = vst [vmem:[%s280] sm:%s272] %v281
                %v283 = vld [vmem:[%s279 + $0x8] sm:%s272]
                %284 = vst [vmem:[%s280 + $0x8] sm:%s272] %v283
                %v285 = vld [vmem:[%s279 + $0x100] sm:%s272]
                %286 = vst [vmem:[%s280 + $0x10] sm:%s272] %v285
                %v287 = vld [vmem:[%s279 + $0x108] sm:%s272]
                %288 = vst [vmem:[%s280 + $0x18] sm:%s272] %v287
              $region49: #{residual_block.4} parent=43 // loop_footer
                %s278 = sadd.s32 1, %s274
              $region50: #{residual_block.4} parent=43 // loop_footer_branch
                %273 = sbr.rel target = $region46
              $region51: #{residual_block.4} parent=43 // loop_exit
                _
            $region44: #{residual_block.4} parent=35 // pred_fallthru
              _
          $region36: #{residual_block.4} parent=31 // pred_fallthru
            _
          %309 = vnop
        $region32: #{residual_block.4} parent=27 // pred_fallthru
          _
        // Predicated region
        $region67: #{residual_block.4} parent=27 // pred_check
          %p310 = pneg %p68
        $region68: #{residual_block.4} parent=27 // pred_check_branch
          %312 = sbr.rel (%p310) target = $region70
        $region69: #{residual_block.4} parent=27 // pred_region
          %s313 = sand.u32 %s58, 1
          %s314 = sand.u32 %s58, 1
          %s315 = smul.addr %s314, 128
          %s316 = scalar_lea.vmem [#allocation4], %s315
          %s317 = smul.u32 4, %s14
          %s318 = smul.addr %s317, 2
          %s319 = smul.addr %s318, 8
          %s320 = scalar_lea.vmem %s1, %s319
          // Predicated region
          $region71: #{residual_block.4} parent=69 // pred_check
            _
          $region72: #{residual_block.4} parent=69 // pred_check_branch
            %322 = sbr.rel (0) target = $region74
          $region73: #{residual_block.4} parent=69 // pred_region
            // Predicated region
            $region75: #{residual_block.4} parent=73 // pred_check
              _
            $region76: #{residual_block.4} parent=73 // pred_check_branch
              %324 = sbr.rel (0) target = $region78
            $region77: #{residual_block.4} parent=73 // pred_region
              // Predicated region
              $region90: #{residual_block.4} parent=77 // pred_check
                _
              $region91: #{residual_block.4} parent=77 // pred_check_branch
                %370 = sbr.rel (0) target = $region93
              $region92: #{residual_block.4} parent=77 // pred_region
                loop: start=0, step=1, limit=1
                $region94: #{residual_block.4} parent=92 // loop_pre_header
                  _
                $region95: #{residual_block.4} parent=92 // loop_header
                  %s372 = sphi 0, %s376
                  %p373 = scmp.ge.s32.totalorder %s372, 1
                  %s377 = sphi %s320, %s320
                  %s378 = sphi %s316, %s316
                $region96: #{residual_block.4} parent=92 // loop_header_branch
                  %375 = sbr.rel (%p373) target = $region100
                $region97: #{residual_block.4} parent=92 // loop_body
                  %v379 = vld [vmem:[%s377] sm:$0xff]
                  %380 = vst [vmem:[%s378] sm:$0xff] %v379
                  %v381 = vld [vmem:[%s377 + $0x8] sm:$0xff]
                  %382 = vst [vmem:[%s378 + $0x8] sm:$0xff] %v381
                  %v383 = vld [vmem:[%s377 + $0x10] sm:$0xff]
                  %384 = vst [vmem:[%s378 + $0x10] sm:$0xff] %v383
                  %v385 = vld [vmem:[%s377 + $0x18] sm:$0xff]
                  %386 = vst [vmem:[%s378 + $0x18] sm:$0xff] %v385
                  %v387 = vld [vmem:[%s377 + $0x20] sm:$0xff]
                  %388 = vst [vmem:[%s378 + $0x20] sm:$0xff] %v387
                  %v389 = vld [vmem:[%s377 + $0x28] sm:$0xff]
                  %390 = vst [vmem:[%s378 + $0x28] sm:$0xff] %v389
                  %v391 = vld [vmem:[%s377 + $0x30] sm:$0xff]
                  %392 = vst [vmem:[%s378 + $0x30] sm:$0xff] %v391
                  %v393 = vld [vmem:[%s377 + $0x38] sm:$0xff]
                  %394 = vst [vmem:[%s378 + $0x38] sm:$0xff] %v393
                  %v395 = vld [vmem:[%s377 + $0x100] sm:$0xff]
                  %396 = vst [vmem:[%s378 + $0x40] sm:$0xff] %v395
                  %v397 = vld [vmem:[%s377 + $0x108] sm:$0xff]
                  %398 = vst [vmem:[%s378 + $0x48] sm:$0xff] %v397
                  %v399 = vld [vmem:[%s377 + $0x110] sm:$0xff]
                  %400 = vst [vmem:[%s378 + $0x50] sm:$0xff] %v399
                  %v401 = vld [vmem:[%s377 + $0x118] sm:$0xff]
                  %402 = vst [vmem:[%s378 + $0x58] sm:$0xff] %v401
                  %v403 = vld [vmem:[%s377 + $0x120] sm:$0xff]
                  %404 = vst [vmem:[%s378 + $0x60] sm:$0xff] %v403
                  %v405 = vld [vmem:[%s377 + $0x128] sm:$0xff]
                  %406 = vst [vmem:[%s378 + $0x68] sm:$0xff] %v405
                  %v407 = vld [vmem:[%s377 + $0x130] sm:$0xff]
                  %408 = vst [vmem:[%s378 + $0x70] sm:$0xff] %v407
                  %v409 = vld [vmem:[%s377 + $0x138] sm:$0xff]
                  %410 = vst [vmem:[%s378 + $0x78] sm:$0xff] %v409
                $region98: #{residual_block.4} parent=92 // loop_footer
                  %s376 = sadd.s32 1, %s372
                $region99: #{residual_block.4} parent=92 // loop_footer_branch
                  %371 = sbr.rel target = $region95
                $region100: #{residual_block.4} parent=92 // loop_exit
                  _
              $region93: #{residual_block.4} parent=77 // pred_fallthru
                _
              // Predicated region
              $region101: #{residual_block.4} parent=77 // pred_check
                _
              $region102: #{residual_block.4} parent=77 // pred_check_branch
                %412 = sbr.rel target = $region104
              $region103: #{residual_block.4} parent=77 // pred_region
                _
              $region104: #{residual_block.4} parent=77 // pred_fallthru
                _
            $region78: #{residual_block.4} parent=73 // pred_fallthru
              _
            // Predicated region
            $region79: #{residual_block.4} parent=73 // pred_check
              _
            $region80: #{residual_block.4} parent=73 // pred_check_branch
              %326 = sbr.rel target = $region82
            $region81: #{residual_block.4} parent=73 // pred_region
              %s328 = ssub.s32 256, 1
              loop: start=0, step=1, limit=1
              $region83: #{residual_block.4} parent=81 // loop_pre_header
                _
              $region84: #{residual_block.4} parent=81 // loop_header
                %s330 = sphi 0, %s334
                %p331 = scmp.ge.s32.totalorder %s330, 1
                %s335 = sphi %s320, %s320
                %s336 = sphi %s316, %s316
              $region85: #{residual_block.4} parent=81 // loop_header_branch
                %333 = sbr.rel (%p331) target = $region89
              $region86: #{residual_block.4} parent=81 // loop_body
                %v337 = vld [vmem:[%s335] sm:%s328]
                %338 = vst [vmem:[%s336] sm:%s328] %v337
                %v339 = vld [vmem:[%s335 + $0x8] sm:%s328]
                %340 = vst [vmem:[%s336 + $0x8] sm:%s328] %v339
                %v341 = vld [vmem:[%s335 + $0x10] sm:%s328]
                %342 = vst [vmem:[%s336 + $0x10] sm:%s328] %v341
                %v343 = vld [vmem:[%s335 + $0x18] sm:%s328]
                %344 = vst [vmem:[%s336 + $0x18] sm:%s328] %v343
                %v345 = vld [vmem:[%s335 + $0x20] sm:%s328]
                %346 = vst [vmem:[%s336 + $0x20] sm:%s328] %v345
                %v347 = vld [vmem:[%s335 + $0x28] sm:%s328]
                %348 = vst [vmem:[%s336 + $0x28] sm:%s328] %v347
                %v349 = vld [vmem:[%s335 + $0x30] sm:%s328]
                %350 = vst [vmem:[%s336 + $0x30] sm:%s328] %v349
                %v351 = vld [vmem:[%s335 + $0x38] sm:%s328]
                %352 = vst [vmem:[%s336 + $0x38] sm:%s328] %v351
                %v353 = vld [vmem:[%s335 + $0x100] sm:%s328]
                %354 = vst [vmem:[%s336 + $0x40] sm:%s328] %v353
                %v355 = vld [vmem:[%s335 + $0x108] sm:%s328]
                %356 = vst [vmem:[%s336 + $0x48] sm:%s328] %v355
                %v357 = vld [vmem:[%s335 + $0x110] sm:%s328]
                %358 = vst [vmem:[%s336 + $0x50] sm:%s328] %v357
                %v359 = vld [vmem:[%s335 + $0x118] sm:%s328]
                %360 = vst [vmem:[%s336 + $0x58] sm:%s328] %v359
                %v361 = vld [vmem:[%s335 + $0x120] sm:%s328]
                %362 = vst [vmem:[%s336 + $0x60] sm:%s328] %v361
                %v363 = vld [vmem:[%s335 + $0x128] sm:%s328]
                %364 = vst [vmem:[%s336 + $0x68] sm:%s328] %v363
                %v365 = vld [vmem:[%s335 + $0x130] sm:%s328]
                %366 = vst [vmem:[%s336 + $0x70] sm:%s328] %v365
                %v367 = vld [vmem:[%s335 + $0x138] sm:%s328]
                %368 = vst [vmem:[%s336 + $0x78] sm:%s328] %v367
              $region87: #{residual_block.4} parent=81 // loop_footer
                %s334 = sadd.s32 1, %s330
              $region88: #{residual_block.4} parent=81 // loop_footer_branch
                %329 = sbr.rel target = $region84
              $region89: #{residual_block.4} parent=81 // loop_exit
                _
            $region82: #{residual_block.4} parent=73 // pred_fallthru
              _
          $region74: #{residual_block.4} parent=69 // pred_fallthru
            _
          %413 = vnop
        $region70: #{residual_block.4} parent=27 // pred_fallthru
          _
        // Predicated region
        $region105: #{residual_block.4} parent=27 // pred_check
          %p414 = pneg %p102
        $region106: #{residual_block.4} parent=27 // pred_check_branch
          %416 = sbr.rel (%p414) target = $region108
        $region107: #{residual_block.4} parent=27 // pred_region
          %s417 = sand.u32 %s92, 1
          %s418 = sand.u32 %s92, 1
          %s419 = smul.addr %s418, 32
          %s420 = scalar_lea.vmem [#allocation5], %s419
          %s421 = smul.u32 %s14, 4
          %s422 = sadd.s32 %s421, 4
          %p423 = scmp.lt.s32.totalorder %s422, 15
          %s424 = scalar_select %p423, %s422, 15
          %s425 = smul.addr %s424, 2
          %s426 = smul.addr %s425, 8
          %s427 = scalar_lea.vmem %s2, %s426
          // Predicated region
          $region109: #{residual_block.4} parent=107 // pred_check
            _
          $region110: #{residual_block.4} parent=107 // pred_check_branch
            %429 = sbr.rel (0) target = $region112
          $region111: #{residual_block.4} parent=107 // pred_region
            // Predicated region
            $region113: #{residual_block.4} parent=111 // pred_check
              _
            $region114: #{residual_block.4} parent=111 // pred_check_branch
              %431 = sbr.rel (0) target = $region116
            $region115: #{residual_block.4} parent=111 // pred_region
              // Predicated region
              $region128: #{residual_block.4} parent=115 // pred_check
                _
              $region129: #{residual_block.4} parent=115 // pred_check_branch
                %453 = sbr.rel (0) target = $region131
              $region130: #{residual_block.4} parent=115 // pred_region
                loop: start=0, step=1, limit=1
                $region132: #{residual_block.4} parent=130 // loop_pre_header
                  _
                $region133: #{residual_block.4} parent=130 // loop_header
                  %s455 = sphi 0, %s459
                  %p456 = scmp.ge.s32.totalorder %s455, 1
                  %s460 = sphi %s427, %s427
                  %s461 = sphi %s420, %s420
                $region134: #{residual_block.4} parent=130 // loop_header_branch
                  %458 = sbr.rel (%p456) target = $region138
                $region135: #{residual_block.4} parent=130 // loop_body
                  %v462 = vld [vmem:[%s460] sm:$0xff]
                  %463 = vst [vmem:[%s461] sm:$0xff] %v462
                  %v464 = vld [vmem:[%s460 + $0x8] sm:$0xff]
                  %465 = vst [vmem:[%s461 + $0x8] sm:$0xff] %v464
                  %v466 = vld [vmem:[%s460 + $0x100] sm:$0xff]
                  %467 = vst [vmem:[%s461 + $0x10] sm:$0xff] %v466
                  %v468 = vld [vmem:[%s460 + $0x108] sm:$0xff]
                  %469 = vst [vmem:[%s461 + $0x18] sm:$0xff] %v468
                $region136: #{residual_block.4} parent=130 // loop_footer
                  %s459 = sadd.s32 1, %s455
                $region137: #{residual_block.4} parent=130 // loop_footer_branch
                  %454 = sbr.rel target = $region133
                $region138: #{residual_block.4} parent=130 // loop_exit
                  _
              $region131: #{residual_block.4} parent=115 // pred_fallthru
                _
              // Predicated region
              $region139: #{residual_block.4} parent=115 // pred_check
                _
              $region140: #{residual_block.4} parent=115 // pred_check_branch
                %471 = sbr.rel target = $region142
              $region141: #{residual_block.4} parent=115 // pred_region
                _
              $region142: #{residual_block.4} parent=115 // pred_fallthru
                _
            $region116: #{residual_block.4} parent=111 // pred_fallthru
              _
            // Predicated region
            $region117: #{residual_block.4} parent=111 // pred_check
              _
            $region118: #{residual_block.4} parent=111 // pred_check_branch
              %433 = sbr.rel target = $region120
            $region119: #{residual_block.4} parent=111 // pred_region
              %s435 = ssub.s32 256, 1
              loop: start=0, step=1, limit=1
              $region121: #{residual_block.4} parent=119 // loop_pre_header
                _
              $region122: #{residual_block.4} parent=119 // loop_header
                %s437 = sphi 0, %s441
                %p438 = scmp.ge.s32.totalorder %s437, 1
                %s442 = sphi %s427, %s427
                %s443 = sphi %s420, %s420
              $region123: #{residual_block.4} parent=119 // loop_header_branch
                %440 = sbr.rel (%p438) target = $region127
              $region124: #{residual_block.4} parent=119 // loop_body
                %v444 = vld [vmem:[%s442] sm:%s435]
                %445 = vst [vmem:[%s443] sm:%s435] %v444
                %v446 = vld [vmem:[%s442 + $0x8] sm:%s435]
                %447 = vst [vmem:[%s443 + $0x8] sm:%s435] %v446
                %v448 = vld [vmem:[%s442 + $0x100] sm:%s435]
                %449 = vst [vmem:[%s443 + $0x10] sm:%s435] %v448
                %v450 = vld [vmem:[%s442 + $0x108] sm:%s435]
                %451 = vst [vmem:[%s443 + $0x18] sm:%s435] %v450
              $region125: #{residual_block.4} parent=119 // loop_footer
                %s441 = sadd.s32 1, %s437
              $region126: #{residual_block.4} parent=119 // loop_footer_branch
                %436 = sbr.rel target = $region122
              $region127: #{residual_block.4} parent=119 // loop_exit
                _
            $region120: #{residual_block.4} parent=111 // pred_fallthru
              _
          $region112: #{residual_block.4} parent=107 // pred_fallthru
            _
          %472 = vnop
        $region108: #{residual_block.4} parent=27 // pred_fallthru
          _
      $region28: #{residual_block.4} parent=5 // pred_fallthru
        _
      %p473 = scmp.le.s32.totalorder 1, %s14
      %p474 = scmp.lt.s32.totalorder %s14, 5
      %p475 = pnand %p473, %p474
      %p476 = pneg %p475
      // Predicated region
      $region143: #{residual_block.4} parent=5 // pred_check
        _
      $region144: #{residual_block.4} parent=5 // pred_check_branch
        %478 = sbr.rel (%p475) target = $region146
      $region145: #{residual_block.4} parent=5 // pred_region
        %s479 = ssub.s32 %s14, 1
        %s480 = sand.u32 %s35, 1
        %s481 = sand.u32 %s35, 1
        %s482 = smul.addr %s481, 32
        %s483 = scalar_lea.vmem [#allocation3], %s482
        // Predicated region
        $region147: #{residual_block.4} parent=145 // pred_check
          %p484 = pneg %p48
        $region148: #{residual_block.4} parent=145 // pred_check_branch
          %486 = sbr.rel (%p484) target = $region150
        $region149: #{residual_block.4} parent=145 // pred_region
          _
        $region150: #{residual_block.4} parent=145 // pred_fallthru
          _
        %s487 = sand.u32 %s61, 1
        %s488 = sand.u32 %s61, 1
        %s489 = smul.addr %s488, 128
        %s490 = scalar_lea.vmem [#allocation4], %s489
        // Predicated region
        $region151: #{residual_block.4} parent=145 // pred_check
          %p491 = pneg %p74
        $region152: #{residual_block.4} parent=145 // pred_check_branch
          %493 = sbr.rel (%p491) target = $region154
        $region153: #{residual_block.4} parent=145 // pred_region
          _
        $region154: #{residual_block.4} parent=145 // pred_fallthru
          _
        %s494 = sand.u32 %s95, 1
        %s495 = sand.u32 %s95, 1
        %s496 = smul.addr %s495, 32
        %s497 = scalar_lea.vmem [#allocation5], %s496
        // Predicated region
        $region155: #{residual_block.4} parent=145 // pred_check
          %p498 = pneg %p108
        $region156: #{residual_block.4} parent=145 // pred_check_branch
          %500 = sbr.rel (%p498) target = $region158
        $region157: #{residual_block.4} parent=145 // pred_region
          _
        $region158: #{residual_block.4} parent=145 // pred_fallthru
          _
        %s501 = sand.u32 %s35, 1
        %s502 = sand.u32 %s35, 1
        %s503 = smul.addr %s502, 32
        %s504 = scalar_lea.vmem [#allocation3], %s503
        %p505 = pneg %p48
        %p506 = pneg %p45
        %s507 = sand.u32 %s61, 1
        %s508 = sand.u32 %s61, 1
        %s509 = smul.addr %s508, 128
        %s510 = scalar_lea.vmem [#allocation4], %s509
        %p511 = pneg %p74
        %p512 = pneg %p71
        %s513 = sand.u32 %s95, 1
        %s514 = sand.u32 %s95, 1
        %s515 = smul.addr %s514, 32
        %s516 = scalar_lea.vmem [#allocation5], %s515
        %p517 = pneg %p108
        %p518 = pneg %p105
        %p519 = pneg %p129
        %p520 = pneg %p126
        %p521 = pneg %p150
        %p522 = pneg %p147
        %p523 = pneg %p171
        %p524 = pneg %p168
        %p525 = pneg %p197
        %p526 = pneg %p194
        %s527 = sand.u32 %s184, 1
        %s528 = sand.u32 %s184, 1
        %s529 = smul.addr %s528, 128
        %s530 = scalar_lea.vmem [#allocation6], %s529
        %p531 = pneg %p223
        %p532 = pneg %p220
        %p533 = scmp.lt.s32.totalorder %s19, 3
        %s534 = scalar_select %p533, %s19, 3
        %s535 = smul.addr %s534, 2
        %s536 = scalar_lea.vmem %s7, %s535
        %s537 = smul.u32 %s19, 4
        %s538 = ssub.s32 %s537, 1
        %p539 = scmp.gt.s32.totalorder %s538, 0
        %s540 = scalar_select %p539, %s538, 0
        %s541 = smul.u32 4, %s19
        %s542 = smul.u32 %s19, 4
        %s543 = sadd.s32 %s542, 4
        %p544 = scmp.lt.s32.totalorder %s543, 15
        %s545 = scalar_select %p544, %s543, 15
        %s546 = smul.u32 4, %s19
        %p547 = scmp.lt.s32.totalorder %s19, 3
        %s548 = scalar_select %p547, %s19, 3
        %s549 = smul.addr %s548, 2
        %s550 = scalar_lea.vmem %s7, %s549
        %v551 = vld [vmem:[%s4] sm:$0x1]
        %v552 = vld [vmem:[%s5] sm:$0x1]
        %v553 = vld [vmem:[%s483] sm:$0xff]
        %v554 = vld [vmem:[%s483 + $0x8] sm:$0xff]
        %v555 = vld [vmem:[%s483 + $0x10] sm:$0xff]
        %v556 = vld [vmem:[%s483 + $0x18] sm:$0xff]
        %v558 = vperm.slane %v551, 0
        %v560 = vmul.f32 %v553, %v558
        %v561 = vmul.f32 %v554, %v558
        %v562 = vmul.f32 %v555, %v558
        %v563 = vmul.f32 %v556, %v558
        %v565 = vperm.slane %v552, 0
        %v567 = vadd.f32 %v560, %v565
        %v568 = vadd.f32 %v561, %v565
        %v569 = vadd.f32 %v562, %v565
        %v570 = vadd.f32 %v563, %v565
        %v571 = vmax.f32 %v567, 0.0
        %v572 = vmax.f32 %v568, 0.0
        %v573 = vmax.f32 %v569, 0.0
        %v574 = vmax.f32 %v570, 0.0
        %v575 = vld [vmem:[%s490] sm:$0xff]
        %v576 = vld [vmem:[%s490 + $0x8] sm:$0xff]
        %v577 = vld [vmem:[%s490 + $0x10] sm:$0xff]
        %v578 = vld [vmem:[%s490 + $0x18] sm:$0xff]
        %v579 = vld [vmem:[%s490 + $0x20] sm:$0xff]
        %v580 = vld [vmem:[%s490 + $0x28] sm:$0xff]
        %v581 = vld [vmem:[%s490 + $0x30] sm:$0xff]
        %v582 = vld [vmem:[%s490 + $0x38] sm:$0xff]
        %v583 = vld [vmem:[%s490 + $0x40] sm:$0xff]
        %v584 = vld [vmem:[%s490 + $0x48] sm:$0xff]
        %v585 = vld [vmem:[%s490 + $0x50] sm:$0xff]
        %v586 = vld [vmem:[%s490 + $0x58] sm:$0xff]
        %v587 = vld [vmem:[%s490 + $0x60] sm:$0xff]
        %v588 = vld [vmem:[%s490 + $0x68] sm:$0xff]
        %v589 = vld [vmem:[%s490 + $0x70] sm:$0xff]
        %v590 = vld [vmem:[%s490 + $0x78] sm:$0xff]
        %v591 = vmul.f32 %v575, %v558
        %v592 = vmul.f32 %v576, %v558
        %v593 = vmul.f32 %v577, %v558
        %v594 = vmul.f32 %v578, %v558
        %v595 = vmul.f32 %v579, %v558
        %v596 = vmul.f32 %v580, %v558
        %v597 = vmul.f32 %v581, %v558
        %v598 = vmul.f32 %v582, %v558
        %v599 = vmul.f32 %v583, %v558
        %v600 = vmul.f32 %v584, %v558
        %v601 = vmul.f32 %v585, %v558
        %v602 = vmul.f32 %v586, %v558
        %v603 = vmul.f32 %v587, %v558
        %v604 = vmul.f32 %v588, %v558
        %v605 = vmul.f32 %v589, %v558
        %v606 = vmul.f32 %v590, %v558
        %v607 = vadd.f32 %v591, %v565
        %v608 = vadd.f32 %v592, %v565
        %v609 = vadd.f32 %v593, %v565
        %v610 = vadd.f32 %v594, %v565
        %v611 = vadd.f32 %v595, %v565
        %v612 = vadd.f32 %v596, %v565
        %v613 = vadd.f32 %v597, %v565
        %v614 = vadd.f32 %v598, %v565
        %v615 = vadd.f32 %v599, %v565
        %v616 = vadd.f32 %v600, %v565
        %v617 = vadd.f32 %v601, %v565
        %v618 = vadd.f32 %v602, %v565
        %v619 = vadd.f32 %v603, %v565
        %v620 = vadd.f32 %v604, %v565
        %v621 = vadd.f32 %v605, %v565
        %v622 = vadd.f32 %v606, %v565
        %v623 = vmax.f32 %v607, 0.0
        %v624 = vmax.f32 %v608, 0.0
        %v625 = vmax.f32 %v609, 0.0
        %v626 = vmax.f32 %v610, 0.0
        %v627 = vmax.f32 %v611, 0.0
        %v628 = vmax.f32 %v612, 0.0
        %v629 = vmax.f32 %v613, 0.0
        %v630 = vmax.f32 %v614, 0.0
        %v631 = vmax.f32 %v615, 0.0
        %v632 = vmax.f32 %v616, 0.0
        %v633 = vmax.f32 %v617, 0.0
        %v634 = vmax.f32 %v618, 0.0
        %v635 = vmax.f32 %v619, 0.0
        %v636 = vmax.f32 %v620, 0.0
        %v637 = vmax.f32 %v621, 0.0
        %v638 = vmax.f32 %v622, 0.0
        %v639 = vld [vmem:[%s497] sm:$0xff]
        %v640 = vld [vmem:[%s497 + $0x8] sm:$0xff]
        %v641 = vld [vmem:[%s497 + $0x10] sm:$0xff]
        %v642 = vld [vmem:[%s497 + $0x18] sm:$0xff]
        %v643 = vmul.f32 %v639, %v558
        %v644 = vmul.f32 %v640, %v558
        %v645 = vmul.f32 %v641, %v558
        %v646 = vmul.f32 %v642, %v558
        %v647 = vadd.f32 %v643, %v565
        %v648 = vadd.f32 %v644, %v565
        %v649 = vadd.f32 %v645, %v565
        %v650 = vadd.f32 %v646, %v565
        %v651 = vmax.f32 %v647, 0.0
        %v652 = vmax.f32 %v648, 0.0
        %v653 = vmax.f32 %v649, 0.0
        %v654 = vmax.f32 %v650, 0.0
        %p655 = scmp.eq.s32.totalorder %s19, 0
        %s656 = scalar_select %p655, 0.0, 1.0
        %v657 = vstv %s656
        %v658 = vmul.f32 %v571, %v657
        %v659 = vmul.f32 %v572, %v657
        %v660 = vmul.f32 %v573, %v657
        %v661 = vmul.f32 %v574, %v657
        %p662 = scmp.eq.s32.totalorder %s19, 3
        %s663 = scalar_select %p662, 0.0, 1.0
        %v664 = vstv %s663
        %v665 = vmul.f32 %v651, %v664
        %v666 = vmul.f32 %v652, %v664
        %v667 = vmul.f32 %v653, %v664
        %v668 = vmul.f32 %v654, %v664
        %vm669 = vcmask 57344
        %670 = vst.msk [vmem:[#allocation2] sm:$0x1] %vm669, 0.0
        %671 = vst.msk [vmem:[#allocation2 + $0x18] sm:$0x1] %vm669, 0.0
        %672 = vst.msk [vmem:[#allocation2 + $0x30] sm:$0x1] %vm669, 0.0
        %673 = vst.msk [vmem:[#allocation2 + $0x48] sm:$0x1] %vm669, 0.0
        %674 = vst.msk [vmem:[#allocation2 + $0x60] sm:$0x1] %vm669, 0.0
        %675 = vst.msk [vmem:[#allocation2 + $0x78] sm:$0x1] %vm669, 0.0
        %676 = vst.msk [vmem:[#allocation2 + $0x90] sm:$0x1] %vm669, 0.0
        %677 = vst.msk [vmem:[#allocation2 + $0xa8] sm:$0x1] %vm669, 0.0
        %678 = vst.msk [vmem:[#allocation2 + $0xc0] sm:$0x1] %vm669, 0.0
        %679 = vst.msk [vmem:[#allocation2 + $0xd8] sm:$0x1] %vm669, 0.0
        %680 = vst.msk [vmem:[#allocation2 + $0xf0] sm:$0x1] %vm669, 0.0
        %681 = vst.msk [vmem:[#allocation2 + $0x108] sm:$0x1] %vm669, 0.0
        %682 = vst.msk [vmem:[#allocation2 + $0x11] sm:$0x1] %vm669, 0.0
        %683 = vst.msk [vmem:[#allocation2 + $0x29] sm:$0x1] %vm669, 0.0
        %684 = vst.msk [vmem:[#allocation2 + $0x41] sm:$0x1] %vm669, 0.0
        %685 = vst.msk [vmem:[#allocation2 + $0x59] sm:$0x1] %vm669, 0.0
        %686 = vst.msk [vmem:[#allocation2 + $0x71] sm:$0x1] %vm669, 0.0
        %687 = vst.msk [vmem:[#allocation2 + $0x89] sm:$0x1] %vm669, 0.0
        %688 = vst.msk [vmem:[#allocation2 + $0xa1] sm:$0x1] %vm669, 0.0
        %689 = vst.msk [vmem:[#allocation2 + $0xb9] sm:$0x1] %vm669, 0.0
        %690 = vst.msk [vmem:[#allocation2 + $0xd1] sm:$0x1] %vm669, 0.0
        %691 = vst.msk [vmem:[#allocation2 + $0xe9] sm:$0x1] %vm669, 0.0
        %692 = vst.msk [vmem:[#allocation2 + $0x101] sm:$0x1] %vm669, 0.0
        %693 = vst.msk [vmem:[#allocation2 + $0x119] sm:$0x1] %vm669, 0.0
        %vm694 = vcmask 64512
        %695 = vst.msk [vmem:[#allocation2 + $0x1] sm:$0xff] %vm694, %v658
        %696 = vst.msk [vmem:[#allocation2 + $0x9] sm:$0xff] %vm694, %v659
        %697 = vst.msk [vmem:[#allocation2 + $0x91] sm:$0xff] %vm694, %v660
        %698 = vst.msk [vmem:[#allocation2 + $0x99] sm:$0xff] %vm694, %v661
        %s699 = scalar_lea.vmem [#allocation2], 24
        %700 = vst.msk [vmem:[%s699 + $0x1] sm:$0xff] %vm694, %v623
        %701 = vst.msk [vmem:[%s699 + $0x9] sm:$0xff] %vm694, %v624
        %702 = vst.msk [vmem:[%s699 + $0x19] sm:$0xff] %vm694, %v625
        %703 = vst.msk [vmem:[%s699 + $0x21] sm:$0xff] %vm694, %v626
        %704 = vst.msk [vmem:[%s699 + $0x31] sm:$0xff] %vm694, %v627
        %705 = vst.msk [vmem:[%s699 + $0x39] sm:$0xff] %vm694, %v628
        %706 = vst.msk [vmem:[%s699 + $0x49] sm:$0xff] %vm694, %v629
        %707 = vst.msk [vmem:[%s699 + $0x51] sm:$0xff] %vm694, %v630
        %708 = vst.msk [vmem:[%s699 + $0x91] sm:$0xff] %vm694, %v631
        %709 = vst.msk [vmem:[%s699 + $0x99] sm:$0xff] %vm694, %v632
        %710 = vst.msk [vmem:[%s699 + $0xa9] sm:$0xff] %vm694, %v633
        %711 = vst.msk [vmem:[%s699 + $0xb1] sm:$0xff] %vm694, %v634
        %712 = vst.msk [vmem:[%s699 + $0xc1] sm:$0xff] %vm694, %v635
        %713 = vst.msk [vmem:[%s699 + $0xc9] sm:$0xff] %vm694, %v636
        %714 = vst.msk [vmem:[%s699 + $0xd9] sm:$0xff] %vm694, %v637
        %715 = vst.msk [vmem:[%s699 + $0xe1] sm:$0xff] %vm694, %v638
        %s716 = scalar_lea.vmem [#allocation2], 120
        %717 = vst.msk [vmem:[%s716 + $0x1] sm:$0xff] %vm694, %v665
        %718 = vst.msk [vmem:[%s716 + $0x9] sm:$0xff] %vm694, %v666
        %719 = vst.msk [vmem:[%s716 + $0x91] sm:$0xff] %vm694, %v667
        %720 = vst.msk [vmem:[%s716 + $0x99] sm:$0xff] %vm694, %v668
        %v721 = vld [vmem:[#allocation2] sm:$0xff]
        %v722 = vld [vmem:[#allocation2 + $0x8] sm:$0xff]
        %v723 = vld [vmem:[#allocation2 + $0x18] sm:$0xff]
        %v724 = vld [vmem:[#allocation2 + $0x20] sm:$0xff]
        %v725 = vld [vmem:[#allocation2 + $0x30] sm:$0xff]
        %v726 = vld [vmem:[#allocation2 + $0x38] sm:$0xff]
        %v727 = vld [vmem:[#allocation2 + $0x48] sm:$0xff]
        %v728 = vld [vmem:[#allocation2 + $0x50] sm:$0xff]
        %v729 = vld [vmem:[#allocation2 + $0x90] sm:$0xff]
        %v730 = vld [vmem:[#allocation2 + $0x98] sm:$0xff]
        %v731 = vld [vmem:[#allocation2 + $0xa8] sm:$0xff]
        %v732 = vld [vmem:[#allocation2 + $0xb0] sm:$0xff]
        %v733 = vld [vmem:[#allocation2 + $0xc0] sm:$0xff]
        %v734 = vld [vmem:[#allocation2 + $0xc8] sm:$0xff]
        %v735 = vld [vmem:[#allocation2 + $0xd8] sm:$0xff]
        %v736 = vld [vmem:[#allocation2 + $0xe0] sm:$0xff]
        %v737 = vld [vmem:[%s3] sm:$0xff]
        %v738 = vld [vmem:[#allocation2 + $0x1] sm:$0xff]
        %v739 = vld [vmem:[#allocation2 + $0x9] sm:$0xff]
        %v740 = vld [vmem:[#allocation2 + $0x19] sm:$0xff]
        %v741 = vld [vmem:[#allocation2 + $0x21] sm:$0xff]
        %v742 = vld [vmem:[#allocation2 + $0x31] sm:$0xff]
        %v743 = vld [vmem:[#allocation2 + $0x39] sm:$0xff]
        %v744 = vld [vmem:[#allocation2 + $0x49] sm:$0xff]
        %v745 = vld [vmem:[#allocation2 + $0x51] sm:$0xff]
        %v746 = vld [vmem:[#allocation2 + $0x91] sm:$0xff]
        %v747 = vld [vmem:[#allocation2 + $0x99] sm:$0xff]
        %v748 = vld [vmem:[#allocation2 + $0xa9] sm:$0xff]
        %v749 = vld [vmem:[#allocation2 + $0xb1] sm:$0xff]
        %v750 = vld [vmem:[#allocation2 + $0xc1] sm:$0xff]
        %v751 = vld [vmem:[#allocation2 + $0xc9] sm:$0xff]
        %v752 = vld [vmem:[#allocation2 + $0xd9] sm:$0xff]
        %v753 = vld [vmem:[#allocation2 + $0xe1] sm:$0xff]
        %s754 = scalar_lea.vmem %s3, 8
        %v755 = vld [vmem:[%s754] sm:$0xff]
        %v757 = vsel %vm694, %v738, 0
        %v760 = vsel %vm694, %v739, 0
        %v763 = vsel %vm694, %v740, 0
        %v766 = vsel %vm694, %v741, 0
        %v769 = vsel %vm694, %v742, 0
        %v772 = vsel %vm694, %v743, 0
        %v775 = vsel %vm694, %v744, 0
        %v778 = vsel %vm694, %v745, 0
        %v781 = vsel %vm694, %v746, 0
        %v784 = vsel %vm694, %v747, 0
        %v787 = vsel %vm694, %v748, 0
        %v790 = vsel %vm694, %v749, 0
        %v793 = vsel %vm694, %v750, 0
        %v796 = vsel %vm694, %v751, 0
        %v799 = vsel %vm694, %v752, 0
        %v802 = vsel %vm694, %v753, 0
        %804 = vmatpush.msra.mxu0 0.0
        %805 = vmatpush.msra.mxu0 0.0
        %806 = vmatpush.msra.mxu0 0.0
        %807 = vmatpush.msra.mxu0 0.0
        %808 = vmatpush.msra.mxu0 0.0
        %809 = vmatpush.msra.mxu0 0.0
        %810 = vmatpush.msra.mxu0 0.0
        %811 = vmatpush.msra.mxu0 0.0
        %812 = vmatpush.msra.mxu0 0.0
        %813 = vmatpush.msra.mxu0 0.0
        %814 = vmatpush.msra.mxu0 0.0
        %815 = vmatpush.msra.mxu0 0.0
        %816 = vmatpush.msra.mxu0 0.0
        %817 = vmatpush.msra.mxu0 0.0
        %818 = vmatpush.msra.mxu0 0.0
        %819 = vmatpush.msra.mxu0 %v755
        %820 = vmatmul.f32.gmra.mxu0 %v757
        %v821 = vpop.f32.mrf.mxu0
        %v822 = vadd.f32 0.0, %v821
        %823 = vmatmul.f32.gmra.mxu0 %v760
        %v824 = vpop.f32.mrf.mxu0
        %v825 = vadd.f32 0.0, %v824
        %826 = vmatmul.f32.gmra.mxu0 %v763
        %v827 = vpop.f32.mrf.mxu0
        %v828 = vadd.f32 0.0, %v827
        %829 = vmatmul.f32.gmra.mxu0 %v766
        %v830 = vpop.f32.mrf.mxu0
        %v831 = vadd.f32 0.0, %v830
        %832 = vmatmul.f32.gmra.mxu0 %v769
        %v833 = vpop.f32.mrf.mxu0
        %v834 = vadd.f32 0.0, %v833
        %835 = vmatmul.f32.gmra.mxu0 %v772
        %v836 = vpop.f32.mrf.mxu0
        %v837 = vadd.f32 0.0, %v836
        %838 = vmatmul.f32.gmra.mxu0 %v775
        %v839 = vpop.f32.mrf.mxu0
        %v840 = vadd.f32 0.0, %v839
        %841 = vmatmul.f32.gmra.mxu0 %v778
        %v842 = vpop.f32.mrf.mxu0
        %v843 = vadd.f32 0.0, %v842
        %844 = vmatmul.f32.gmra.mxu0 %v781
        %v845 = vpop.f32.mrf.mxu0
        %v846 = vadd.f32 0.0, %v845
        %847 = vmatmul.f32.gmra.mxu0 %v784
        %v848 = vpop.f32.mrf.mxu0
        %v849 = vadd.f32 0.0, %v848
        %850 = vmatmul.f32.gmra.mxu0 %v787
        %v851 = vpop.f32.mrf.mxu0
        %v852 = vadd.f32 0.0, %v851
        %853 = vmatmul.f32.gmra.mxu0 %v790
        %v854 = vpop.f32.mrf.mxu0
        %v855 = vadd.f32 0.0, %v854
        %856 = vmatmul.f32.gmra.mxu0 %v793
        %v857 = vpop.f32.mrf.mxu0
        %v858 = vadd.f32 0.0, %v857
        %859 = vmatmul.f32.gmra.mxu0 %v796
        %v860 = vpop.f32.mrf.mxu0
        %v861 = vadd.f32 0.0, %v860
        %862 = vmatmul.f32.gmra.mxu0 %v799
        %v863 = vpop.f32.mrf.mxu0
        %v864 = vadd.f32 0.0, %v863
        %865 = vmatmul.f32.gmra.mxu0 %v802
        %v866 = vpop.f32.mrf.mxu0
        %v867 = vadd.f32 0.0, %v866
        %868 = vdwg.mxu0
        %v870 = vsel %vm694, %v721, 0
        %v873 = vsel %vm694, %v722, 0
        %v876 = vsel %vm694, %v723, 0
        %v879 = vsel %vm694, %v724, 0
        %v882 = vsel %vm694, %v725, 0
        %v885 = vsel %vm694, %v726, 0
        %v888 = vsel %vm694, %v727, 0
        %v891 = vsel %vm694, %v728, 0
        %v894 = vsel %vm694, %v729, 0
        %v897 = vsel %vm694, %v730, 0
        %v900 = vsel %vm694, %v731, 0
        %v903 = vsel %vm694, %v732, 0
        %v906 = vsel %vm694, %v733, 0
        %v909 = vsel %vm694, %v734, 0
        %v912 = vsel %vm694, %v735, 0
        %v915 = vsel %vm694, %v736, 0
        %917 = vmatpush.msra.mxu0 0.0
        %918 = vmatpush.msra.mxu0 0.0
        %919 = vmatpush.msra.mxu0 0.0
        %920 = vmatpush.msra.mxu0 0.0
        %921 = vmatpush.msra.mxu0 0.0
        %922 = vmatpush.msra.mxu0 0.0
        %923 = vmatpush.msra.mxu0 0.0
        %924 = vmatpush.msra.mxu0 0.0
        %925 = vmatpush.msra.mxu0 0.0
        %926 = vmatpush.msra.mxu0 0.0
        %927 = vmatpush.msra.mxu0 0.0
        %928 = vmatpush.msra.mxu0 0.0
        %929 = vmatpush.msra.mxu0 0.0
        %930 = vmatpush.msra.mxu0 0.0
        %931 = vmatpush.msra.mxu0 0.0
        %932 = vmatpush.msra.mxu0 %v737
        %933 = vmatmul.f32.gmra.mxu0 %v870
        %v934 = vpop.f32.mrf.mxu0
        %v935 = vadd.f32 %v822, %v934
        %936 = vmatmul.f32.gmra.mxu0 %v873
        %v937 = vpop.f32.mrf.mxu0
        %v938 = vadd.f32 %v825, %v937
        %939 = vmatmul.f32.gmra.mxu0 %v876
        %v940 = vpop.f32.mrf.mxu0
        %v941 = vadd.f32 %v828, %v940
        %942 = vmatmul.f32.gmra.mxu0 %v879
        %v943 = vpop.f32.mrf.mxu0
        %v944 = vadd.f32 %v831, %v943
        %945 = vmatmul.f32.gmra.mxu0 %v882
        %v946 = vpop.f32.mrf.mxu0
        %v947 = vadd.f32 %v834, %v946
        %948 = vmatmul.f32.gmra.mxu0 %v885
        %v949 = vpop.f32.mrf.mxu0
        %v950 = vadd.f32 %v837, %v949
        %951 = vmatmul.f32.gmra.mxu0 %v888
        %v952 = vpop.f32.mrf.mxu0
        %v953 = vadd.f32 %v840, %v952
        %954 = vmatmul.f32.gmra.mxu0 %v891
        %v955 = vpop.f32.mrf.mxu0
        %v956 = vadd.f32 %v843, %v955
        %957 = vmatmul.f32.gmra.mxu0 %v894
        %v958 = vpop.f32.mrf.mxu0
        %v959 = vadd.f32 %v846, %v958
        %960 = vmatmul.f32.gmra.mxu0 %v897
        %v961 = vpop.f32.mrf.mxu0
        %v962 = vadd.f32 %v849, %v961
        %963 = vmatmul.f32.gmra.mxu0 %v900
        %v964 = vpop.f32.mrf.mxu0
        %v965 = vadd.f32 %v852, %v964
        %966 = vmatmul.f32.gmra.mxu0 %v903
        %v967 = vpop.f32.mrf.mxu0
        %v968 = vadd.f32 %v855, %v967
        %969 = vmatmul.f32.gmra.mxu0 %v906
        %v970 = vpop.f32.mrf.mxu0
        %v971 = vadd.f32 %v858, %v970
        %972 = vmatmul.f32.gmra.mxu0 %v909
        %v973 = vpop.f32.mrf.mxu0
        %v974 = vadd.f32 %v861, %v973
        %975 = vmatmul.f32.gmra.mxu0 %v912
        %v976 = vpop.f32.mrf.mxu0
        %v977 = vadd.f32 %v864, %v976
        %978 = vmatmul.f32.gmra.mxu0 %v915
        %v979 = vpop.f32.mrf.mxu0
        %v980 = vadd.f32 %v867, %v979
        %981 = vdwg.mxu0
        %v982 = vld [vmem:[#allocation2 + $0x2] sm:$0xff]
        %v983 = vld [vmem:[#allocation2 + $0xa] sm:$0xff]
        %v984 = vld [vmem:[#allocation2 + $0x1a] sm:$0xff]
        %v985 = vld [vmem:[#allocation2 + $0x22] sm:$0xff]
        %v986 = vld [vmem:[#allocation2 + $0x32] sm:$0xff]
        %v987 = vld [vmem:[#allocation2 + $0x3a] sm:$0xff]
        %v988 = vld [vmem:[#allocation2 + $0x4a] sm:$0xff]
        %v989 = vld [vmem:[#allocation2 + $0x52] sm:$0xff]
        %v990 = vld [vmem:[#allocation2 + $0x92] sm:$0xff]
        %v991 = vld [vmem:[#allocation2 + $0x9a] sm:$0xff]
        %v992 = vld [vmem:[#allocation2 + $0xaa] sm:$0xff]
        %v993 = vld [vmem:[#allocation2 + $0xb2] sm:$0xff]
        %v994 = vld [vmem:[#allocation2 + $0xc2] sm:$0xff]
        %v995 = vld [vmem:[#allocation2 + $0xca] sm:$0xff]
        %v996 = vld [vmem:[#allocation2 + $0xda] sm:$0xff]
        %v997 = vld [vmem:[#allocation2 + $0xe2] sm:$0xff]
        %s998 = scalar_lea.vmem %s3, 16
        %v999 = vld [vmem:[%s998] sm:$0xff]
        %v1001 = vsel %vm694, %v982, 0
        %v1004 = vsel %vm694, %v983, 0
        %v1007 = vsel %vm694, %v984, 0
        %v1010 = vsel %vm694, %v985, 0
        %v1013 = vsel %vm694, %v986, 0
        %v1016 = vsel %vm694, %v987, 0
        %v1019 = vsel %vm694, %v988, 0
        %v1022 = vsel %vm694, %v989, 0
        %v1025 = vsel %vm694, %v990, 0
        %v1028 = vsel %vm694, %v991, 0
        %v1031 = vsel %vm694, %v992, 0
        %v1034 = vsel %vm694, %v993, 0
        %v1037 = vsel %vm694, %v994, 0
        %v1040 = vsel %vm694, %v995, 0
        %v1043 = vsel %vm694, %v996, 0
        %v1046 = vsel %vm694, %v997, 0
        %1048 = vmatpush.msra.mxu0 0.0
        %1049 = vmatpush.msra.mxu0 0.0
        %1050 = vmatpush.msra.mxu0 0.0
        %1051 = vmatpush.msra.mxu0 0.0
        %1052 = vmatpush.msra.mxu0 0.0
        %1053 = vmatpush.msra.mxu0 0.0
        %1054 = vmatpush.msra.mxu0 0.0
        %1055 = vmatpush.msra.mxu0 0.0
        %1056 = vmatpush.msra.mxu0 0.0
        %1057 = vmatpush.msra.mxu0 0.0
        %1058 = vmatpush.msra.mxu0 0.0
        %1059 = vmatpush.msra.mxu0 0.0
        %1060 = vmatpush.msra.mxu0 0.0
        %1061 = vmatpush.msra.mxu0 0.0
        %1062 = vmatpush.msra.mxu0 0.0
        %1063 = vmatpush.msra.mxu0 %v999
        %1064 = vmatmul.f32.gmra.mxu0 %v1001
        %v1065 = vpop.f32.mrf.mxu0
        %v1066 = vadd.f32 0.0, %v1065
        %1067 = vmatmul.f32.gmra.mxu0 %v1004
        %v1068 = vpop.f32.mrf.mxu0
        %v1069 = vadd.f32 0.0, %v1068
        %1070 = vmatmul.f32.gmra.mxu0 %v1007
        %v1071 = vpop.f32.mrf.mxu0
        %v1072 = vadd.f32 0.0, %v1071
        %1073 = vmatmul.f32.gmra.mxu0 %v1010
        %v1074 = vpop.f32.mrf.mxu0
        %v1075 = vadd.f32 0.0, %v1074
        %1076 = vmatmul.f32.gmra.mxu0 %v1013
        %v1077 = vpop.f32.mrf.mxu0
        %v1078 = vadd.f32 0.0, %v1077
        %1079 = vmatmul.f32.gmra.mxu0 %v1016
        %v1080 = vpop.f32.mrf.mxu0
        %v1081 = vadd.f32 0.0, %v1080
        %1082 = vmatmul.f32.gmra.mxu0 %v1019
        %v1083 = vpop.f32.mrf.mxu0
        %v1084 = vadd.f32 0.0, %v1083
        %1085 = vmatmul.f32.gmra.mxu0 %v1022
        %v1086 = vpop.f32.mrf.mxu0
        %v1087 = vadd.f32 0.0, %v1086
        %1088 = vmatmul.f32.gmra.mxu0 %v1025
        %v1089 = vpop.f32.mrf.mxu0
        %v1090 = vadd.f32 0.0, %v1089
        %1091 = vmatmul.f32.gmra.mxu0 %v1028
        %v1092 = vpop.f32.mrf.mxu0
        %v1093 = vadd.f32 0.0, %v1092
        %1094 = vmatmul.f32.gmra.mxu0 %v1031
        %v1095 = vpop.f32.mrf.mxu0
        %v1096 = vadd.f32 0.0, %v1095
        %1097 = vmatmul.f32.gmra.mxu0 %v1034
        %v1098 = vpop.f32.mrf.mxu0
        %v1099 = vadd.f32 0.0, %v1098
        %1100 = vmatmul.f32.gmra.mxu0 %v1037
        %v1101 = vpop.f32.mrf.mxu0
        %v1102 = vadd.f32 0.0, %v1101
        %1103 = vmatmul.f32.gmra.mxu0 %v1040
        %v1104 = vpop.f32.mrf.mxu0
        %v1105 = vadd.f32 0.0, %v1104
        %1106 = vmatmul.f32.gmra.mxu0 %v1043
        %v1107 = vpop.f32.mrf.mxu0
        %v1108 = vadd.f32 0.0, %v1107
        %1109 = vmatmul.f32.gmra.mxu0 %v1046
        %v1110 = vpop.f32.mrf.mxu0
        %v1111 = vadd.f32 0.0, %v1110
        %1112 = vdwg.mxu0
        %v1113 = vadd.f32 %v935, %v1066
        %v1114 = vadd.f32 %v938, %v1069
        %v1115 = vadd.f32 %v941, %v1072
        %v1116 = vadd.f32 %v944, %v1075
        %v1117 = vadd.f32 %v947, %v1078
        %v1118 = vadd.f32 %v950, %v1081
        %v1119 = vadd.f32 %v953, %v1084
        %v1120 = vadd.f32 %v956, %v1087
        %v1121 = vadd.f32 %v959, %v1090
        %v1122 = vadd.f32 %v962, %v1093
        %v1123 = vadd.f32 %v965, %v1096
        %v1124 = vadd.f32 %v968, %v1099
        %v1125 = vadd.f32 %v971, %v1102
        %v1126 = vadd.f32 %v974, %v1105
        %v1127 = vadd.f32 %v977, %v1108
        %v1128 = vadd.f32 %v980, %v1111
        %v1129 = vld [vmem:[%s699] sm:$0xff]
        %v1130 = vld [vmem:[%s699 + $0x8] sm:$0xff]
        %v1131 = vld [vmem:[%s699 + $0x18] sm:$0xff]
        %v1132 = vld [vmem:[%s699 + $0x20] sm:$0xff]
        %v1133 = vld [vmem:[%s699 + $0x30] sm:$0xff]
        %v1134 = vld [vmem:[%s699 + $0x38] sm:$0xff]
        %v1135 = vld [vmem:[%s699 + $0x48] sm:$0xff]
        %v1136 = vld [vmem:[%s699 + $0x50] sm:$0xff]
        %v1137 = vld [vmem:[%s699 + $0x90] sm:$0xff]
        %v1138 = vld [vmem:[%s699 + $0x98] sm:$0xff]
        %v1139 = vld [vmem:[%s699 + $0xa8] sm:$0xff]
        %v1140 = vld [vmem:[%s699 + $0xb0] sm:$0xff]
        %v1141 = vld [vmem:[%s699 + $0xc0] sm:$0xff]
        %v1142 = vld [vmem:[%s699 + $0xc8] sm:$0xff]
        %v1143 = vld [vmem:[%s699 + $0xd8] sm:$0xff]
        %v1144 = vld [vmem:[%s699 + $0xe0] sm:$0xff]
        %s1145 = scalar_lea.vmem %s3, 24
        %v1146 = vld [vmem:[%s1145] sm:$0xff]
        %v1148 = vsel %vm694, %v1129, 0
        %v1151 = vsel %vm694, %v1130, 0
        %v1154 = vsel %vm694, %v1131, 0
        %v1157 = vsel %vm694, %v1132, 0
        %v1160 = vsel %vm694, %v1133, 0
        %v1163 = vsel %vm694, %v1134, 0
        %v1166 = vsel %vm694, %v1135, 0
        %v1169 = vsel %vm694, %v1136, 0
        %v1172 = vsel %vm694, %v1137, 0
        %v1175 = vsel %vm694, %v1138, 0
        %v1178 = vsel %vm694, %v1139, 0
        %v1181 = vsel %vm694, %v1140, 0
        %v1184 = vsel %vm694, %v1141, 0
        %v1187 = vsel %vm694, %v1142, 0
        %v1190 = vsel %vm694, %v1143, 0
        %v1193 = vsel %vm694, %v1144, 0
        %1195 = vmatpush.msra.mxu0 0.0
        %1196 = vmatpush.msra.mxu0 0.0
        %1197 = vmatpush.msra.mxu0 0.0
        %1198 = vmatpush.msra.mxu0 0.0
        %1199 = vmatpush.msra.mxu0 0.0
        %1200 = vmatpush.msra.mxu0 0.0
        %1201 = vmatpush.msra.mxu0 0.0
        %1202 = vmatpush.msra.mxu0 0.0
        %1203 = vmatpush.msra.mxu0 0.0
        %1204 = vmatpush.msra.mxu0 0.0
        %1205 = vmatpush.msra.mxu0 0.0
        %1206 = vmatpush.msra.mxu0 0.0
        %1207 = vmatpush.msra.mxu0 0.0
        %1208 = vmatpush.msra.mxu0 0.0
        %1209 = vmatpush.msra.mxu0 0.0
        %1210 = vmatpush.msra.mxu0 %v1146
        %1211 = vmatmul.f32.gmra.mxu0 %v1148
        %v1212 = vpop.f32.mrf.mxu0
        %v1213 = vadd.f32 0.0, %v1212
        %1214 = vmatmul.f32.gmra.mxu0 %v1151
        %v1215 = vpop.f32.mrf.mxu0
        %v1216 = vadd.f32 0.0, %v1215
        %1217 = vmatmul.f32.gmra.mxu0 %v1154
        %v1218 = vpop.f32.mrf.mxu0
        %v1219 = vadd.f32 0.0, %v1218
        %1220 = vmatmul.f32.gmra.mxu0 %v1157
        %v1221 = vpop.f32.mrf.mxu0
        %v1222 = vadd.f32 0.0, %v1221
        %1223 = vmatmul.f32.gmra.mxu0 %v1160
        %v1224 = vpop.f32.mrf.mxu0
        %v1225 = vadd.f32 0.0, %v1224
        %1226 = vmatmul.f32.gmra.mxu0 %v1163
        %v1227 = vpop.f32.mrf.mxu0
        %v1228 = vadd.f32 0.0, %v1227
        %1229 = vmatmul.f32.gmra.mxu0 %v1166
        %v1230 = vpop.f32.mrf.mxu0
        %v1231 = vadd.f32 0.0, %v1230
        %1232 = vmatmul.f32.gmra.mxu0 %v1169
        %v1233 = vpop.f32.mrf.mxu0
        %v1234 = vadd.f32 0.0, %v1233
        %1235 = vmatmul.f32.gmra.mxu0 %v1172
        %v1236 = vpop.f32.mrf.mxu0
        %v1237 = vadd.f32 0.0, %v1236
        %1238 = vmatmul.f32.gmra.mxu0 %v1175
        %v1239 = vpop.f32.mrf.mxu0
        %v1240 = vadd.f32 0.0, %v1239
        %1241 = vmatmul.f32.gmra.mxu0 %v1178
        %v1242 = vpop.f32.mrf.mxu0
        %v1243 = vadd.f32 0.0, %v1242
        %1244 = vmatmul.f32.gmra.mxu0 %v1181
        %v1245 = vpop.f32.mrf.mxu0
        %v1246 = vadd.f32 0.0, %v1245
        %1247 = vmatmul.f32.gmra.mxu0 %v1184
        %v1248 = vpop.f32.mrf.mxu0
        %v1249 = vadd.f32 0.0, %v1248
        %1250 = vmatmul.f32.gmra.mxu0 %v1187
        %v1251 = vpop.f32.mrf.mxu0
        %v1252 = vadd.f32 0.0, %v1251
        %1253 = vmatmul.f32.gmra.mxu0 %v1190
        %v1254 = vpop.f32.mrf.mxu0
        %v1255 = vadd.f32 0.0, %v1254
        %1256 = vmatmul.f32.gmra.mxu0 %v1193
        %v1257 = vpop.f32.mrf.mxu0
        %v1258 = vadd.f32 0.0, %v1257
        %1259 = vdwg.mxu0
        %v1260 = vadd.f32 %v1113, %v1213
        %v1261 = vadd.f32 %v1114, %v1216
        %v1262 = vadd.f32 %v1115, %v1219
        %v1263 = vadd.f32 %v1116, %v1222
        %v1264 = vadd.f32 %v1117, %v1225
        %v1265 = vadd.f32 %v1118, %v1228
        %v1266 = vadd.f32 %v1119, %v1231
        %v1267 = vadd.f32 %v1120, %v1234
        %v1268 = vadd.f32 %v1121, %v1237
        %v1269 = vadd.f32 %v1122, %v1240
        %v1270 = vadd.f32 %v1123, %v1243
        %v1271 = vadd.f32 %v1124, %v1246
        %v1272 = vadd.f32 %v1125, %v1249
        %v1273 = vadd.f32 %v1126, %v1252
        %v1274 = vadd.f32 %v1127, %v1255
        %v1275 = vadd.f32 %v1128, %v1258
        %v1276 = vld [vmem:[%s699 + $0x1] sm:$0xff]
        %v1277 = vld [vmem:[%s699 + $0x9] sm:$0xff]
        %v1278 = vld [vmem:[%s699 + $0x19] sm:$0xff]
        %v1279 = vld [vmem:[%s699 + $0x21] sm:$0xff]
        %v1280 = vld [vmem:[%s699 + $0x31] sm:$0xff]
        %v1281 = vld [vmem:[%s699 + $0x39] sm:$0xff]
        %v1282 = vld [vmem:[%s699 + $0x49] sm:$0xff]
        %v1283 = vld [vmem:[%s699 + $0x51] sm:$0xff]
        %v1284 = vld [vmem:[%s699 + $0x91] sm:$0xff]
        %v1285 = vld [vmem:[%s699 + $0x99] sm:$0xff]
        %v1286 = vld [vmem:[%s699 + $0xa9] sm:$0xff]
        %v1287 = vld [vmem:[%s699 + $0xb1] sm:$0xff]
        %v1288 = vld [vmem:[%s699 + $0xc1] sm:$0xff]
        %v1289 = vld [vmem:[%s699 + $0xc9] sm:$0xff]
        %v1290 = vld [vmem:[%s699 + $0xd9] sm:$0xff]
        %v1291 = vld [vmem:[%s699 + $0xe1] sm:$0xff]
        %s1292 = scalar_lea.vmem %s3, 32
        %v1293 = vld [vmem:[%s1292] sm:$0xff]
        %v1295 = vsel %vm694, %v1276, 0
        %v1298 = vsel %vm694, %v1277, 0
        %v1301 = vsel %vm694, %v1278, 0
        %v1304 = vsel %vm694, %v1279, 0
        %v1307 = vsel %vm694, %v1280, 0
        %v1310 = vsel %vm694, %v1281, 0
        %v1313 = vsel %vm694, %v1282, 0
        %v1316 = vsel %vm694, %v1283, 0
        %v1319 = vsel %vm694, %v1284, 0
        %v1322 = vsel %vm694, %v1285, 0
        %v1325 = vsel %vm694, %v1286, 0
        %v1328 = vsel %vm694, %v1287, 0
        %v1331 = vsel %vm694, %v1288, 0
        %v1334 = vsel %vm694, %v1289, 0
        %v1337 = vsel %vm694, %v1290, 0
        %v1340 = vsel %vm694, %v1291, 0
        %1342 = vmatpush.msra.mxu0 0.0
        %1343 = vmatpush.msra.mxu0 0.0
        %1344 = vmatpush.msra.mxu0 0.0
        %1345 = vmatpush.msra.mxu0 0.0
        %1346 = vmatpush.msra.mxu0 0.0
        %1347 = vmatpush.msra.mxu0 0.0
        %1348 = vmatpush.msra.mxu0 0.0
        %1349 = vmatpush.msra.mxu0 0.0
        %1350 = vmatpush.msra.mxu0 0.0
        %1351 = vmatpush.msra.mxu0 0.0
        %1352 = vmatpush.msra.mxu0 0.0
        %1353 = vmatpush.msra.mxu0 0.0
        %1354 = vmatpush.msra.mxu0 0.0
        %1355 = vmatpush.msra.mxu0 0.0
        %1356 = vmatpush.msra.mxu0 0.0
        %1357 = vmatpush.msra.mxu0 %v1293
        %1358 = vmatmul.f32.gmra.mxu0 %v1295
        %v1359 = vpop.f32.mrf.mxu0
        %v1360 = vadd.f32 0.0, %v1359
        %1361 = vmatmul.f32.gmra.mxu0 %v1298
        %v1362 = vpop.f32.mrf.mxu0
        %v1363 = vadd.f32 0.0, %v1362
        %1364 = vmatmul.f32.gmra.mxu0 %v1301
        %v1365 = vpop.f32.mrf.mxu0
        %v1366 = vadd.f32 0.0, %v1365
        %1367 = vmatmul.f32.gmra.mxu0 %v1304
        %v1368 = vpop.f32.mrf.mxu0
        %v1369 = vadd.f32 0.0, %v1368
        %1370 = vmatmul.f32.gmra.mxu0 %v1307
        %v1371 = vpop.f32.mrf.mxu0
        %v1372 = vadd.f32 0.0, %v1371
        %1373 = vmatmul.f32.gmra.mxu0 %v1310
        %v1374 = vpop.f32.mrf.mxu0
        %v1375 = vadd.f32 0.0, %v1374
        %1376 = vmatmul.f32.gmra.mxu0 %v1313
        %v1377 = vpop.f32.mrf.mxu0
        %v1378 = vadd.f32 0.0, %v1377
        %1379 = vmatmul.f32.gmra.mxu0 %v1316
        %v1380 = vpop.f32.mrf.mxu0
        %v1381 = vadd.f32 0.0, %v1380
        %1382 = vmatmul.f32.gmra.mxu0 %v1319
        %v1383 = vpop.f32.mrf.mxu0
        %v1384 = vadd.f32 0.0, %v1383
        %1385 = vmatmul.f32.gmra.mxu0 %v1322
        %v1386 = vpop.f32.mrf.mxu0
        %v1387 = vadd.f32 0.0, %v1386
        %1388 = vmatmul.f32.gmra.mxu0 %v1325
        %v1389 = vpop.f32.mrf.mxu0
        %v1390 = vadd.f32 0.0, %v1389
        %1391 = vmatmul.f32.gmra.mxu0 %v1328
        %v1392 = vpop.f32.mrf.mxu0
        %v1393 = vadd.f32 0.0, %v1392
        %1394 = vmatmul.f32.gmra.mxu0 %v1331
        %v1395 = vpop.f32.mrf.mxu0
        %v1396 = vadd.f32 0.0, %v1395
        %1397 = vmatmul.f32.gmra.mxu0 %v1334
        %v1398 = vpop.f32.mrf.mxu0
        %v1399 = vadd.f32 0.0, %v1398
        %1400 = vmatmul.f32.gmra.mxu0 %v1337
        %v1401 = vpop.f32.mrf.mxu0
        %v1402 = vadd.f32 0.0, %v1401
        %1403 = vmatmul.f32.gmra.mxu0 %v1340
        %v1404 = vpop.f32.mrf.mxu0
        %v1405 = vadd.f32 0.0, %v1404
        %1406 = vdwg.mxu0
        %v1407 = vadd.f32 %v1260, %v1360
        %v1408 = vadd.f32 %v1261, %v1363
        %v1409 = vadd.f32 %v1262, %v1366
        %v1410 = vadd.f32 %v1263, %v1369
        %v1411 = vadd.f32 %v1264, %v1372
        %v1412 = vadd.f32 %v1265, %v1375
        %v1413 = vadd.f32 %v1266, %v1378
        %v1414 = vadd.f32 %v1267, %v1381
        %v1415 = vadd.f32 %v1268, %v1384
        %v1416 = vadd.f32 %v1269, %v1387
        %v1417 = vadd.f32 %v1270, %v1390
        %v1418 = vadd.f32 %v1271, %v1393
        %v1419 = vadd.f32 %v1272, %v1396
        %v1420 = vadd.f32 %v1273, %v1399
        %v1421 = vadd.f32 %v1274, %v1402
        %v1422 = vadd.f32 %v1275, %v1405
        %v1423 = vld [vmem:[%s699 + $0x2] sm:$0xff]
        %v1424 = vld [vmem:[%s699 + $0xa] sm:$0xff]
        %v1425 = vld [vmem:[%s699 + $0x1a] sm:$0xff]
        %v1426 = vld [vmem:[%s699 + $0x22] sm:$0xff]
        %v1427 = vld [vmem:[%s699 + $0x32] sm:$0xff]
        %v1428 = vld [vmem:[%s699 + $0x3a] sm:$0xff]
        %v1429 = vld [vmem:[%s699 + $0x4a] sm:$0xff]
        %v1430 = vld [vmem:[%s699 + $0x52] sm:$0xff]
        %v1431 = vld [vmem:[%s699 + $0x92] sm:$0xff]
        %v1432 = vld [vmem:[%s699 + $0x9a] sm:$0xff]
        %v1433 = vld [vmem:[%s699 + $0xaa] sm:$0xff]
        %v1434 = vld [vmem:[%s699 + $0xb2] sm:$0xff]
        %v1435 = vld [vmem:[%s699 + $0xc2] sm:$0xff]
        %v1436 = vld [vmem:[%s699 + $0xca] sm:$0xff]
        %v1437 = vld [vmem:[%s699 + $0xda] sm:$0xff]
        %v1438 = vld [vmem:[%s699 + $0xe2] sm:$0xff]
        %s1439 = scalar_lea.vmem %s3, 40
        %v1440 = vld [vmem:[%s1439] sm:$0xff]
        %v1442 = vsel %vm694, %v1423, 0
        %v1445 = vsel %vm694, %v1424, 0
        %v1448 = vsel %vm694, %v1425, 0
        %v1451 = vsel %vm694, %v1426, 0
        %v1454 = vsel %vm694, %v1427, 0
        %v1457 = vsel %vm694, %v1428, 0
        %v1460 = vsel %vm694, %v1429, 0
        %v1463 = vsel %vm694, %v1430, 0
        %v1466 = vsel %vm694, %v1431, 0
        %v1469 = vsel %vm694, %v1432, 0
        %v1472 = vsel %vm694, %v1433, 0
        %v1475 = vsel %vm694, %v1434, 0
        %v1478 = vsel %vm694, %v1435, 0
        %v1481 = vsel %vm694, %v1436, 0
        %v1484 = vsel %vm694, %v1437, 0
        %v1487 = vsel %vm694, %v1438, 0
        %1489 = vmatpush.msra.mxu0 0.0
        %1490 = vmatpush.msra.mxu0 0.0
        %1491 = vmatpush.msra.mxu0 0.0
        %1492 = vmatpush.msra.mxu0 0.0
        %1493 = vmatpush.msra.mxu0 0.0
        %1494 = vmatpush.msra.mxu0 0.0
        %1495 = vmatpush.msra.mxu0 0.0
        %1496 = vmatpush.msra.mxu0 0.0
        %1497 = vmatpush.msra.mxu0 0.0
        %1498 = vmatpush.msra.mxu0 0.0
        %1499 = vmatpush.msra.mxu0 0.0
        %1500 = vmatpush.msra.mxu0 0.0
        %1501 = vmatpush.msra.mxu0 0.0
        %1502 = vmatpush.msra.mxu0 0.0
        %1503 = vmatpush.msra.mxu0 0.0
        %1504 = vmatpush.msra.mxu0 %v1440
        %1505 = vmatmul.f32.gmra.mxu0 %v1442
        %v1506 = vpop.f32.mrf.mxu0
        %v1507 = vadd.f32 0.0, %v1506
        %1508 = vmatmul.f32.gmra.mxu0 %v1445
        %v1509 = vpop.f32.mrf.mxu0
        %v1510 = vadd.f32 0.0, %v1509
        %1511 = vmatmul.f32.gmra.mxu0 %v1448
        %v1512 = vpop.f32.mrf.mxu0
        %v1513 = vadd.f32 0.0, %v1512
        %1514 = vmatmul.f32.gmra.mxu0 %v1451
        %v1515 = vpop.f32.mrf.mxu0
        %v1516 = vadd.f32 0.0, %v1515
        %1517 = vmatmul.f32.gmra.mxu0 %v1454
        %v1518 = vpop.f32.mrf.mxu0
        %v1519 = vadd.f32 0.0, %v1518
        %1520 = vmatmul.f32.gmra.mxu0 %v1457
        %v1521 = vpop.f32.mrf.mxu0
        %v1522 = vadd.f32 0.0, %v1521
        %1523 = vmatmul.f32.gmra.mxu0 %v1460
        %v1524 = vpop.f32.mrf.mxu0
        %v1525 = vadd.f32 0.0, %v1524
        %1526 = vmatmul.f32.gmra.mxu0 %v1463
        %v1527 = vpop.f32.mrf.mxu0
        %v1528 = vadd.f32 0.0, %v1527
        %1529 = vmatmul.f32.gmra.mxu0 %v1466
        %v1530 = vpop.f32.mrf.mxu0
        %v1531 = vadd.f32 0.0, %v1530
        %1532 = vmatmul.f32.gmra.mxu0 %v1469
        %v1533 = vpop.f32.mrf.mxu0
        %v1534 = vadd.f32 0.0, %v1533
        %1535 = vmatmul.f32.gmra.mxu0 %v1472
        %v1536 = vpop.f32.mrf.mxu0
        %v1537 = vadd.f32 0.0, %v1536
        %1538 = vmatmul.f32.gmra.mxu0 %v1475
        %v1539 = vpop.f32.mrf.mxu0
        %v1540 = vadd.f32 0.0, %v1539
        %1541 = vmatmul.f32.gmra.mxu0 %v1478
        %v1542 = vpop.f32.mrf.mxu0
        %v1543 = vadd.f32 0.0, %v1542
        %1544 = vmatmul.f32.gmra.mxu0 %v1481
        %v1545 = vpop.f32.mrf.mxu0
        %v1546 = vadd.f32 0.0, %v1545
        %1547 = vmatmul.f32.gmra.mxu0 %v1484
        %v1548 = vpop.f32.mrf.mxu0
        %v1549 = vadd.f32 0.0, %v1548
        %1550 = vmatmul.f32.gmra.mxu0 %v1487
        %v1551 = vpop.f32.mrf.mxu0
        %v1552 = vadd.f32 0.0, %v1551
        %1553 = vdwg.mxu0
        %v1554 = vadd.f32 %v1407, %v1507
        %v1555 = vadd.f32 %v1408, %v1510
        %v1556 = vadd.f32 %v1409, %v1513
        %v1557 = vadd.f32 %v1410, %v1516
        %v1558 = vadd.f32 %v1411, %v1519
        %v1559 = vadd.f32 %v1412, %v1522
        %v1560 = vadd.f32 %v1413, %v1525
        %v1561 = vadd.f32 %v1414, %v1528
        %v1562 = vadd.f32 %v1415, %v1531
        %v1563 = vadd.f32 %v1416, %v1534
        %v1564 = vadd.f32 %v1417, %v1537
        %v1565 = vadd.f32 %v1418, %v1540
        %v1566 = vadd.f32 %v1419, %v1543
        %v1567 = vadd.f32 %v1420, %v1546
        %v1568 = vadd.f32 %v1421, %v1549
        %v1569 = vadd.f32 %v1422, %v1552
        %s1570 = scalar_lea.vmem [#allocation2], 48
        %v1571 = vld [vmem:[%s1570] sm:$0xff]
        %v1572 = vld [vmem:[%s1570 + $0x8] sm:$0xff]
        %v1573 = vld [vmem:[%s1570 + $0x18] sm:$0xff]
        %v1574 = vld [vmem:[%s1570 + $0x20] sm:$0xff]
        %v1575 = vld [vmem:[%s1570 + $0x30] sm:$0xff]
        %v1576 = vld [vmem:[%s1570 + $0x38] sm:$0xff]
        %v1577 = vld [vmem:[%s1570 + $0x48] sm:$0xff]
        %v1578 = vld [vmem:[%s1570 + $0x50] sm:$0xff]
        %v1579 = vld [vmem:[%s1570 + $0x90] sm:$0xff]
        %v1580 = vld [vmem:[%s1570 + $0x98] sm:$0xff]
        %v1581 = vld [vmem:[%s1570 + $0xa8] sm:$0xff]
        %v1582 = vld [vmem:[%s1570 + $0xb0] sm:$0xff]
        %v1583 = vld [vmem:[%s1570 + $0xc0] sm:$0xff]
        %v1584 = vld [vmem:[%s1570 + $0xc8] sm:$0xff]
        %v1585 = vld [vmem:[%s1570 + $0xd8] sm:$0xff]
        %v1586 = vld [vmem:[%s1570 + $0xe0] sm:$0xff]
        %s1587 = scalar_lea.vmem %s3, 48
        %v1588 = vld [vmem:[%s1587] sm:$0xff]
        %v1590 = vsel %vm694, %v1571, 0
        %v1593 = vsel %vm694, %v1572, 0
        %v1596 = vsel %vm694, %v1573, 0
        %v1599 = vsel %vm694, %v1574, 0
        %v1602 = vsel %vm694, %v1575, 0
        %v1605 = vsel %vm694, %v1576, 0
        %v1608 = vsel %vm694, %v1577, 0
        %v1611 = vsel %vm694, %v1578, 0
        %v1614 = vsel %vm694, %v1579, 0
        %v1617 = vsel %vm694, %v1580, 0
        %v1620 = vsel %vm694, %v1581, 0
        %v1623 = vsel %vm694, %v1582, 0
        %v1626 = vsel %vm694, %v1583, 0
        %v1629 = vsel %vm694, %v1584, 0
        %v1632 = vsel %vm694, %v1585, 0
        %v1635 = vsel %vm694, %v1586, 0
        %1637 = vmatpush.msra.mxu0 0.0
        %1638 = vmatpush.msra.mxu0 0.0
        %1639 = vmatpush.msra.mxu0 0.0
        %1640 = vmatpush.msra.mxu0 0.0
        %1641 = vmatpush.msra.mxu0 0.0
        %1642 = vmatpush.msra.mxu0 0.0
        %1643 = vmatpush.msra.mxu0 0.0
        %1644 = vmatpush.msra.mxu0 0.0
        %1645 = vmatpush.msra.mxu0 0.0
        %1646 = vmatpush.msra.mxu0 0.0
        %1647 = vmatpush.msra.mxu0 0.0
        %1648 = vmatpush.msra.mxu0 0.0
        %1649 = vmatpush.msra.mxu0 0.0
        %1650 = vmatpush.msra.mxu0 0.0
        %1651 = vmatpush.msra.mxu0 0.0
        %1652 = vmatpush.msra.mxu0 %v1588
        %1653 = vmatmul.f32.gmra.mxu0 %v1590
        %v1654 = vpop.f32.mrf.mxu0
        %v1655 = vadd.f32 0.0, %v1654
        %1656 = vmatmul.f32.gmra.mxu0 %v1593
        %v1657 = vpop.f32.mrf.mxu0
        %v1658 = vadd.f32 0.0, %v1657
        %1659 = vmatmul.f32.gmra.mxu0 %v1596
        %v1660 = vpop.f32.mrf.mxu0
        %v1661 = vadd.f32 0.0, %v1660
        %1662 = vmatmul.f32.gmra.mxu0 %v1599
        %v1663 = vpop.f32.mrf.mxu0
        %v1664 = vadd.f32 0.0, %v1663
        %1665 = vmatmul.f32.gmra.mxu0 %v1602
        %v1666 = vpop.f32.mrf.mxu0
        %v1667 = vadd.f32 0.0, %v1666
        %1668 = vmatmul.f32.gmra.mxu0 %v1605
        %v1669 = vpop.f32.mrf.mxu0
        %v1670 = vadd.f32 0.0, %v1669
        %1671 = vmatmul.f32.gmra.mxu0 %v1608
        %v1672 = vpop.f32.mrf.mxu0
        %v1673 = vadd.f32 0.0, %v1672
        %1674 = vmatmul.f32.gmra.mxu0 %v1611
        %v1675 = vpop.f32.mrf.mxu0
        %v1676 = vadd.f32 0.0, %v1675
        %1677 = vmatmul.f32.gmra.mxu0 %v1614
        %v1678 = vpop.f32.mrf.mxu0
        %v1679 = vadd.f32 0.0, %v1678
        %1680 = vmatmul.f32.gmra.mxu0 %v1617
        %v1681 = vpop.f32.mrf.mxu0
        %v1682 = vadd.f32 0.0, %v1681
        %1683 = vmatmul.f32.gmra.mxu0 %v1620
        %v1684 = vpop.f32.mrf.mxu0
        %v1685 = vadd.f32 0.0, %v1684
        %1686 = vmatmul.f32.gmra.mxu0 %v1623
        %v1687 = vpop.f32.mrf.mxu0
        %v1688 = vadd.f32 0.0, %v1687
        %1689 = vmatmul.f32.gmra.mxu0 %v1626
        %v1690 = vpop.f32.mrf.mxu0
        %v1691 = vadd.f32 0.0, %v1690
        %1692 = vmatmul.f32.gmra.mxu0 %v1629
        %v1693 = vpop.f32.mrf.mxu0
        %v1694 = vadd.f32 0.0, %v1693
        %1695 = vmatmul.f32.gmra.mxu0 %v1632
        %v1696 = vpop.f32.mrf.mxu0
        %v1697 = vadd.f32 0.0, %v1696
        %1698 = vmatmul.f32.gmra.mxu0 %v1635
        %v1699 = vpop.f32.mrf.mxu0
        %v1700 = vadd.f32 0.0, %v1699
        %1701 = vdwg.mxu0
        %v1702 = vadd.f32 %v1554, %v1655
        %v1703 = vadd.f32 %v1555, %v1658
        %v1704 = vadd.f32 %v1556, %v1661
        %v1705 = vadd.f32 %v1557, %v1664
        %v1706 = vadd.f32 %v1558, %v1667
        %v1707 = vadd.f32 %v1559, %v1670
        %v1708 = vadd.f32 %v1560, %v1673
        %v1709 = vadd.f32 %v1561, %v1676
        %v1710 = vadd.f32 %v1562, %v1679
        %v1711 = vadd.f32 %v1563, %v1682
        %v1712 = vadd.f32 %v1564, %v1685
        %v1713 = vadd.f32 %v1565, %v1688
        %v1714 = vadd.f32 %v1566, %v1691
        %v1715 = vadd.f32 %v1567, %v1694
        %v1716 = vadd.f32 %v1568, %v1697
        %v1717 = vadd.f32 %v1569, %v1700
        %v1718 = vld [vmem:[%s1570 + $0x1] sm:$0xff]
        %v1719 = vld [vmem:[%s1570 + $0x9] sm:$0xff]
        %v1720 = vld [vmem:[%s1570 + $0x19] sm:$0xff]
        %v1721 = vld [vmem:[%s1570 + $0x21] sm:$0xff]
        %v1722 = vld [vmem:[%s1570 + $0x31] sm:$0xff]
        %v1723 = vld [vmem:[%s1570 + $0x39] sm:$0xff]
        %v1724 = vld [vmem:[%s1570 + $0x49] sm:$0xff]
        %v1725 = vld [vmem:[%s1570 + $0x51] sm:$0xff]
        %v1726 = vld [vmem:[%s1570 + $0x91] sm:$0xff]
        %v1727 = vld [vmem:[%s1570 + $0x99] sm:$0xff]
        %v1728 = vld [vmem:[%s1570 + $0xa9] sm:$0xff]
        %v1729 = vld [vmem:[%s1570 + $0xb1] sm:$0xff]
        %v1730 = vld [vmem:[%s1570 + $0xc1] sm:$0xff]
        %v1731 = vld [vmem:[%s1570 + $0xc9] sm:$0xff]
        %v1732 = vld [vmem:[%s1570 + $0xd9] sm:$0xff]
        %v1733 = vld [vmem:[%s1570 + $0xe1] sm:$0xff]
        %s1734 = scalar_lea.vmem %s3, 56
        %v1735 = vld [vmem:[%s1734] sm:$0xff]
        %v1737 = vsel %vm694, %v1718, 0
        %v1740 = vsel %vm694, %v1719, 0
        %v1743 = vsel %vm694, %v1720, 0
        %v1746 = vsel %vm694, %v1721, 0
        %v1749 = vsel %vm694, %v1722, 0
        %v1752 = vsel %vm694, %v1723, 0
        %v1755 = vsel %vm694, %v1724, 0
        %v1758 = vsel %vm694, %v1725, 0
        %v1761 = vsel %vm694, %v1726, 0
        %v1764 = vsel %vm694, %v1727, 0
        %v1767 = vsel %vm694, %v1728, 0
        %v1770 = vsel %vm694, %v1729, 0
        %v1773 = vsel %vm694, %v1730, 0
        %v1776 = vsel %vm694, %v1731, 0
        %v1779 = vsel %vm694, %v1732, 0
        %v1782 = vsel %vm694, %v1733, 0
        %1784 = vmatpush.msra.mxu0 0.0
        %1785 = vmatpush.msra.mxu0 0.0
        %1786 = vmatpush.msra.mxu0 0.0
        %1787 = vmatpush.msra.mxu0 0.0
        %1788 = vmatpush.msra.mxu0 0.0
        %1789 = vmatpush.msra.mxu0 0.0
        %1790 = vmatpush.msra.mxu0 0.0
        %1791 = vmatpush.msra.mxu0 0.0
        %1792 = vmatpush.msra.mxu0 0.0
        %1793 = vmatpush.msra.mxu0 0.0
        %1794 = vmatpush.msra.mxu0 0.0
        %1795 = vmatpush.msra.mxu0 0.0
        %1796 = vmatpush.msra.mxu0 0.0
        %1797 = vmatpush.msra.mxu0 0.0
        %1798 = vmatpush.msra.mxu0 0.0
        %1799 = vmatpush.msra.mxu0 %v1735
        %1800 = vmatmul.f32.gmra.mxu0 %v1737
        %v1801 = vpop.f32.mrf.mxu0
        %v1802 = vadd.f32 0.0, %v1801
        %1803 = vmatmul.f32.gmra.mxu0 %v1740
        %v1804 = vpop.f32.mrf.mxu0
        %v1805 = vadd.f32 0.0, %v1804
        %1806 = vmatmul.f32.gmra.mxu0 %v1743
        %v1807 = vpop.f32.mrf.mxu0
        %v1808 = vadd.f32 0.0, %v1807
        %1809 = vmatmul.f32.gmra.mxu0 %v1746
        %v1810 = vpop.f32.mrf.mxu0
        %v1811 = vadd.f32 0.0, %v1810
        %1812 = vmatmul.f32.gmra.mxu0 %v1749
        %v1813 = vpop.f32.mrf.mxu0
        %v1814 = vadd.f32 0.0, %v1813
        %1815 = vmatmul.f32.gmra.mxu0 %v1752
        %v1816 = vpop.f32.mrf.mxu0
        %v1817 = vadd.f32 0.0, %v1816
        %1818 = vmatmul.f32.gmra.mxu0 %v1755
        %v1819 = vpop.f32.mrf.mxu0
        %v1820 = vadd.f32 0.0, %v1819
        %1821 = vmatmul.f32.gmra.mxu0 %v1758
        %v1822 = vpop.f32.mrf.mxu0
        %v1823 = vadd.f32 0.0, %v1822
        %1824 = vmatmul.f32.gmra.mxu0 %v1761
        %v1825 = vpop.f32.mrf.mxu0
        %v1826 = vadd.f32 0.0, %v1825
        %1827 = vmatmul.f32.gmra.mxu0 %v1764
        %v1828 = vpop.f32.mrf.mxu0
        %v1829 = vadd.f32 0.0, %v1828
        %1830 = vmatmul.f32.gmra.mxu0 %v1767
        %v1831 = vpop.f32.mrf.mxu0
        %v1832 = vadd.f32 0.0, %v1831
        %1833 = vmatmul.f32.gmra.mxu0 %v1770
        %v1834 = vpop.f32.mrf.mxu0
        %v1835 = vadd.f32 0.0, %v1834
        %1836 = vmatmul.f32.gmra.mxu0 %v1773
        %v1837 = vpop.f32.mrf.mxu0
        %v1838 = vadd.f32 0.0, %v1837
        %1839 = vmatmul.f32.gmra.mxu0 %v1776
        %v1840 = vpop.f32.mrf.mxu0
        %v1841 = vadd.f32 0.0, %v1840
        %1842 = vmatmul.f32.gmra.mxu0 %v1779
        %v1843 = vpop.f32.mrf.mxu0
        %v1844 = vadd.f32 0.0, %v1843
        %1845 = vmatmul.f32.gmra.mxu0 %v1782
        %v1846 = vpop.f32.mrf.mxu0
        %v1847 = vadd.f32 0.0, %v1846
        %1848 = vdwg.mxu0
        %v1849 = vadd.f32 %v1702, %v1802
        %v1850 = vadd.f32 %v1703, %v1805
        %v1851 = vadd.f32 %v1704, %v1808
        %v1852 = vadd.f32 %v1705, %v1811
        %v1853 = vadd.f32 %v1706, %v1814
        %v1854 = vadd.f32 %v1707, %v1817
        %v1855 = vadd.f32 %v1708, %v1820
        %v1856 = vadd.f32 %v1709, %v1823
        %v1857 = vadd.f32 %v1710, %v1826
        %v1858 = vadd.f32 %v1711, %v1829
        %v1859 = vadd.f32 %v1712, %v1832
        %v1860 = vadd.f32 %v1713, %v1835
        %v1861 = vadd.f32 %v1714, %v1838
        %v1862 = vadd.f32 %v1715, %v1841
        %v1863 = vadd.f32 %v1716, %v1844
        %v1864 = vadd.f32 %v1717, %v1847
        %v1865 = vld [vmem:[%s1570 + $0x2] sm:$0xff]
        %v1866 = vld [vmem:[%s1570 + $0xa] sm:$0xff]
        %v1867 = vld [vmem:[%s1570 + $0x1a] sm:$0xff]
        %v1868 = vld [vmem:[%s1570 + $0x22] sm:$0xff]
        %v1869 = vld [vmem:[%s1570 + $0x32] sm:$0xff]
        %v1870 = vld [vmem:[%s1570 + $0x3a] sm:$0xff]
        %v1871 = vld [vmem:[%s1570 + $0x4a] sm:$0xff]
        %v1872 = vld [vmem:[%s1570 + $0x52] sm:$0xff]
        %v1873 = vld [vmem:[%s1570 + $0x92] sm:$0xff]
        %v1874 = vld [vmem:[%s1570 + $0x9a] sm:$0xff]
        %v1875 = vld [vmem:[%s1570 + $0xaa] sm:$0xff]
        %v1876 = vld [vmem:[%s1570 + $0xb2] sm:$0xff]
        %v1877 = vld [vmem:[%s1570 + $0xc2] sm:$0xff]
        %v1878 = vld [vmem:[%s1570 + $0xca] sm:$0xff]
        %v1879 = vld [vmem:[%s1570 + $0xda] sm:$0xff]
        %v1880 = vld [vmem:[%s1570 + $0xe2] sm:$0xff]
        %s1881 = scalar_lea.vmem %s3, 64
        %v1882 = vld [vmem:[%s1881] sm:$0xff]
        %v1884 = vsel %vm694, %v1865, 0
        %v1887 = vsel %vm694, %v1866, 0
        %v1890 = vsel %vm694, %v1867, 0
        %v1893 = vsel %vm694, %v1868, 0
        %v1896 = vsel %vm694, %v1869, 0
        %v1899 = vsel %vm694, %v1870, 0
        %v1902 = vsel %vm694, %v1871, 0
        %v1905 = vsel %vm694, %v1872, 0
        %v1908 = vsel %vm694, %v1873, 0
        %v1911 = vsel %vm694, %v1874, 0
        %v1914 = vsel %vm694, %v1875, 0
        %v1917 = vsel %vm694, %v1876, 0
        %v1920 = vsel %vm694, %v1877, 0
        %v1923 = vsel %vm694, %v1878, 0
        %v1926 = vsel %vm694, %v1879, 0
        %v1929 = vsel %vm694, %v1880, 0
        %1931 = vmatpush.msra.mxu0 0.0
        %1932 = vmatpush.msra.mxu0 0.0
        %1933 = vmatpush.msra.mxu0 0.0
        %1934 = vmatpush.msra.mxu0 0.0
        %1935 = vmatpush.msra.mxu0 0.0
        %1936 = vmatpush.msra.mxu0 0.0
        %1937 = vmatpush.msra.mxu0 0.0
        %1938 = vmatpush.msra.mxu0 0.0
        %1939 = vmatpush.msra.mxu0 0.0
        %1940 = vmatpush.msra.mxu0 0.0
        %1941 = vmatpush.msra.mxu0 0.0
        %1942 = vmatpush.msra.mxu0 0.0
        %1943 = vmatpush.msra.mxu0 0.0
        %1944 = vmatpush.msra.mxu0 0.0
        %1945 = vmatpush.msra.mxu0 0.0
        %1946 = vmatpush.msra.mxu0 %v1882
        %1947 = vmatmul.f32.gmra.mxu0 %v1884
        %v1948 = vpop.f32.mrf.mxu0
        %v1949 = vadd.f32 0.0, %v1948
        %1950 = vmatmul.f32.gmra.mxu0 %v1887
        %v1951 = vpop.f32.mrf.mxu0
        %v1952 = vadd.f32 0.0, %v1951
        %1953 = vmatmul.f32.gmra.mxu0 %v1890
        %v1954 = vpop.f32.mrf.mxu0
        %v1955 = vadd.f32 0.0, %v1954
        %1956 = vmatmul.f32.gmra.mxu0 %v1893
        %v1957 = vpop.f32.mrf.mxu0
        %v1958 = vadd.f32 0.0, %v1957
        %1959 = vmatmul.f32.gmra.mxu0 %v1896
        %v1960 = vpop.f32.mrf.mxu0
        %v1961 = vadd.f32 0.0, %v1960
        %1962 = vmatmul.f32.gmra.mxu0 %v1899
        %v1963 = vpop.f32.mrf.mxu0
        %v1964 = vadd.f32 0.0, %v1963
        %1965 = vmatmul.f32.gmra.mxu0 %v1902
        %v1966 = vpop.f32.mrf.mxu0
        %v1967 = vadd.f32 0.0, %v1966
        %1968 = vmatmul.f32.gmra.mxu0 %v1905
        %v1969 = vpop.f32.mrf.mxu0
        %v1970 = vadd.f32 0.0, %v1969
        %1971 = vmatmul.f32.gmra.mxu0 %v1908
        %v1972 = vpop.f32.mrf.mxu0
        %v1973 = vadd.f32 0.0, %v1972
        %1974 = vmatmul.f32.gmra.mxu0 %v1911
        %v1975 = vpop.f32.mrf.mxu0
        %v1976 = vadd.f32 0.0, %v1975
        %1977 = vmatmul.f32.gmra.mxu0 %v1914
        %v1978 = vpop.f32.mrf.mxu0
        %v1979 = vadd.f32 0.0, %v1978
        %1980 = vmatmul.f32.gmra.mxu0 %v1917
        %v1981 = vpop.f32.mrf.mxu0
        %v1982 = vadd.f32 0.0, %v1981
        %1983 = vmatmul.f32.gmra.mxu0 %v1920
        %v1984 = vpop.f32.mrf.mxu0
        %v1985 = vadd.f32 0.0, %v1984
        %1986 = vmatmul.f32.gmra.mxu0 %v1923
        %v1987 = vpop.f32.mrf.mxu0
        %v1988 = vadd.f32 0.0, %v1987
        %1989 = vmatmul.f32.gmra.mxu0 %v1926
        %v1990 = vpop.f32.mrf.mxu0
        %v1991 = vadd.f32 0.0, %v1990
        %1992 = vmatmul.f32.gmra.mxu0 %v1929
        %v1993 = vpop.f32.mrf.mxu0
        %v1994 = vadd.f32 0.0, %v1993
        %1995 = vdwg.mxu0
        %v1996 = vadd.f32 %v1849, %v1949
        %v1997 = vadd.f32 %v1850, %v1952
        %v1998 = vadd.f32 %v1851, %v1955
        %v1999 = vadd.f32 %v1852, %v1958
        %v2000 = vadd.f32 %v1853, %v1961
        %v2001 = vadd.f32 %v1854, %v1964
        %v2002 = vadd.f32 %v1855, %v1967
        %v2003 = vadd.f32 %v1856, %v1970
        %v2004 = vadd.f32 %v1857, %v1973
        %v2005 = vadd.f32 %v1858, %v1976
        %v2006 = vadd.f32 %v1859, %v1979
        %v2007 = vadd.f32 %v1860, %v1982
        %v2008 = vadd.f32 %v1861, %v1985
        %v2009 = vadd.f32 %v1862, %v1988
        %v2010 = vadd.f32 %v1863, %v1991
        %v2011 = vadd.f32 %v1864, %v1994
        %v2012 = vsel %vm694, %v1996, 0.0
        %v2013 = vsel %vm694, %v1997, 0.0
        %v2014 = vadd.f32 %v2012, %v2013
        %v2015 = vsel %vm694, %v1998, 0.0
        %v2016 = vadd.f32 %v2014, %v2015
        %v2017 = vsel %vm694, %v1999, 0.0
        %v2018 = vadd.f32 %v2016, %v2017
        %v2019 = vsel %vm694, %v2000, 0.0
        %v2020 = vadd.f32 %v2018, %v2019
        %v2021 = vsel %vm694, %v2001, 0.0
        %v2022 = vadd.f32 %v2020, %v2021
        %v2023 = vsel %vm694, %v2002, 0.0
        %v2024 = vadd.f32 %v2022, %v2023
        %v2025 = vsel %vm694, %v2003, 0.0
        %v2026 = vadd.f32 %v2024, %v2025
        %v2027 = vsel %vm694, %v2004, 0.0
        %v2028 = vadd.f32 %v2026, %v2027
        %v2029 = vsel %vm694, %v2005, 0.0
        %v2030 = vadd.f32 %v2028, %v2029
        %v2031 = vsel %vm694, %v2006, 0.0
        %v2032 = vadd.f32 %v2030, %v2031
        %v2033 = vsel %vm694, %v2007, 0.0
        %v2034 = vadd.f32 %v2032, %v2033
        %v2035 = vsel %vm694, %v2008, 0.0
        %v2036 = vadd.f32 %v2034, %v2035
        %v2037 = vsel %vm694, %v2009, 0.0
        %v2038 = vadd.f32 %v2036, %v2037
        %v2039 = vsel %vm694, %v2010, 0.0
        %v2040 = vadd.f32 %v2038, %v2039
        %v2041 = vsel %vm694, %v2011, 0.0
        %v2042 = vadd.f32 %v2040, %v2041
        %v2043 = vrot.slane %v2042, 4
        %v2044 = vadd.f32 %v2042, %v2043
        %v2045 = vrot.slane %v2044, 2
        %v2046 = vadd.f32 %v2044, %v2045
        %v2047 = vrot.slane %v2046, 1
        %v2048 = vadd.f32 %v2046, %v2047
        %v2049 = vmul.f32 %v2048, 0.0078125
        %v2050 = vsub.f32 %v1996, %v2049
        %v2051 = vsub.f32 %v1997, %v2049
        %v2052 = vsub.f32 %v1998, %v2049
        %v2053 = vsub.f32 %v1999, %v2049
        %v2054 = vsub.f32 %v2000, %v2049
        %v2055 = vsub.f32 %v2001, %v2049
        %v2056 = vsub.f32 %v2002, %v2049
        %v2057 = vsub.f32 %v2003, %v2049
        %v2058 = vsub.f32 %v2004, %v2049
        %v2059 = vsub.f32 %v2005, %v2049
        %v2060 = vsub.f32 %v2006, %v2049
        %v2061 = vsub.f32 %v2007, %v2049
        %v2062 = vsub.f32 %v2008, %v2049
        %v2063 = vsub.f32 %v2009, %v2049
        %v2064 = vsub.f32 %v2010, %v2049
        %v2065 = vsub.f32 %v2011, %v2049
        %2066 = vst.msk [vmem:[%s550] sm:$0x1] %vm669, %v2048
        %v2067 = vmul.f32 %v2050, %v2050
        %v2068 = vmul.f32 %v2051, %v2051
        %v2069 = vmul.f32 %v2052, %v2052
        %v2070 = vmul.f32 %v2053, %v2053
        %v2071 = vmul.f32 %v2054, %v2054
        %v2072 = vmul.f32 %v2055, %v2055
        %v2073 = vmul.f32 %v2056, %v2056
        %v2074 = vmul.f32 %v2057, %v2057
        %v2075 = vmul.f32 %v2058, %v2058
        %v2076 = vmul.f32 %v2059, %v2059
        %v2077 = vmul.f32 %v2060, %v2060
        %v2078 = vmul.f32 %v2061, %v2061
        %v2079 = vmul.f32 %v2062, %v2062
        %v2080 = vmul.f32 %v2063, %v2063
        %v2081 = vmul.f32 %v2064, %v2064
        %v2082 = vmul.f32 %v2065, %v2065
        %v2083 = vsel %vm694, %v2067, 0.0
        %v2084 = vsel %vm694, %v2068, 0.0
        %v2085 = vadd.f32 %v2083, %v2084
        %v2086 = vsel %vm694, %v2069, 0.0
        %v2087 = vadd.f32 %v2085, %v2086
        %v2088 = vsel %vm694, %v2070, 0.0
        %v2089 = vadd.f32 %v2087, %v2088
        %v2090 = vsel %vm694, %v2071, 0.0
        %v2091 = vadd.f32 %v2089, %v2090
        %v2092 = vsel %vm694, %v2072, 0.0
        %v2093 = vadd.f32 %v2091, %v2092
        %v2094 = vsel %vm694, %v2073, 0.0
        %v2095 = vadd.f32 %v2093, %v2094
        %v2096 = vsel %vm694, %v2074, 0.0
        %v2097 = vadd.f32 %v2095, %v2096
        %v2098 = vsel %vm694, %v2075, 0.0
        %v2099 = vadd.f32 %v2097, %v2098
        %v2100 = vsel %vm694, %v2076, 0.0
        %v2101 = vadd.f32 %v2099, %v2100
        %v2102 = vsel %vm694, %v2077, 0.0
        %v2103 = vadd.f32 %v2101, %v2102
        %v2104 = vsel %vm694, %v2078, 0.0
        %v2105 = vadd.f32 %v2103, %v2104
        %v2106 = vsel %vm694, %v2079, 0.0
        %v2107 = vadd.f32 %v2105, %v2106
        %v2108 = vsel %vm694, %v2080, 0.0
        %v2109 = vadd.f32 %v2107, %v2108
        %v2110 = vsel %vm694, %v2081, 0.0
        %v2111 = vadd.f32 %v2109, %v2110
        %v2112 = vsel %vm694, %v2082, 0.0
        %v2113 = vadd.f32 %v2111, %v2112
        %v2114 = vrot.slane %v2113, 4
        %v2115 = vadd.f32 %v2113, %v2114
        %v2116 = vrot.slane %v2115, 2
        %v2117 = vadd.f32 %v2115, %v2116
        %v2118 = vrot.slane %v2117, 1
        %v2119 = vadd.f32 %v2117, %v2118
        %2120 = vst.msk [vmem:[%s550 + $0x1] sm:$0x1] %vm669, %v2119
        %2121 = vst.msk [vmem:[%s530] sm:$0xff] %vm694, %v1996
        %2122 = vst.msk [vmem:[%s530 + $0x8] sm:$0xff] %vm694, %v1997
        %2123 = vst.msk [vmem:[%s530 + $0x10] sm:$0xff] %vm694, %v1998
        %2124 = vst.msk [vmem:[%s530 + $0x18] sm:$0xff] %vm694, %v1999
        %2125 = vst.msk [vmem:[%s530 + $0x20] sm:$0xff] %vm694, %v2000
        %2126 = vst.msk [vmem:[%s530 + $0x28] sm:$0xff] %vm694, %v2001
        %2127 = vst.msk [vmem:[%s530 + $0x30] sm:$0xff] %vm694, %v2002
        %2128 = vst.msk [vmem:[%s530 + $0x38] sm:$0xff] %vm694, %v2003
        %2129 = vst.msk [vmem:[%s530 + $0x40] sm:$0xff] %vm694, %v2004
        %2130 = vst.msk [vmem:[%s530 + $0x48] sm:$0xff] %vm694, %v2005
        %2131 = vst.msk [vmem:[%s530 + $0x50] sm:$0xff] %vm694, %v2006
        %2132 = vst.msk [vmem:[%s530 + $0x58] sm:$0xff] %vm694, %v2007
        %2133 = vst.msk [vmem:[%s530 + $0x60] sm:$0xff] %vm694, %v2008
        %2134 = vst.msk [vmem:[%s530 + $0x68] sm:$0xff] %vm694, %v2009
        %2135 = vst.msk [vmem:[%s530 + $0x70] sm:$0xff] %vm694, %v2010
        %2136 = vst.msk [vmem:[%s530 + $0x78] sm:$0xff] %vm694, %v2011
        %s2137 = sand.u32 %s184, 1
        %s2138 = sand.u32 %s184, 1
        %s2139 = smul.addr %s2138, 128
        %s2140 = scalar_lea.vmem [#allocation6], %s2139
        %p2141 = scmp.lt.s32.totalorder %s19, 3
        %s2142 = scalar_select %p2141, %s19, 3
        %s2143 = smul.addr %s2142, 2
        %s2144 = scalar_lea.vmem %s7, %s2143
        // Predicated region
        $region159: #{residual_block.4} parent=145 // pred_check
          %p2145 = pneg %p194
        $region160: #{residual_block.4} parent=145 // pred_check_branch
          %2147 = sbr.rel (%p2145) target = $region162
        $region161: #{residual_block.4} parent=145 // pred_region
          %s2148 = smul.u32 4, %s19
          %s2149 = smul.addr %s2148, 2
          %s2150 = smul.addr %s2149, 8
          %s2151 = scalar_lea.vmem %s6, %s2150
          // Predicated region
          $region163: #{residual_block.4} parent=161 // pred_check
            _
          $region164: #{residual_block.4} parent=161 // pred_check_branch
            %2153 = sbr.rel (0) target = $region166
          $region165: #{residual_block.4} parent=161 // pred_region
            // Predicated region
            $region167: #{residual_block.4} parent=165 // pred_check
              _
            $region168: #{residual_block.4} parent=165 // pred_check_branch
              %2155 = sbr.rel (0) target = $region170
            $region169: #{residual_block.4} parent=165 // pred_region
              // Predicated region
              $region182: #{residual_block.4} parent=169 // pred_check
                _
              $region183: #{residual_block.4} parent=169 // pred_check_branch
                %2201 = sbr.rel (0) target = $region185
              $region184: #{residual_block.4} parent=169 // pred_region
                loop: start=0, step=1, limit=1
                $region186: #{residual_block.4} parent=184 // loop_pre_header
                  _
                $region187: #{residual_block.4} parent=184 // loop_header
                  %s2203 = sphi 0, %s2207
                  %p2204 = scmp.ge.s32.totalorder %s2203, 1
                  %s2208 = sphi %s2140, %s2140
                  %s2209 = sphi %s2151, %s2151
                $region188: #{residual_block.4} parent=184 // loop_header_branch
                  %2206 = sbr.rel (%p2204) target = $region192
                $region189: #{residual_block.4} parent=184 // loop_body
                  %v2210 = vld [vmem:[%s2208] sm:$0xff]
                  %2211 = vst [vmem:[%s2209] sm:$0xff] %v2210
                  %v2212 = vld [vmem:[%s2208 + $0x8] sm:$0xff]
                  %2213 = vst [vmem:[%s2209 + $0x8] sm:$0xff] %v2212
                  %v2214 = vld [vmem:[%s2208 + $0x10] sm:$0xff]
                  %2215 = vst [vmem:[%s2209 + $0x10] sm:$0xff] %v2214
                  %v2216 = vld [vmem:[%s2208 + $0x18] sm:$0xff]
                  %2217 = vst [vmem:[%s2209 + $0x18] sm:$0xff] %v2216
                  %v2218 = vld [vmem:[%s2208 + $0x20] sm:$0xff]
                  %2219 = vst [vmem:[%s2209 + $0x20] sm:$0xff] %v2218
                  %v2220 = vld [vmem:[%s2208 + $0x28] sm:$0xff]
                  %2221 = vst [vmem:[%s2209 + $0x28] sm:$0xff] %v2220
                  %v2222 = vld [vmem:[%s2208 + $0x30] sm:$0xff]
                  %2223 = vst [vmem:[%s2209 + $0x30] sm:$0xff] %v2222
                  %v2224 = vld [vmem:[%s2208 + $0x38] sm:$0xff]
                  %2225 = vst [vmem:[%s2209 + $0x38] sm:$0xff] %v2224
                  %v2226 = vld [vmem:[%s2208 + $0x40] sm:$0xff]
                  %2227 = vst [vmem:[%s2209 + $0x100] sm:$0xff] %v2226
                  %v2228 = vld [vmem:[%s2208 + $0x48] sm:$0xff]
                  %2229 = vst [vmem:[%s2209 + $0x108] sm:$0xff] %v2228
                  %v2230 = vld [vmem:[%s2208 + $0x50] sm:$0xff]
                  %2231 = vst [vmem:[%s2209 + $0x110] sm:$0xff] %v2230
                  %v2232 = vld [vmem:[%s2208 + $0x58] sm:$0xff]
                  %2233 = vst [vmem:[%s2209 + $0x118] sm:$0xff] %v2232
                  %v2234 = vld [vmem:[%s2208 + $0x60] sm:$0xff]
                  %2235 = vst [vmem:[%s2209 + $0x120] sm:$0xff] %v2234
                  %v2236 = vld [vmem:[%s2208 + $0x68] sm:$0xff]
                  %2237 = vst [vmem:[%s2209 + $0x128] sm:$0xff] %v2236
                  %v2238 = vld [vmem:[%s2208 + $0x70] sm:$0xff]
                  %2239 = vst [vmem:[%s2209 + $0x130] sm:$0xff] %v2238
                  %v2240 = vld [vmem:[%s2208 + $0x78] sm:$0xff]
                  %2241 = vst [vmem:[%s2209 + $0x138] sm:$0xff] %v2240
                $region190: #{residual_block.4} parent=184 // loop_footer
                  %s2207 = sadd.s32 1, %s2203
                $region191: #{residual_block.4} parent=184 // loop_footer_branch
                  %2202 = sbr.rel target = $region187
                $region192: #{residual_block.4} parent=184 // loop_exit
                  _
              $region185: #{residual_block.4} parent=169 // pred_fallthru
                _
              // Predicated region
              $region193: #{residual_block.4} parent=169 // pred_check
                _
              $region194: #{residual_block.4} parent=169 // pred_check_branch
                %2243 = sbr.rel target = $region196
              $region195: #{residual_block.4} parent=169 // pred_region
                _
              $region196: #{residual_block.4} parent=169 // pred_fallthru
                _
            $region170: #{residual_block.4} parent=165 // pred_fallthru
              _
            // Predicated region
            $region171: #{residual_block.4} parent=165 // pred_check
              _
            $region172: #{residual_block.4} parent=165 // pred_check_branch
              %2157 = sbr.rel target = $region174
            $region173: #{residual_block.4} parent=165 // pred_region
              %s2159 = ssub.s32 256, 1
              loop: start=0, step=1, limit=1
              $region175: #{residual_block.4} parent=173 // loop_pre_header
                _
              $region176: #{residual_block.4} parent=173 // loop_header
                %s2161 = sphi 0, %s2165
                %p2162 = scmp.ge.s32.totalorder %s2161, 1
                %s2166 = sphi %s2140, %s2140
                %s2167 = sphi %s2151, %s2151
              $region177: #{residual_block.4} parent=173 // loop_header_branch
                %2164 = sbr.rel (%p2162) target = $region181
              $region178: #{residual_block.4} parent=173 // loop_body
                %v2168 = vld [vmem:[%s2166] sm:%s2159]
                %2169 = vst [vmem:[%s2167] sm:%s2159] %v2168
                %v2170 = vld [vmem:[%s2166 + $0x8] sm:%s2159]
                %2171 = vst [vmem:[%s2167 + $0x8] sm:%s2159] %v2170
                %v2172 = vld [vmem:[%s2166 + $0x10] sm:%s2159]
                %2173 = vst [vmem:[%s2167 + $0x10] sm:%s2159] %v2172
                %v2174 = vld [vmem:[%s2166 + $0x18] sm:%s2159]
                %2175 = vst [vmem:[%s2167 + $0x18] sm:%s2159] %v2174
                %v2176 = vld [vmem:[%s2166 + $0x20] sm:%s2159]
                %2177 = vst [vmem:[%s2167 + $0x20] sm:%s2159] %v2176
                %v2178 = vld [vmem:[%s2166 + $0x28] sm:%s2159]
                %2179 = vst [vmem:[%s2167 + $0x28] sm:%s2159] %v2178
                %v2180 = vld [vmem:[%s2166 + $0x30] sm:%s2159]
                %2181 = vst [vmem:[%s2167 + $0x30] sm:%s2159] %v2180
                %v2182 = vld [vmem:[%s2166 + $0x38] sm:%s2159]
                %2183 = vst [vmem:[%s2167 + $0x38] sm:%s2159] %v2182
                %v2184 = vld [vmem:[%s2166 + $0x40] sm:%s2159]
                %2185 = vst [vmem:[%s2167 + $0x100] sm:%s2159] %v2184
                %v2186 = vld [vmem:[%s2166 + $0x48] sm:%s2159]
                %2187 = vst [vmem:[%s2167 + $0x108] sm:%s2159] %v2186
                %v2188 = vld [vmem:[%s2166 + $0x50] sm:%s2159]
                %2189 = vst [vmem:[%s2167 + $0x110] sm:%s2159] %v2188
                %v2190 = vld [vmem:[%s2166 + $0x58] sm:%s2159]
                %2191 = vst [vmem:[%s2167 + $0x118] sm:%s2159] %v2190
                %v2192 = vld [vmem:[%s2166 + $0x60] sm:%s2159]
                %2193 = vst [vmem:[%s2167 + $0x120] sm:%s2159] %v2192
                %v2194 = vld [vmem:[%s2166 + $0x68] sm:%s2159]
                %2195 = vst [vmem:[%s2167 + $0x128] sm:%s2159] %v2194
                %v2196 = vld [vmem:[%s2166 + $0x70] sm:%s2159]
                %2197 = vst [vmem:[%s2167 + $0x130] sm:%s2159] %v2196
                %v2198 = vld [vmem:[%s2166 + $0x78] sm:%s2159]
                %2199 = vst [vmem:[%s2167 + $0x138] sm:%s2159] %v2198
              $region179: #{residual_block.4} parent=173 // loop_footer
                %s2165 = sadd.s32 1, %s2161
              $region180: #{residual_block.4} parent=173 // loop_footer_branch
                %2160 = sbr.rel target = $region176
              $region181: #{residual_block.4} parent=173 // loop_exit
                _
            $region174: #{residual_block.4} parent=165 // pred_fallthru
              _
          $region166: #{residual_block.4} parent=161 // pred_fallthru
            _
          %2244 = vnop
        $region162: #{residual_block.4} parent=145 // pred_fallthru
          _
        // Predicated region
        $region197: #{residual_block.4} parent=145 // pred_check
          %p2245 = pneg %p220
        $region198: #{residual_block.4} parent=145 // pred_check_branch
          %2247 = sbr.rel (%p2245) target = $region200
        $region199: #{residual_block.4} parent=145 // pred_region
          _
        $region200: #{residual_block.4} parent=145 // pred_fallthru
          _
      $region146: #{residual_block.4} parent=5 // pred_fallthru
        _
      %p2248 = scmp.le.s32.totalorder 2, %s14
      // Predicated region
      $region201: #{residual_block.4} parent=5 // pred_check
        %p2249 = pneg %p2248
      $region202: #{residual_block.4} parent=5 // pred_check_branch
        %2251 = sbr.rel (%p2249) target = $region204
      $region203: #{residual_block.4} parent=5 // pred_region
        %s2252 = ssub.s32 %s14, 2
        // Predicated region
        $region205: #{residual_block.4} parent=203 // pred_check
          %p2253 = pneg %p200
        $region206: #{residual_block.4} parent=203 // pred_check_branch
          %2255 = sbr.rel (%p2253) target = $region208
        $region207: #{residual_block.4} parent=203 // pred_region
          %s2256 = sand.u32 %s185, 1
          %s2257 = sand.u32 %s185, 1
          %s2258 = smul.addr %s2257, 128
          %s2259 = scalar_lea.vmem [#allocation6], %s2258
        $region208: #{residual_block.4} parent=203 // pred_fallthru
          _
        // Predicated region
        $region209: #{residual_block.4} parent=203 // pred_check
          %p2260 = pneg %p226
        $region210: #{residual_block.4} parent=203 // pred_check_branch
          %2262 = sbr.rel (%p2260) target = $region212
        $region211: #{residual_block.4} parent=203 // pred_region
          %p2263 = scmp.lt.s32.totalorder %s20, 3
          %s2264 = scalar_select %p2263, %s20, 3
          %s2265 = smul.addr %s2264, 2
          %s2266 = scalar_lea.vmem %s7, %s2265
        $region212: #{residual_block.4} parent=203 // pred_fallthru
          _
      $region204: #{residual_block.4} parent=5 // pred_fallthru
        _
    $region6: #{residual_block.4} parent=1 // loop_footer
      %s18 = sadd.s32 1, %s14
    $region7: #{residual_block.4} parent=1 // loop_footer_branch
      %13 = sbr.rel target = $region3
    $region8: #{residual_block.4} parent=1 // loop_exit
      _

</llo_original>
